<compile_context>
chip_gen: v6e
topology: v6e:2x2x1
jax: 0.10.0
libtpu: 0.0.40
codegen_flags: <defaults>
</compile_context>

<pallas_src>
import functools

import jax
import jax.numpy as jnp
from jax.experimental import pallas as pl
from jax.experimental.pallas import tpu as pltpu


# ----------------------------- fused Pallas kernel ---------------------------

def _bert_regressor_kernel(
    x_ref,                        # (1, S, H)  f32  embedded tokens, one batch element
    mask_ref,                     # (1, 1, S)  f32  attention mask (1 = keep, 0 = pad)
    emb_ln_g_ref, emb_ln_b_ref,   # (1, H)     f32
    wqkv_ref, bqkv_ref,           # (L, H, 3H) bf16, (L, 1, 3H) f32  fused QKV proj
    wo_ref, bo_ref,               # (L, H, H)  bf16, (L, 1, H)  f32
    ln1_g_ref, ln1_b_ref,         # (L, 1, H)  f32
    w1_ref, b1_ref,               # (L, H, F)  bf16, (L, 1, F)  f32
    w2_ref, b2_ref,               # (L, F, H)  bf16, (L, 1, H)  f32
    ln2_g_ref, ln2_b_ref,         # (L, 1, H)  f32
    head_w_ref, head_b_ref,       # (1, H) f32 (pre-transposed), (1, 1) f32
    o_ref,                        # (1, 1, 1)  f32
    *, num_heads, num_layers,
):
    x = x_ref[0]                              # (S, H) f32, H on lanes
    S, H = x.shape
    dh = H // num_heads
    scale = 1.0 / (dh ** 0.5)

    def layernorm(y, g, b):
        mu = jnp.mean(y, axis=-1, keepdims=True)
        var = jnp.mean((y - mu) * (y - mu), axis=-1, keepdims=True)
        return (y - mu) * jax.lax.rsqrt(var + 1e-12) * g + b   # HF BERT eps=1e-12

    def gelu(y):
        # TODO(synk): tanh-approx GELU; HF BERT default is exact erf form (~1e-3 diff).
        c = 0.7978845608028654  # sqrt(2/pi)
        return 0.5 * y * (1.0 + jnp.tanh(c * (y + 0.044715 * y * y * y)))

    def matmul(a, w_bf16):
        # bf16 MXU operands, f32 accumulation.
        return jnp.dot(a.astype(jnp.bfloat16), w_bf16,
                       preferred_element_type=jnp.float32)

    # embedding LayerNorm
    x = layernorm(x, emb_ln_g_ref[...], emb_ln_b_ref[...])

    # additive attention bias computed in-register from the key mask: (1, S)
    bias = (1.0 - mask_ref[0]) * -1e9

    for l in range(num_layers):               # static unroll (tiny L)
        # ---- self-attention: single fused QKV projection ----
        qkv = matmul(x, wqkv_ref[l]) + bqkv_ref[l]            # (S, 3H) f32
        q = (qkv[:, 0:H] * scale).astype(jnp.bfloat16)        # 1/sqrt(dh) folded into q
        k = qkv[:, H:2 * H].astype(jnp.bfloat16)
        v = qkv[:, 2 * H:3 * H].astype(jnp.bfloat16)

        # heads are static lane slices of the H axis — no transposes, H stays on lanes
        ctx_heads = []
        for h in range(num_heads):
            sl = slice(h * dh, (h + 1) * dh)
            s = jnp.einsum("qd,kd->qk", q[:, sl], k[:, sl],
                           preferred_element_type=jnp.float32)      # (S, S)
            s = s + bias
            m = jnp.max(s, axis=-1, keepdims=True)
            p = jnp.exp(s - m)
            p = p * pl.reciprocal(jnp.sum(p, axis=-1, keepdims=True), approx=True)
            ctx_heads.append(
                jnp.dot(p.astype(jnp.bfloat16), v[:, sl],
                        preferred_element_type=jnp.float32))        # (S, dh)
        ctx = jnp.concatenate(ctx_heads, axis=-1)                   # (S, H)

        attn_out = matmul(ctx, wo_ref[l]) + bo_ref[l]
        x = layernorm(x + attn_out, ln1_g_ref[l], ln1_b_ref[l])

        # ---- feed forward ----
        hid = gelu(matmul(x, w1_ref[l]) + b1_ref[l])
        ffn_out = matmul(hid, w2_ref[l]) + b2_ref[l]
        x = layernorm(x + ffn_out, ln2_g_ref[l], ln2_b_ref[l])

    # regression head on the [CLS] token; dropout(p=0.3) is identity in eval mode.
    cls = x[0:1, :]                                                 # (1, H)
    o_ref[0] = (jnp.sum(cls * head_w_ref[...], axis=-1, keepdims=True)
                + head_b_ref[...])


# ------------------------------ model forward --------------------------------

def bert_regressor_forward(params, input_ids, attention_mask):
    B, S = input_ids.shape
    H = params["word_emb"].shape[1]
    nH = params["num_heads"]
    L = params["wqkv"].shape[0]

    # Embedding gather/sum is plain-JAX glue; everything downstream is one fused kernel.
    x = (params["word_emb"][input_ids]
         + params["pos_emb"][:S][None, :, :]
         + params["type_emb"][0][None, None, :]).astype(jnp.float32)   # (B, S, H)
    mask = attention_mask.astype(jnp.float32).reshape(B, 1, S)

    weights = [
        params["emb_ln_g"], params["emb_ln_b"],
        params["wqkv"], params["bqkv"],
        params["wo"], params["bo"],
        params["ln1_g"], params["ln1_b"],
        params["w1"], params["b1"],
        params["w2"], params["b2"],
        params["ln2_g"], params["ln2_b"],
        params["head_w"], params["head_b"],
    ]

    def per_batch_spec(shape):
        # one batch element per grid step; remaining dims are full-extent blocks
        return pl.BlockSpec((1,) + tuple(shape[1:]),
                            lambda b: (b,) + (0,) * (len(shape) - 1))

    def resident_spec(shape):
        # whole-array block, same block every grid step (weights stay VMEM-resident)
        return pl.BlockSpec(tuple(shape), lambda b: (0,) * len(shape))

    out = pl.pallas_call(
        functools.partial(_bert_regressor_kernel, num_heads=nH, num_layers=L),
        out_shape=jax.ShapeDtypeStruct((B, 1, 1), jnp.float32),
        grid=(B,),
        in_specs=[per_batch_spec(x.shape), per_batch_spec(mask.shape)]
                 + [resident_spec(w.shape) for w in weights],
        out_specs=pl.BlockSpec((1, 1, 1), lambda b: (b, 0, 0)),
        compiler_params=pltpu.CompilerParams(
            dimension_semantics=("parallel",),   # batch shards across v7x's two TCs
        ),
    )(x, mask, *weights)
    return out.reshape(B)


# ------------------------------ parameter init --------------------------------

def init_params(key, vocab=64, max_pos=16, H=32, nH=4, ffn=64, n_layers=2):
    """Raw params mirroring the PyTorch module layout (separate wq/wk/wv per layer)."""
    ks = iter(jax.random.split(key, 256))

    def nrm(shape, scale=0.02):
        return scale * jax.random.normal(next(ks), shape, dtype=jnp.float32)

    raw = {
        "num_heads": nH,
        "word_emb": nrm((vocab, H)),
        "pos_emb": nrm((max_pos, H)),
        "type_emb": nrm((2, H)),
        "emb_ln_g": jnp.ones((1, H), jnp.float32),
        "emb_ln_b": jnp.zeros((1, H), jnp.float32),
        "layers": [],
        "head_w": nrm((H, 1)),
        "head_b": jnp.zeros((1, 1), jnp.float32),
    }
    for _ in range(n_layers):
        raw["layers"].append({
            "wq": nrm((H, H)), "bq": jnp.zeros((1, H), jnp.float32),
            "wk": nrm((H, H)), "bk": jnp.zeros((1, H), jnp.float32),
            "wv": nrm((H, H)), "bv": jnp.zeros((1, H), jnp.float32),
            "wo": nrm((H, H)), "bo": jnp.zeros((1, H), jnp.float32),
            "ln1_g": jnp.ones((1, H), jnp.float32),
            "ln1_b": jnp.zeros((1, H), jnp.float32),
            "w1": nrm((H, ffn)), "b1": jnp.zeros((1, ffn), jnp.float32),
            "w2": nrm((ffn, H)), "b2": jnp.zeros((1, H), jnp.float32),
            "ln2_g": jnp.ones((1, H), jnp.float32),
            "ln2_b": jnp.zeros((1, H), jnp.float32),
        })
    return raw


def pack_params(raw):
    """Pack params for the fused kernel: QKV concatenated, layers stacked on a
    leading axis, matmul weights cast to bf16 (f32 accumulation in-kernel)."""
    layers = raw["layers"]
    st = lambda name: jnp.stack([l[name] for l in layers])
    return {
        "num_heads": raw["num_heads"],
        "word_emb": raw["word_emb"],
        "pos_emb": raw["pos_emb"],
        "type_emb": raw["type_emb"],
        "emb_ln_g": raw["emb_ln_g"], "emb_ln_b": raw["emb_ln_b"],
        "wqkv": jnp.stack(
            [jnp.concatenate([l["wq"], l["wk"], l["wv"]], axis=1) for l in layers]
        ).astype(jnp.bfloat16),
        "bqkv": jnp.stack(
            [jnp.concatenate([l["bq"], l["bk"], l["bv"]], axis=1) for l in layers]),
        "wo": st("wo").astype(jnp.bfloat16), "bo": st("bo"),
        "ln1_g": st("ln1_g"), "ln1_b": st("ln1_b"),
        "w1": st("w1").astype(jnp.bfloat16), "b1": st("b1"),
        "w2": st("w2").astype(jnp.bfloat16), "b2": st("b2"),
        "ln2_g": st("ln2_g"), "ln2_b": st("ln2_b"),
        "head_w": raw["head_w"].T,   # (1, H): lane-multiply + reduce, no width-1 matmul
        "head_b": raw["head_b"],
    }


# ----------------------------------- main -------------------------------------

if __name__ == "__main__":
    B, S, H = 2, 8, 32
    VOCAB = 64

    key = jax.random.PRNGKey(0)
    kp, kid = jax.random.split(key)

    params = pack_params(
        init_params(kp, vocab=VOCAB, max_pos=16, H=H, nH=4, ffn=64, n_layers=2))

    input_ids = jax.random.randint(kid, (B, S), 0, VOCAB, dtype=jnp.int32)
    # second example padded at the last two positions
    attention_mask = jnp.array(
        [[1, 1, 1, 1, 1, 1, 1, 1],
         [1, 1, 1, 1, 1, 1, 0, 0]], dtype=jnp.int32)

    fwd = jax.jit(functools.partial(bert_regressor_forward, params))
    out = jax.block_until_ready(fwd(input_ids, attention_mask))

    assert out.shape == (B,), out.shape
    print("KERNEL_OK")
</pallas_src>

<mosaic_0001>
module attributes {stable_mosaic.version = 11 : i64} {
  func.func @_bert_regressor_kernel(%arg0: i32, %arg1: memref<1x8x32xf32, #tpu.memory_space<vmem>>, %arg2: memref<1x1x8xf32, #tpu.memory_space<vmem>>, %arg3: memref<1x32xf32, #tpu.memory_space<vmem>>, %arg4: memref<1x32xf32, #tpu.memory_space<vmem>>, %arg5: memref<2x32x96xbf16, #tpu.memory_space<vmem>>, %arg6: memref<2x1x96xf32, #tpu.memory_space<vmem>>, %arg7: memref<2x32x32xbf16, #tpu.memory_space<vmem>>, %arg8: memref<2x1x32xf32, #tpu.memory_space<vmem>>, %arg9: memref<2x1x32xf32, #tpu.memory_space<vmem>>, %arg10: memref<2x1x32xf32, #tpu.memory_space<vmem>>, %arg11: memref<2x32x64xbf16, #tpu.memory_space<vmem>>, %arg12: memref<2x1x64xf32, #tpu.memory_space<vmem>>, %arg13: memref<2x64x32xbf16, #tpu.memory_space<vmem>>, %arg14: memref<2x1x32xf32, #tpu.memory_space<vmem>>, %arg15: memref<2x1x32xf32, #tpu.memory_space<vmem>>, %arg16: memref<2x1x32xf32, #tpu.memory_space<vmem>>, %arg17: memref<1x32xf32, #tpu.memory_space<vmem>>, %arg18: memref<1x1xf32, #tpu.memory_space<vmem>>, %arg19: memref<1x1x1xf32, #tpu.memory_space<vmem>>) attributes {dimension_semantics = [#tpu.dimension_semantics<parallel>], iteration_bounds = array<i64: 2>, scalar_prefetch = 0 : i64, scratch_operands = 0 : i64, tpu.core_type = #tpu.core_type<tc>, window_params = [{transform_indices = @transform_0, window_bounds = array<i64: 1, 8, 32>}, {transform_indices = @transform_1, window_bounds = array<i64: 1, 1, 8>}, {pipeline_mode = #tpu.pipeline_mode<synchronous>, transform_indices = @transform_2, window_bounds = array<i64: 1, 32>}, {pipeline_mode = #tpu.pipeline_mode<synchronous>, transform_indices = @transform_3, window_bounds = array<i64: 1, 32>}, {pipeline_mode = #tpu.pipeline_mode<synchronous>, transform_indices = @transform_4, window_bounds = array<i64: 2, 32, 96>}, {pipeline_mode = #tpu.pipeline_mode<synchronous>, transform_indices = @transform_5, window_bounds = array<i64: 2, 1, 96>}, {pipeline_mode = #tpu.pipeline_mode<synchronous>, transform_indices = @transform_6, window_bounds = array<i64: 2, 32, 32>}, {pipeline_mode = #tpu.pipeline_mode<synchronous>, transform_indices = @transform_7, window_bounds = array<i64: 2, 1, 32>}, {pipeline_mode = #tpu.pipeline_mode<synchronous>, transform_indices = @transform_8, window_bounds = array<i64: 2, 1, 32>}, {pipeline_mode = #tpu.pipeline_mode<synchronous>, transform_indices = @transform_9, window_bounds = array<i64: 2, 1, 32>}, {pipeline_mode = #tpu.pipeline_mode<synchronous>, transform_indices = @transform_10, window_bounds = array<i64: 2, 32, 64>}, {pipeline_mode = #tpu.pipeline_mode<synchronous>, transform_indices = @transform_11, window_bounds = array<i64: 2, 1, 64>}, {pipeline_mode = #tpu.pipeline_mode<synchronous>, transform_indices = @transform_12, window_bounds = array<i64: 2, 64, 32>}, {pipeline_mode = #tpu.pipeline_mode<synchronous>, transform_indices = @transform_13, window_bounds = array<i64: 2, 1, 32>}, {pipeline_mode = #tpu.pipeline_mode<synchronous>, transform_indices = @transform_14, window_bounds = array<i64: 2, 1, 32>}, {pipeline_mode = #tpu.pipeline_mode<synchronous>, transform_indices = @transform_15, window_bounds = array<i64: 2, 1, 32>}, {pipeline_mode = #tpu.pipeline_mode<synchronous>, transform_indices = @transform_16, window_bounds = array<i64: 1, 32>}, {pipeline_mode = #tpu.pipeline_mode<synchronous>, transform_indices = @transform_17, window_bounds = array<i64: 1, 1>}, {transform_indices = @transform_18, window_bounds = array<i64: 1, 1, 1>}]} {
    %c0 = arith.constant 0 : index
    %c0_0 = arith.constant 0 : index
    %c0_1 = arith.constant 0 : index
    %0 = vector.load %arg1[%c0, %c0_0, %c0_1] : memref<1x8x32xf32, #tpu.memory_space<vmem>>, vector<1x8x32xf32>
    %1 = vector.shape_cast %0 : vector<1x8x32xf32> to vector<8x32xf32>
    %c0_2 = arith.constant 0 : index
    %c0_3 = arith.constant 0 : index
    %2 = vector.load %arg3[%c0_2, %c0_3] : memref<1x32xf32, #tpu.memory_space<vmem>>, vector<1x32xf32>
    %c0_4 = arith.constant 0 : index
    %c0_5 = arith.constant 0 : index
    %3 = vector.load %arg4[%c0_4, %c0_5] : memref<1x32xf32, #tpu.memory_space<vmem>>, vector<1x32xf32>
    %cst = arith.constant dense<0.000000e+00> : vector<8xf32>
    %4 = vector.multi_reduction <add>, %1, %cst [1] : vector<8x32xf32> to vector<8xf32>
    %5 = vector.shape_cast %4 : vector<8xf32> to vector<8x1xf32>
    %cst_6 = arith.constant 3.200000e+01 : f32
    %6 = vector.broadcast %cst_6 : f32 to vector<8x1xf32>
    %7 = arith.divf %5, %6 : vector<8x1xf32>
    %8 = vector.broadcast %7 : vector<8x1xf32> to vector<8x32xf32>
    %9 = arith.subf %1, %8 : vector<8x32xf32>
    %10 = vector.broadcast %7 : vector<8x1xf32> to vector<8x32xf32>
    %11 = arith.subf %1, %10 : vector<8x32xf32>
    %12 = arith.mulf %9, %11 : vector<8x32xf32>
    %cst_7 = arith.constant dense<0.000000e+00> : vector<8xf32>
    %13 = vector.multi_reduction <add>, %12, %cst_7 [1] : vector<8x32xf32> to vector<8xf32>
    %14 = vector.shape_cast %13 : vector<8xf32> to vector<8x1xf32>
    %cst_8 = arith.constant 3.200000e+01 : f32
    %15 = vector.broadcast %cst_8 : f32 to vector<8x1xf32>
    %16 = arith.divf %14, %15 : vector<8x1xf32>
    %17 = vector.broadcast %7 : vector<8x1xf32> to vector<8x32xf32>
    %18 = arith.subf %1, %17 : vector<8x32xf32>
    %cst_9 = arith.constant 9.99999996E-13 : f32
    %19 = vector.broadcast %cst_9 : f32 to vector<8x1xf32>
    %20 = arith.addf %16, %19 : vector<8x1xf32>
    %21 = math.rsqrt %20 : vector<8x1xf32>
    %22 = vector.broadcast %21 : vector<8x1xf32> to vector<8x32xf32>
    %23 = arith.mulf %18, %22 : vector<8x32xf32>
    %24 = vector.broadcast %2 : vector<1x32xf32> to vector<8x32xf32>
    %25 = arith.mulf %23, %24 : vector<8x32xf32>
    %26 = vector.broadcast %3 : vector<1x32xf32> to vector<8x32xf32>
    %27 = arith.addf %25, %26 : vector<8x32xf32>
    %c0_10 = arith.constant 0 : index
    %c0_11 = arith.constant 0 : index
    %c0_12 = arith.constant 0 : index
    %28 = vector.load %arg2[%c0_10, %c0_11, %c0_12] : memref<1x1x8xf32, #tpu.memory_space<vmem>>, vector<1x1x8xf32>
    %29 = vector.shape_cast %28 : vector<1x1x8xf32> to vector<1x8xf32>
    %cst_13 = arith.constant 1.000000e+00 : f32
    %30 = vector.broadcast %cst_13 : f32 to vector<1x8xf32>
    %31 = arith.subf %30, %29 : vector<1x8xf32>
    %cst_14 = arith.constant -1.000000e+09 : f32
    %32 = vector.broadcast %cst_14 : f32 to vector<1x8xf32>
    %33 = arith.mulf %31, %32 : vector<1x8xf32>
    %c0_15 = arith.constant 0 : index
    %c0_16 = arith.constant 0 : index
    %c0_17 = arith.constant 0 : index
    %34 = vector.load %arg5[%c0_15, %c0_16, %c0_17] : memref<2x32x96xbf16, #tpu.memory_space<vmem>>, vector<1x32x96xbf16>
    %35 = vector.shape_cast %34 : vector<1x32x96xbf16> to vector<32x96xbf16>
    %36 = arith.truncf %27 : vector<8x32xf32> to vector<8x32xbf16>
    %cst_18 = arith.constant dense<0.000000e+00> : vector<8x96xf32>
    %37 = tpu.matmul %36, %35, %cst_18 {dimension_numbers = #tpu.dot_dimension_numbers<[1], [0], [0], [1], [0, 0, 1, 1], [], []>} : vector<8x32xbf16>, vector<32x96xbf16>, vector<8x96xf32> -> vector<8x96xf32>
    %c0_19 = arith.constant 0 : index
    %c0_20 = arith.constant 0 : index
    %c0_21 = arith.constant 0 : index
    %38 = vector.load %arg6[%c0_19, %c0_20, %c0_21] : memref<2x1x96xf32, #tpu.memory_space<vmem>>, vector<1x1x96xf32>
    %39 = vector.shape_cast %38 : vector<1x1x96xf32> to vector<1x96xf32>
    %40 = vector.broadcast %39 : vector<1x96xf32> to vector<8x96xf32>
    %41 = arith.addf %37, %40 : vector<8x96xf32>
    %42 = vector.extract_strided_slice %41 {offsets = [0, 0], sizes = [8, 32], strides = [1, 1]} : vector<8x96xf32> to vector<8x32xf32>
    %cst_22 = arith.constant 0.353553385 : f32
    %43 = vector.broadcast %cst_22 : f32 to vector<8x32xf32>
    %44 = arith.mulf %42, %43 : vector<8x32xf32>
    %45 = arith.truncf %44 : vector<8x32xf32> to vector<8x32xbf16>
    %46 = vector.extract_strided_slice %41 {offsets = [0, 32], sizes = [8, 32], strides = [1, 1]} : vector<8x96xf32> to vector<8x32xf32>
    %47 = arith.truncf %46 : vector<8x32xf32> to vector<8x32xbf16>
    %48 = vector.extract_strided_slice %41 {offsets = [0, 64], sizes = [8, 32], strides = [1, 1]} : vector<8x96xf32> to vector<8x32xf32>
    %49 = arith.truncf %48 : vector<8x32xf32> to vector<8x32xbf16>
    %50 = vector.extract_strided_slice %45 {offsets = [0, 0], sizes = [8, 8], strides = [1, 1]} : vector<8x32xbf16> to vector<8x8xbf16>
    %51 = vector.extract_strided_slice %47 {offsets = [0, 0], sizes = [8, 8], strides = [1, 1]} : vector<8x32xbf16> to vector<8x8xbf16>
    "tpu.trace_start"() <{level = 10 : i32, message = "qd,kd->qk"}> : () -> ()
    %cst_23 = arith.constant dense<0.000000e+00> : vector<8x8xf32>
    %52 = tpu.matmul %50, %51, %cst_23 {dimension_numbers = #tpu.dot_dimension_numbers<[1], [1], [0], [0], [0, 0, 1, 0], [], []>} : vector<8x8xbf16>, vector<8x8xbf16>, vector<8x8xf32> -> vector<8x8xf32>
    "tpu.trace_stop"() : () -> ()
    %53 = vector.broadcast %33 : vector<1x8xf32> to vector<8x8xf32>
    %54 = arith.addf %52, %53 : vector<8x8xf32>
    %cst_24 = arith.constant dense<0xFF800000> : vector<8xf32>
    %55 = vector.multi_reduction <maximumf>, %54, %cst_24 [1] : vector<8x8xf32> to vector<8xf32>
    %56 = vector.shape_cast %55 : vector<8xf32> to vector<8x1xf32>
    %57 = vector.broadcast %56 : vector<8x1xf32> to vector<8x8xf32>
    %58 = arith.subf %54, %57 : vector<8x8xf32>
    %59 = math.exp %58 : vector<8x8xf32>
    %cst_25 = arith.constant dense<0.000000e+00> : vector<8xf32>
    %60 = vector.multi_reduction <add>, %59, %cst_25 [1] : vector<8x8xf32> to vector<8xf32>
    %61 = vector.shape_cast %60 : vector<8xf32> to vector<8x1xf32>
    %62 = tpu.reciprocal %61 {approx = true} : vector<8x1xf32> -> vector<8x1xf32>
    %63 = vector.broadcast %62 : vector<8x1xf32> to vector<8x8xf32>
    %64 = arith.mulf %59, %63 : vector<8x8xf32>
    %65 = arith.truncf %64 : vector<8x8xf32> to vector<8x8xbf16>
    %66 = vector.extract_strided_slice %49 {offsets = [0, 0], sizes = [8, 8], strides = [1, 1]} : vector<8x32xbf16> to vector<8x8xbf16>
    %cst_26 = arith.constant dense<0.000000e+00> : vector<8x8xf32>
    %67 = tpu.matmul %65, %66, %cst_26 {dimension_numbers = #tpu.dot_dimension_numbers<[1], [0], [0], [1], [0, 0, 1, 1], [], []>} : vector<8x8xbf16>, vector<8x8xbf16>, vector<8x8xf32> -> vector<8x8xf32>
    %68 = vector.extract_strided_slice %45 {offsets = [0, 8], sizes = [8, 8], strides = [1, 1]} : vector<8x32xbf16> to vector<8x8xbf16>
    %69 = vector.extract_strided_slice %47 {offsets = [0, 8], sizes = [8, 8], strides = [1, 1]} : vector<8x32xbf16> to vector<8x8xbf16>
    "tpu.trace_start"() <{level = 10 : i32, message = "qd,kd->qk"}> : () -> ()
    %cst_27 = arith.constant dense<0.000000e+00> : vector<8x8xf32>
    %70 = tpu.matmul %68, %69, %cst_27 {dimension_numbers = #tpu.dot_dimension_numbers<[1], [1], [0], [0], [0, 0, 1, 0], [], []>} : vector<8x8xbf16>, vector<8x8xbf16>, vector<8x8xf32> -> vector<8x8xf32>
    "tpu.trace_stop"() : () -> ()
    %71 = vector.broadcast %33 : vector<1x8xf32> to vector<8x8xf32>
    %72 = arith.addf %70, %71 : vector<8x8xf32>
    %cst_28 = arith.constant dense<0xFF800000> : vector<8xf32>
    %73 = vector.multi_reduction <maximumf>, %72, %cst_28 [1] : vector<8x8xf32> to vector<8xf32>
    %74 = vector.shape_cast %73 : vector<8xf32> to vector<8x1xf32>
    %75 = vector.broadcast %74 : vector<8x1xf32> to vector<8x8xf32>
    %76 = arith.subf %72, %75 : vector<8x8xf32>
    %77 = math.exp %76 : vector<8x8xf32>
    %cst_29 = arith.constant dense<0.000000e+00> : vector<8xf32>
    %78 = vector.multi_reduction <add>, %77, %cst_29 [1] : vector<8x8xf32> to vector<8xf32>
    %79 = vector.shape_cast %78 : vector<8xf32> to vector<8x1xf32>
    %80 = tpu.reciprocal %79 {approx = true} : vector<8x1xf32> -> vector<8x1xf32>
    %81 = vector.broadcast %80 : vector<8x1xf32> to vector<8x8xf32>
    %82 = arith.mulf %77, %81 : vector<8x8xf32>
    %83 = arith.truncf %82 : vector<8x8xf32> to vector<8x8xbf16>
    %84 = vector.extract_strided_slice %49 {offsets = [0, 8], sizes = [8, 8], strides = [1, 1]} : vector<8x32xbf16> to vector<8x8xbf16>
    %cst_30 = arith.constant dense<0.000000e+00> : vector<8x8xf32>
    %85 = tpu.matmul %83, %84, %cst_30 {dimension_numbers = #tpu.dot_dimension_numbers<[1], [0], [0], [1], [0, 0, 1, 1], [], []>} : vector<8x8xbf16>, vector<8x8xbf16>, vector<8x8xf32> -> vector<8x8xf32>
    %86 = vector.extract_strided_slice %45 {offsets = [0, 16], sizes = [8, 8], strides = [1, 1]} : vector<8x32xbf16> to vector<8x8xbf16>
    %87 = vector.extract_strided_slice %47 {offsets = [0, 16], sizes = [8, 8], strides = [1, 1]} : vector<8x32xbf16> to vector<8x8xbf16>
    "tpu.trace_start"() <{level = 10 : i32, message = "qd,kd->qk"}> : () -> ()
    %cst_31 = arith.constant dense<0.000000e+00> : vector<8x8xf32>
    %88 = tpu.matmul %86, %87, %cst_31 {dimension_numbers = #tpu.dot_dimension_numbers<[1], [1], [0], [0], [0, 0, 1, 0], [], []>} : vector<8x8xbf16>, vector<8x8xbf16>, vector<8x8xf32> -> vector<8x8xf32>
    "tpu.trace_stop"() : () -> ()
    %89 = vector.broadcast %33 : vector<1x8xf32> to vector<8x8xf32>
    %90 = arith.addf %88, %89 : vector<8x8xf32>
    %cst_32 = arith.constant dense<0xFF800000> : vector<8xf32>
    %91 = vector.multi_reduction <maximumf>, %90, %cst_32 [1] : vector<8x8xf32> to vector<8xf32>
    %92 = vector.shape_cast %91 : vector<8xf32> to vector<8x1xf32>
    %93 = vector.broadcast %92 : vector<8x1xf32> to vector<8x8xf32>
    %94 = arith.subf %90, %93 : vector<8x8xf32>
    %95 = math.exp %94 : vector<8x8xf32>
    %cst_33 = arith.constant dense<0.000000e+00> : vector<8xf32>
    %96 = vector.multi_reduction <add>, %95, %cst_33 [1] : vector<8x8xf32> to vector<8xf32>
    %97 = vector.shape_cast %96 : vector<8xf32> to vector<8x1xf32>
    %98 = tpu.reciprocal %97 {approx = true} : vector<8x1xf32> -> vector<8x1xf32>
    %99 = vector.broadcast %98 : vector<8x1xf32> to vector<8x8xf32>
    %100 = arith.mulf %95, %99 : vector<8x8xf32>
    %101 = arith.truncf %100 : vector<8x8xf32> to vector<8x8xbf16>
    %102 = vector.extract_strided_slice %49 {offsets = [0, 16], sizes = [8, 8], strides = [1, 1]} : vector<8x32xbf16> to vector<8x8xbf16>
    %cst_34 = arith.constant dense<0.000000e+00> : vector<8x8xf32>
    %103 = tpu.matmul %101, %102, %cst_34 {dimension_numbers = #tpu.dot_dimension_numbers<[1], [0], [0], [1], [0, 0, 1, 1], [], []>} : vector<8x8xbf16>, vector<8x8xbf16>, vector<8x8xf32> -> vector<8x8xf32>
    %104 = vector.extract_strided_slice %45 {offsets = [0, 24], sizes = [8, 8], strides = [1, 1]} : vector<8x32xbf16> to vector<8x8xbf16>
    %105 = vector.extract_strided_slice %47 {offsets = [0, 24], sizes = [8, 8], strides = [1, 1]} : vector<8x32xbf16> to vector<8x8xbf16>
    "tpu.trace_start"() <{level = 10 : i32, message = "qd,kd->qk"}> : () -> ()
    %cst_35 = arith.constant dense<0.000000e+00> : vector<8x8xf32>
    %106 = tpu.matmul %104, %105, %cst_35 {dimension_numbers = #tpu.dot_dimension_numbers<[1], [1], [0], [0], [0, 0, 1, 0], [], []>} : vector<8x8xbf16>, vector<8x8xbf16>, vector<8x8xf32> -> vector<8x8xf32>
    "tpu.trace_stop"() : () -> ()
    %107 = vector.broadcast %33 : vector<1x8xf32> to vector<8x8xf32>
    %108 = arith.addf %106, %107 : vector<8x8xf32>
    %cst_36 = arith.constant dense<0xFF800000> : vector<8xf32>
    %109 = vector.multi_reduction <maximumf>, %108, %cst_36 [1] : vector<8x8xf32> to vector<8xf32>
    %110 = vector.shape_cast %109 : vector<8xf32> to vector<8x1xf32>
    %111 = vector.broadcast %110 : vector<8x1xf32> to vector<8x8xf32>
    %112 = arith.subf %108, %111 : vector<8x8xf32>
    %113 = math.exp %112 : vector<8x8xf32>
    %cst_37 = arith.constant dense<0.000000e+00> : vector<8xf32>
    %114 = vector.multi_reduction <add>, %113, %cst_37 [1] : vector<8x8xf32> to vector<8xf32>
    %115 = vector.shape_cast %114 : vector<8xf32> to vector<8x1xf32>
    %116 = tpu.reciprocal %115 {approx = true} : vector<8x1xf32> -> vector<8x1xf32>
    %117 = vector.broadcast %116 : vector<8x1xf32> to vector<8x8xf32>
    %118 = arith.mulf %113, %117 : vector<8x8xf32>
    %119 = arith.truncf %118 : vector<8x8xf32> to vector<8x8xbf16>
    %120 = vector.extract_strided_slice %49 {offsets = [0, 24], sizes = [8, 8], strides = [1, 1]} : vector<8x32xbf16> to vector<8x8xbf16>
    %cst_38 = arith.constant dense<0.000000e+00> : vector<8x8xf32>
    %121 = tpu.matmul %119, %120, %cst_38 {dimension_numbers = #tpu.dot_dimension_numbers<[1], [0], [0], [1], [0, 0, 1, 1], [], []>} : vector<8x8xbf16>, vector<8x8xbf16>, vector<8x8xf32> -> vector<8x8xf32>
    %122 = tpu.concatenate %67, %85, %103, %121 in 1 : vector<8x8xf32>, vector<8x8xf32>, vector<8x8xf32>, vector<8x8xf32> -> vector<8x32xf32>
    %c0_39 = arith.constant 0 : index
    %c0_40 = arith.constant 0 : index
    %c0_41 = arith.constant 0 : index
    %123 = vector.load %arg7[%c0_39, %c0_40, %c0_41] : memref<2x32x32xbf16, #tpu.memory_space<vmem>>, vector<1x32x32xbf16>
    %124 = vector.shape_cast %123 : vector<1x32x32xbf16> to vector<32x32xbf16>
    %125 = arith.truncf %122 : vector<8x32xf32> to vector<8x32xbf16>
    %cst_42 = arith.constant dense<0.000000e+00> : vector<8x32xf32>
    %126 = tpu.matmul %125, %124, %cst_42 {dimension_numbers = #tpu.dot_dimension_numbers<[1], [0], [0], [1], [0, 0, 1, 1], [], []>} : vector<8x32xbf16>, vector<32x32xbf16>, vector<8x32xf32> -> vector<8x32xf32>
    %c0_43 = arith.constant 0 : index
    %c0_44 = arith.constant 0 : index
    %c0_45 = arith.constant 0 : index
    %127 = vector.load %arg8[%c0_43, %c0_44, %c0_45] : memref<2x1x32xf32, #tpu.memory_space<vmem>>, vector<1x1x32xf32>
    %128 = vector.shape_cast %127 : vector<1x1x32xf32> to vector<1x32xf32>
    %129 = vector.broadcast %128 : vector<1x32xf32> to vector<8x32xf32>
    %130 = arith.addf %126, %129 : vector<8x32xf32>
    %131 = arith.addf %27, %130 : vector<8x32xf32>
    %c0_46 = arith.constant 0 : index
    %c0_47 = arith.constant 0 : index
    %c0_48 = arith.constant 0 : index
    %132 = vector.load %arg9[%c0_46, %c0_47, %c0_48] : memref<2x1x32xf32, #tpu.memory_space<vmem>>, vector<1x1x32xf32>
    %133 = vector.shape_cast %132 : vector<1x1x32xf32> to vector<1x32xf32>
    %c0_49 = arith.constant 0 : index
    %c0_50 = arith.constant 0 : index
    %c0_51 = arith.constant 0 : index
    %134 = vector.load %arg10[%c0_49, %c0_50, %c0_51] : memref<2x1x32xf32, #tpu.memory_space<vmem>>, vector<1x1x32xf32>
    %135 = vector.shape_cast %134 : vector<1x1x32xf32> to vector<1x32xf32>
    %cst_52 = arith.constant dense<0.000000e+00> : vector<8xf32>
    %136 = vector.multi_reduction <add>, %131, %cst_52 [1] : vector<8x32xf32> to vector<8xf32>
    %137 = vector.shape_cast %136 : vector<8xf32> to vector<8x1xf32>
    %cst_53 = arith.constant 3.200000e+01 : f32
    %138 = vector.broadcast %cst_53 : f32 to vector<8x1xf32>
    %139 = arith.divf %137, %138 : vector<8x1xf32>
    %140 = vector.broadcast %139 : vector<8x1xf32> to vector<8x32xf32>
    %141 = arith.subf %131, %140 : vector<8x32xf32>
    %142 = vector.broadcast %139 : vector<8x1xf32> to vector<8x32xf32>
    %143 = arith.subf %131, %142 : vector<8x32xf32>
    %144 = arith.mulf %141, %143 : vector<8x32xf32>
    %cst_54 = arith.constant dense<0.000000e+00> : vector<8xf32>
    %145 = vector.multi_reduction <add>, %144, %cst_54 [1] : vector<8x32xf32> to vector<8xf32>
    %146 = vector.shape_cast %145 : vector<8xf32> to vector<8x1xf32>
    %cst_55 = arith.constant 3.200000e+01 : f32
    %147 = vector.broadcast %cst_55 : f32 to vector<8x1xf32>
    %148 = arith.divf %146, %147 : vector<8x1xf32>
    %149 = vector.broadcast %139 : vector<8x1xf32> to vector<8x32xf32>
    %150 = arith.subf %131, %149 : vector<8x32xf32>
    %cst_56 = arith.constant 9.99999996E-13 : f32
    %151 = vector.broadcast %cst_56 : f32 to vector<8x1xf32>
    %152 = arith.addf %148, %151 : vector<8x1xf32>
    %153 = math.rsqrt %152 : vector<8x1xf32>
    %154 = vector.broadcast %153 : vector<8x1xf32> to vector<8x32xf32>
    %155 = arith.mulf %150, %154 : vector<8x32xf32>
    %156 = vector.broadcast %133 : vector<1x32xf32> to vector<8x32xf32>
    %157 = arith.mulf %155, %156 : vector<8x32xf32>
    %158 = vector.broadcast %135 : vector<1x32xf32> to vector<8x32xf32>
    %159 = arith.addf %157, %158 : vector<8x32xf32>
    %c0_57 = arith.constant 0 : index
    %c0_58 = arith.constant 0 : index
    %c0_59 = arith.constant 0 : index
    %160 = vector.load %arg11[%c0_57, %c0_58, %c0_59] : memref<2x32x64xbf16, #tpu.memory_space<vmem>>, vector<1x32x64xbf16>
    %161 = vector.shape_cast %160 : vector<1x32x64xbf16> to vector<32x64xbf16>
    %162 = arith.truncf %159 : vector<8x32xf32> to vector<8x32xbf16>
    %cst_60 = arith.constant dense<0.000000e+00> : vector<8x64xf32>
    %163 = tpu.matmul %162, %161, %cst_60 {dimension_numbers = #tpu.dot_dimension_numbers<[1], [0], [0], [1], [0, 0, 1, 1], [], []>} : vector<8x32xbf16>, vector<32x64xbf16>, vector<8x64xf32> -> vector<8x64xf32>
    %c0_61 = arith.constant 0 : index
    %c0_62 = arith.constant 0 : index
    %c0_63 = arith.constant 0 : index
    %164 = vector.load %arg12[%c0_61, %c0_62, %c0_63] : memref<2x1x64xf32, #tpu.memory_space<vmem>>, vector<1x1x64xf32>
    %165 = vector.shape_cast %164 : vector<1x1x64xf32> to vector<1x64xf32>
    %166 = vector.broadcast %165 : vector<1x64xf32> to vector<8x64xf32>
    %167 = arith.addf %163, %166 : vector<8x64xf32>
    %cst_64 = arith.constant 5.000000e-01 : f32
    %168 = vector.broadcast %cst_64 : f32 to vector<8x64xf32>
    %169 = arith.mulf %168, %167 : vector<8x64xf32>
    %cst_65 = arith.constant 4.471500e-02 : f32
    %170 = vector.broadcast %cst_65 : f32 to vector<8x64xf32>
    %171 = arith.mulf %170, %167 : vector<8x64xf32>
    %172 = arith.mulf %171, %167 : vector<8x64xf32>
    %173 = arith.mulf %172, %167 : vector<8x64xf32>
    %174 = arith.addf %167, %173 : vector<8x64xf32>
    %cst_66 = arith.constant 0.797884583 : f32
    %175 = vector.broadcast %cst_66 : f32 to vector<8x64xf32>
    %176 = arith.mulf %175, %174 : vector<8x64xf32>
    %177 = math.tanh %176 : vector<8x64xf32>
    %cst_67 = arith.constant 1.000000e+00 : f32
    %178 = vector.broadcast %cst_67 : f32 to vector<8x64xf32>
    %179 = arith.addf %178, %177 : vector<8x64xf32>
    %180 = arith.mulf %169, %179 : vector<8x64xf32>
    %c0_68 = arith.constant 0 : index
    %c0_69 = arith.constant 0 : index
    %c0_70 = arith.constant 0 : index
    %181 = vector.load %arg13[%c0_68, %c0_69, %c0_70] : memref<2x64x32xbf16, #tpu.memory_space<vmem>>, vector<1x64x32xbf16>
    %182 = vector.shape_cast %181 : vector<1x64x32xbf16> to vector<64x32xbf16>
    %183 = arith.truncf %180 : vector<8x64xf32> to vector<8x64xbf16>
    %cst_71 = arith.constant dense<0.000000e+00> : vector<8x32xf32>
    %184 = tpu.matmul %183, %182, %cst_71 {dimension_numbers = #tpu.dot_dimension_numbers<[1], [0], [0], [1], [0, 0, 1, 1], [], []>} : vector<8x64xbf16>, vector<64x32xbf16>, vector<8x32xf32> -> vector<8x32xf32>
    %c0_72 = arith.constant 0 : index
    %c0_73 = arith.constant 0 : index
    %c0_74 = arith.constant 0 : index
    %185 = vector.load %arg14[%c0_72, %c0_73, %c0_74] : memref<2x1x32xf32, #tpu.memory_space<vmem>>, vector<1x1x32xf32>
    %186 = vector.shape_cast %185 : vector<1x1x32xf32> to vector<1x32xf32>
    %187 = vector.broadcast %186 : vector<1x32xf32> to vector<8x32xf32>
    %188 = arith.addf %184, %187 : vector<8x32xf32>
    %189 = arith.addf %159, %188 : vector<8x32xf32>
    %c0_75 = arith.constant 0 : index
    %c0_76 = arith.constant 0 : index
    %c0_77 = arith.constant 0 : index
    %190 = vector.load %arg15[%c0_75, %c0_76, %c0_77] : memref<2x1x32xf32, #tpu.memory_space<vmem>>, vector<1x1x32xf32>
    %191 = vector.shape_cast %190 : vector<1x1x32xf32> to vector<1x32xf32>
    %c0_78 = arith.constant 0 : index
    %c0_79 = arith.constant 0 : index
    %c0_80 = arith.constant 0 : index
    %192 = vector.load %arg16[%c0_78, %c0_79, %c0_80] : memref<2x1x32xf32, #tpu.memory_space<vmem>>, vector<1x1x32xf32>
    %193 = vector.shape_cast %192 : vector<1x1x32xf32> to vector<1x32xf32>
    %cst_81 = arith.constant dense<0.000000e+00> : vector<8xf32>
    %194 = vector.multi_reduction <add>, %189, %cst_81 [1] : vector<8x32xf32> to vector<8xf32>
    %195 = vector.shape_cast %194 : vector<8xf32> to vector<8x1xf32>
    %cst_82 = arith.constant 3.200000e+01 : f32
    %196 = vector.broadcast %cst_82 : f32 to vector<8x1xf32>
    %197 = arith.divf %195, %196 : vector<8x1xf32>
    %198 = vector.broadcast %197 : vector<8x1xf32> to vector<8x32xf32>
    %199 = arith.subf %189, %198 : vector<8x32xf32>
    %200 = vector.broadcast %197 : vector<8x1xf32> to vector<8x32xf32>
    %201 = arith.subf %189, %200 : vector<8x32xf32>
    %202 = arith.mulf %199, %201 : vector<8x32xf32>
    %cst_83 = arith.constant dense<0.000000e+00> : vector<8xf32>
    %203 = vector.multi_reduction <add>, %202, %cst_83 [1] : vector<8x32xf32> to vector<8xf32>
    %204 = vector.shape_cast %203 : vector<8xf32> to vector<8x1xf32>
    %cst_84 = arith.constant 3.200000e+01 : f32
    %205 = vector.broadcast %cst_84 : f32 to vector<8x1xf32>
    %206 = arith.divf %204, %205 : vector<8x1xf32>
    %207 = vector.broadcast %197 : vector<8x1xf32> to vector<8x32xf32>
    %208 = arith.subf %189, %207 : vector<8x32xf32>
    %cst_85 = arith.constant 9.99999996E-13 : f32
    %209 = vector.broadcast %cst_85 : f32 to vector<8x1xf32>
    %210 = arith.addf %206, %209 : vector<8x1xf32>
    %211 = math.rsqrt %210 : vector<8x1xf32>
    %212 = vector.broadcast %211 : vector<8x1xf32> to vector<8x32xf32>
    %213 = arith.mulf %208, %212 : vector<8x32xf32>
    %214 = vector.broadcast %191 : vector<1x32xf32> to vector<8x32xf32>
    %215 = arith.mulf %213, %214 : vector<8x32xf32>
    %216 = vector.broadcast %193 : vector<1x32xf32> to vector<8x32xf32>
    %217 = arith.addf %215, %216 : vector<8x32xf32>
    %c1 = arith.constant 1 : index
    %c0_86 = arith.constant 0 : index
    %c0_87 = arith.constant 0 : index
    %218 = vector.load %arg5[%c1, %c0_86, %c0_87] : memref<2x32x96xbf16, #tpu.memory_space<vmem>>, vector<1x32x96xbf16>
    %219 = vector.shape_cast %218 : vector<1x32x96xbf16> to vector<32x96xbf16>
    %220 = arith.truncf %217 : vector<8x32xf32> to vector<8x32xbf16>
    %cst_88 = arith.constant dense<0.000000e+00> : vector<8x96xf32>
    %221 = tpu.matmul %220, %219, %cst_88 {dimension_numbers = #tpu.dot_dimension_numbers<[1], [0], [0], [1], [0, 0, 1, 1], [], []>} : vector<8x32xbf16>, vector<32x96xbf16>, vector<8x96xf32> -> vector<8x96xf32>
    %c1_89 = arith.constant 1 : index
    %c0_90 = arith.constant 0 : index
    %c0_91 = arith.constant 0 : index
    %222 = vector.load %arg6[%c1_89, %c0_90, %c0_91] : memref<2x1x96xf32, #tpu.memory_space<vmem>>, vector<1x1x96xf32>
    %223 = vector.shape_cast %222 : vector<1x1x96xf32> to vector<1x96xf32>
    %224 = vector.broadcast %223 : vector<1x96xf32> to vector<8x96xf32>
    %225 = arith.addf %221, %224 : vector<8x96xf32>
    %226 = vector.extract_strided_slice %225 {offsets = [0, 0], sizes = [8, 32], strides = [1, 1]} : vector<8x96xf32> to vector<8x32xf32>
    %cst_92 = arith.constant 0.353553385 : f32
    %227 = vector.broadcast %cst_92 : f32 to vector<8x32xf32>
    %228 = arith.mulf %226, %227 : vector<8x32xf32>
    %229 = arith.truncf %228 : vector<8x32xf32> to vector<8x32xbf16>
    %230 = vector.extract_strided_slice %225 {offsets = [0, 32], sizes = [8, 32], strides = [1, 1]} : vector<8x96xf32> to vector<8x32xf32>
    %231 = arith.truncf %230 : vector<8x32xf32> to vector<8x32xbf16>
    %232 = vector.extract_strided_slice %225 {offsets = [0, 64], sizes = [8, 32], strides = [1, 1]} : vector<8x96xf32> to vector<8x32xf32>
    %233 = arith.truncf %232 : vector<8x32xf32> to vector<8x32xbf16>
    %234 = vector.extract_strided_slice %229 {offsets = [0, 0], sizes = [8, 8], strides = [1, 1]} : vector<8x32xbf16> to vector<8x8xbf16>
    %235 = vector.extract_strided_slice %231 {offsets = [0, 0], sizes = [8, 8], strides = [1, 1]} : vector<8x32xbf16> to vector<8x8xbf16>
    "tpu.trace_start"() <{level = 10 : i32, message = "qd,kd->qk"}> : () -> ()
    %cst_93 = arith.constant dense<0.000000e+00> : vector<8x8xf32>
    %236 = tpu.matmul %234, %235, %cst_93 {dimension_numbers = #tpu.dot_dimension_numbers<[1], [1], [0], [0], [0, 0, 1, 0], [], []>} : vector<8x8xbf16>, vector<8x8xbf16>, vector<8x8xf32> -> vector<8x8xf32>
    "tpu.trace_stop"() : () -> ()
    %237 = vector.broadcast %33 : vector<1x8xf32> to vector<8x8xf32>
    %238 = arith.addf %236, %237 : vector<8x8xf32>
    %cst_94 = arith.constant dense<0xFF800000> : vector<8xf32>
    %239 = vector.multi_reduction <maximumf>, %238, %cst_94 [1] : vector<8x8xf32> to vector<8xf32>
    %240 = vector.shape_cast %239 : vector<8xf32> to vector<8x1xf32>
    %241 = vector.broadcast %240 : vector<8x1xf32> to vector<8x8xf32>
    %242 = arith.subf %238, %241 : vector<8x8xf32>
    %243 = math.exp %242 : vector<8x8xf32>
    %cst_95 = arith.constant dense<0.000000e+00> : vector<8xf32>
    %244 = vector.multi_reduction <add>, %243, %cst_95 [1] : vector<8x8xf32> to vector<8xf32>
    %245 = vector.shape_cast %244 : vector<8xf32> to vector<8x1xf32>
    %246 = tpu.reciprocal %245 {approx = true} : vector<8x1xf32> -> vector<8x1xf32>
    %247 = vector.broadcast %246 : vector<8x1xf32> to vector<8x8xf32>
    %248 = arith.mulf %243, %247 : vector<8x8xf32>
    %249 = arith.truncf %248 : vector<8x8xf32> to vector<8x8xbf16>
    %250 = vector.extract_strided_slice %233 {offsets = [0, 0], sizes = [8, 8], strides = [1, 1]} : vector<8x32xbf16> to vector<8x8xbf16>
    %cst_96 = arith.constant dense<0.000000e+00> : vector<8x8xf32>
    %251 = tpu.matmul %249, %250, %cst_96 {dimension_numbers = #tpu.dot_dimension_numbers<[1], [0], [0], [1], [0, 0, 1, 1], [], []>} : vector<8x8xbf16>, vector<8x8xbf16>, vector<8x8xf32> -> vector<8x8xf32>
    %252 = vector.extract_strided_slice %229 {offsets = [0, 8], sizes = [8, 8], strides = [1, 1]} : vector<8x32xbf16> to vector<8x8xbf16>
    %253 = vector.extract_strided_slice %231 {offsets = [0, 8], sizes = [8, 8], strides = [1, 1]} : vector<8x32xbf16> to vector<8x8xbf16>
    "tpu.trace_start"() <{level = 10 : i32, message = "qd,kd->qk"}> : () -> ()
    %cst_97 = arith.constant dense<0.000000e+00> : vector<8x8xf32>
    %254 = tpu.matmul %252, %253, %cst_97 {dimension_numbers = #tpu.dot_dimension_numbers<[1], [1], [0], [0], [0, 0, 1, 0], [], []>} : vector<8x8xbf16>, vector<8x8xbf16>, vector<8x8xf32> -> vector<8x8xf32>
    "tpu.trace_stop"() : () -> ()
    %255 = vector.broadcast %33 : vector<1x8xf32> to vector<8x8xf32>
    %256 = arith.addf %254, %255 : vector<8x8xf32>
    %cst_98 = arith.constant dense<0xFF800000> : vector<8xf32>
    %257 = vector.multi_reduction <maximumf>, %256, %cst_98 [1] : vector<8x8xf32> to vector<8xf32>
    %258 = vector.shape_cast %257 : vector<8xf32> to vector<8x1xf32>
    %259 = vector.broadcast %258 : vector<8x1xf32> to vector<8x8xf32>
    %260 = arith.subf %256, %259 : vector<8x8xf32>
    %261 = math.exp %260 : vector<8x8xf32>
    %cst_99 = arith.constant dense<0.000000e+00> : vector<8xf32>
    %262 = vector.multi_reduction <add>, %261, %cst_99 [1] : vector<8x8xf32> to vector<8xf32>
    %263 = vector.shape_cast %262 : vector<8xf32> to vector<8x1xf32>
    %264 = tpu.reciprocal %263 {approx = true} : vector<8x1xf32> -> vector<8x1xf32>
    %265 = vector.broadcast %264 : vector<8x1xf32> to vector<8x8xf32>
    %266 = arith.mulf %261, %265 : vector<8x8xf32>
    %267 = arith.truncf %266 : vector<8x8xf32> to vector<8x8xbf16>
    %268 = vector.extract_strided_slice %233 {offsets = [0, 8], sizes = [8, 8], strides = [1, 1]} : vector<8x32xbf16> to vector<8x8xbf16>
    %cst_100 = arith.constant dense<0.000000e+00> : vector<8x8xf32>
    %269 = tpu.matmul %267, %268, %cst_100 {dimension_numbers = #tpu.dot_dimension_numbers<[1], [0], [0], [1], [0, 0, 1, 1], [], []>} : vector<8x8xbf16>, vector<8x8xbf16>, vector<8x8xf32> -> vector<8x8xf32>
    %270 = vector.extract_strided_slice %229 {offsets = [0, 16], sizes = [8, 8], strides = [1, 1]} : vector<8x32xbf16> to vector<8x8xbf16>
    %271 = vector.extract_strided_slice %231 {offsets = [0, 16], sizes = [8, 8], strides = [1, 1]} : vector<8x32xbf16> to vector<8x8xbf16>
    "tpu.trace_start"() <{level = 10 : i32, message = "qd,kd->qk"}> : () -> ()
    %cst_101 = arith.constant dense<0.000000e+00> : vector<8x8xf32>
    %272 = tpu.matmul %270, %271, %cst_101 {dimension_numbers = #tpu.dot_dimension_numbers<[1], [1], [0], [0], [0, 0, 1, 0], [], []>} : vector<8x8xbf16>, vector<8x8xbf16>, vector<8x8xf32> -> vector<8x8xf32>
    "tpu.trace_stop"() : () -> ()
    %273 = vector.broadcast %33 : vector<1x8xf32> to vector<8x8xf32>
    %274 = arith.addf %272, %273 : vector<8x8xf32>
    %cst_102 = arith.constant dense<0xFF800000> : vector<8xf32>
    %275 = vector.multi_reduction <maximumf>, %274, %cst_102 [1] : vector<8x8xf32> to vector<8xf32>
    %276 = vector.shape_cast %275 : vector<8xf32> to vector<8x1xf32>
    %277 = vector.broadcast %276 : vector<8x1xf32> to vector<8x8xf32>
    %278 = arith.subf %274, %277 : vector<8x8xf32>
    %279 = math.exp %278 : vector<8x8xf32>
    %cst_103 = arith.constant dense<0.000000e+00> : vector<8xf32>
    %280 = vector.multi_reduction <add>, %279, %cst_103 [1] : vector<8x8xf32> to vector<8xf32>
    %281 = vector.shape_cast %280 : vector<8xf32> to vector<8x1xf32>
    %282 = tpu.reciprocal %281 {approx = true} : vector<8x1xf32> -> vector<8x1xf32>
    %283 = vector.broadcast %282 : vector<8x1xf32> to vector<8x8xf32>
    %284 = arith.mulf %279, %283 : vector<8x8xf32>
    %285 = arith.truncf %284 : vector<8x8xf32> to vector<8x8xbf16>
    %286 = vector.extract_strided_slice %233 {offsets = [0, 16], sizes = [8, 8], strides = [1, 1]} : vector<8x32xbf16> to vector<8x8xbf16>
    %cst_104 = arith.constant dense<0.000000e+00> : vector<8x8xf32>
    %287 = tpu.matmul %285, %286, %cst_104 {dimension_numbers = #tpu.dot_dimension_numbers<[1], [0], [0], [1], [0, 0, 1, 1], [], []>} : vector<8x8xbf16>, vector<8x8xbf16>, vector<8x8xf32> -> vector<8x8xf32>
    %288 = vector.extract_strided_slice %229 {offsets = [0, 24], sizes = [8, 8], strides = [1, 1]} : vector<8x32xbf16> to vector<8x8xbf16>
    %289 = vector.extract_strided_slice %231 {offsets = [0, 24], sizes = [8, 8], strides = [1, 1]} : vector<8x32xbf16> to vector<8x8xbf16>
    "tpu.trace_start"() <{level = 10 : i32, message = "qd,kd->qk"}> : () -> ()
    %cst_105 = arith.constant dense<0.000000e+00> : vector<8x8xf32>
    %290 = tpu.matmul %288, %289, %cst_105 {dimension_numbers = #tpu.dot_dimension_numbers<[1], [1], [0], [0], [0, 0, 1, 0], [], []>} : vector<8x8xbf16>, vector<8x8xbf16>, vector<8x8xf32> -> vector<8x8xf32>
    "tpu.trace_stop"() : () -> ()
    %291 = vector.broadcast %33 : vector<1x8xf32> to vector<8x8xf32>
    %292 = arith.addf %290, %291 : vector<8x8xf32>
    %cst_106 = arith.constant dense<0xFF800000> : vector<8xf32>
    %293 = vector.multi_reduction <maximumf>, %292, %cst_106 [1] : vector<8x8xf32> to vector<8xf32>
    %294 = vector.shape_cast %293 : vector<8xf32> to vector<8x1xf32>
    %295 = vector.broadcast %294 : vector<8x1xf32> to vector<8x8xf32>
    %296 = arith.subf %292, %295 : vector<8x8xf32>
    %297 = math.exp %296 : vector<8x8xf32>
    %cst_107 = arith.constant dense<0.000000e+00> : vector<8xf32>
    %298 = vector.multi_reduction <add>, %297, %cst_107 [1] : vector<8x8xf32> to vector<8xf32>
    %299 = vector.shape_cast %298 : vector<8xf32> to vector<8x1xf32>
    %300 = tpu.reciprocal %299 {approx = true} : vector<8x1xf32> -> vector<8x1xf32>
    %301 = vector.broadcast %300 : vector<8x1xf32> to vector<8x8xf32>
    %302 = arith.mulf %297, %301 : vector<8x8xf32>
    %303 = arith.truncf %302 : vector<8x8xf32> to vector<8x8xbf16>
    %304 = vector.extract_strided_slice %233 {offsets = [0, 24], sizes = [8, 8], strides = [1, 1]} : vector<8x32xbf16> to vector<8x8xbf16>
    %cst_108 = arith.constant dense<0.000000e+00> : vector<8x8xf32>
    %305 = tpu.matmul %303, %304, %cst_108 {dimension_numbers = #tpu.dot_dimension_numbers<[1], [0], [0], [1], [0, 0, 1, 1], [], []>} : vector<8x8xbf16>, vector<8x8xbf16>, vector<8x8xf32> -> vector<8x8xf32>
    %306 = tpu.concatenate %251, %269, %287, %305 in 1 : vector<8x8xf32>, vector<8x8xf32>, vector<8x8xf32>, vector<8x8xf32> -> vector<8x32xf32>
    %c1_109 = arith.constant 1 : index
    %c0_110 = arith.constant 0 : index
    %c0_111 = arith.constant 0 : index
    %307 = vector.load %arg7[%c1_109, %c0_110, %c0_111] : memref<2x32x32xbf16, #tpu.memory_space<vmem>>, vector<1x32x32xbf16>
    %308 = vector.shape_cast %307 : vector<1x32x32xbf16> to vector<32x32xbf16>
    %309 = arith.truncf %306 : vector<8x32xf32> to vector<8x32xbf16>
    %cst_112 = arith.constant dense<0.000000e+00> : vector<8x32xf32>
    %310 = tpu.matmul %309, %308, %cst_112 {dimension_numbers = #tpu.dot_dimension_numbers<[1], [0], [0], [1], [0, 0, 1, 1], [], []>} : vector<8x32xbf16>, vector<32x32xbf16>, vector<8x32xf32> -> vector<8x32xf32>
    %c1_113 = arith.constant 1 : index
    %c0_114 = arith.constant 0 : index
    %c0_115 = arith.constant 0 : index
    %311 = vector.load %arg8[%c1_113, %c0_114, %c0_115] : memref<2x1x32xf32, #tpu.memory_space<vmem>>, vector<1x1x32xf32>
    %312 = vector.shape_cast %311 : vector<1x1x32xf32> to vector<1x32xf32>
    %313 = vector.broadcast %312 : vector<1x32xf32> to vector<8x32xf32>
    %314 = arith.addf %310, %313 : vector<8x32xf32>
    %315 = arith.addf %217, %314 : vector<8x32xf32>
    %c1_116 = arith.constant 1 : index
    %c0_117 = arith.constant 0 : index
    %c0_118 = arith.constant 0 : index
    %316 = vector.load %arg9[%c1_116, %c0_117, %c0_118] : memref<2x1x32xf32, #tpu.memory_space<vmem>>, vector<1x1x32xf32>
    %317 = vector.shape_cast %316 : vector<1x1x32xf32> to vector<1x32xf32>
    %c1_119 = arith.constant 1 : index
    %c0_120 = arith.constant 0 : index
    %c0_121 = arith.constant 0 : index
    %318 = vector.load %arg10[%c1_119, %c0_120, %c0_121] : memref<2x1x32xf32, #tpu.memory_space<vmem>>, vector<1x1x32xf32>
    %319 = vector.shape_cast %318 : vector<1x1x32xf32> to vector<1x32xf32>
    %cst_122 = arith.constant dense<0.000000e+00> : vector<8xf32>
    %320 = vector.multi_reduction <add>, %315, %cst_122 [1] : vector<8x32xf32> to vector<8xf32>
    %321 = vector.shape_cast %320 : vector<8xf32> to vector<8x1xf32>
    %cst_123 = arith.constant 3.200000e+01 : f32
    %322 = vector.broadcast %cst_123 : f32 to vector<8x1xf32>
    %323 = arith.divf %321, %322 : vector<8x1xf32>
    %324 = vector.broadcast %323 : vector<8x1xf32> to vector<8x32xf32>
    %325 = arith.subf %315, %324 : vector<8x32xf32>
    %326 = vector.broadcast %323 : vector<8x1xf32> to vector<8x32xf32>
    %327 = arith.subf %315, %326 : vector<8x32xf32>
    %328 = arith.mulf %325, %327 : vector<8x32xf32>
    %cst_124 = arith.constant dense<0.000000e+00> : vector<8xf32>
    %329 = vector.multi_reduction <add>, %328, %cst_124 [1] : vector<8x32xf32> to vector<8xf32>
    %330 = vector.shape_cast %329 : vector<8xf32> to vector<8x1xf32>
    %cst_125 = arith.constant 3.200000e+01 : f32
    %331 = vector.broadcast %cst_125 : f32 to vector<8x1xf32>
    %332 = arith.divf %330, %331 : vector<8x1xf32>
    %333 = vector.broadcast %323 : vector<8x1xf32> to vector<8x32xf32>
    %334 = arith.subf %315, %333 : vector<8x32xf32>
    %cst_126 = arith.constant 9.99999996E-13 : f32
    %335 = vector.broadcast %cst_126 : f32 to vector<8x1xf32>
    %336 = arith.addf %332, %335 : vector<8x1xf32>
    %337 = math.rsqrt %336 : vector<8x1xf32>
    %338 = vector.broadcast %337 : vector<8x1xf32> to vector<8x32xf32>
    %339 = arith.mulf %334, %338 : vector<8x32xf32>
    %340 = vector.broadcast %317 : vector<1x32xf32> to vector<8x32xf32>
    %341 = arith.mulf %339, %340 : vector<8x32xf32>
    %342 = vector.broadcast %319 : vector<1x32xf32> to vector<8x32xf32>
    %343 = arith.addf %341, %342 : vector<8x32xf32>
    %c1_127 = arith.constant 1 : index
    %c0_128 = arith.constant 0 : index
    %c0_129 = arith.constant 0 : index
    %344 = vector.load %arg11[%c1_127, %c0_128, %c0_129] : memref<2x32x64xbf16, #tpu.memory_space<vmem>>, vector<1x32x64xbf16>
    %345 = vector.shape_cast %344 : vector<1x32x64xbf16> to vector<32x64xbf16>
    %346 = arith.truncf %343 : vector<8x32xf32> to vector<8x32xbf16>
    %cst_130 = arith.constant dense<0.000000e+00> : vector<8x64xf32>
    %347 = tpu.matmul %346, %345, %cst_130 {dimension_numbers = #tpu.dot_dimension_numbers<[1], [0], [0], [1], [0, 0, 1, 1], [], []>} : vector<8x32xbf16>, vector<32x64xbf16>, vector<8x64xf32> -> vector<8x64xf32>
    %c1_131 = arith.constant 1 : index
    %c0_132 = arith.constant 0 : index
    %c0_133 = arith.constant 0 : index
    %348 = vector.load %arg12[%c1_131, %c0_132, %c0_133] : memref<2x1x64xf32, #tpu.memory_space<vmem>>, vector<1x1x64xf32>
    %349 = vector.shape_cast %348 : vector<1x1x64xf32> to vector<1x64xf32>
    %350 = vector.broadcast %349 : vector<1x64xf32> to vector<8x64xf32>
    %351 = arith.addf %347, %350 : vector<8x64xf32>
    %cst_134 = arith.constant 5.000000e-01 : f32
    %352 = vector.broadcast %cst_134 : f32 to vector<8x64xf32>
    %353 = arith.mulf %352, %351 : vector<8x64xf32>
    %cst_135 = arith.constant 4.471500e-02 : f32
    %354 = vector.broadcast %cst_135 : f32 to vector<8x64xf32>
    %355 = arith.mulf %354, %351 : vector<8x64xf32>
    %356 = arith.mulf %355, %351 : vector<8x64xf32>
    %357 = arith.mulf %356, %351 : vector<8x64xf32>
    %358 = arith.addf %351, %357 : vector<8x64xf32>
    %cst_136 = arith.constant 0.797884583 : f32
    %359 = vector.broadcast %cst_136 : f32 to vector<8x64xf32>
    %360 = arith.mulf %359, %358 : vector<8x64xf32>
    %361 = math.tanh %360 : vector<8x64xf32>
    %cst_137 = arith.constant 1.000000e+00 : f32
    %362 = vector.broadcast %cst_137 : f32 to vector<8x64xf32>
    %363 = arith.addf %362, %361 : vector<8x64xf32>
    %364 = arith.mulf %353, %363 : vector<8x64xf32>
    %c1_138 = arith.constant 1 : index
    %c0_139 = arith.constant 0 : index
    %c0_140 = arith.constant 0 : index
    %365 = vector.load %arg13[%c1_138, %c0_139, %c0_140] : memref<2x64x32xbf16, #tpu.memory_space<vmem>>, vector<1x64x32xbf16>
    %366 = vector.shape_cast %365 : vector<1x64x32xbf16> to vector<64x32xbf16>
    %367 = arith.truncf %364 : vector<8x64xf32> to vector<8x64xbf16>
    %cst_141 = arith.constant dense<0.000000e+00> : vector<8x32xf32>
    %368 = tpu.matmul %367, %366, %cst_141 {dimension_numbers = #tpu.dot_dimension_numbers<[1], [0], [0], [1], [0, 0, 1, 1], [], []>} : vector<8x64xbf16>, vector<64x32xbf16>, vector<8x32xf32> -> vector<8x32xf32>
    %c1_142 = arith.constant 1 : index
    %c0_143 = arith.constant 0 : index
    %c0_144 = arith.constant 0 : index
    %369 = vector.load %arg14[%c1_142, %c0_143, %c0_144] : memref<2x1x32xf32, #tpu.memory_space<vmem>>, vector<1x1x32xf32>
    %370 = vector.shape_cast %369 : vector<1x1x32xf32> to vector<1x32xf32>
    %371 = vector.broadcast %370 : vector<1x32xf32> to vector<8x32xf32>
    %372 = arith.addf %368, %371 : vector<8x32xf32>
    %373 = arith.addf %343, %372 : vector<8x32xf32>
    %c1_145 = arith.constant 1 : index
    %c0_146 = arith.constant 0 : index
    %c0_147 = arith.constant 0 : index
    %374 = vector.load %arg15[%c1_145, %c0_146, %c0_147] : memref<2x1x32xf32, #tpu.memory_space<vmem>>, vector<1x1x32xf32>
    %375 = vector.shape_cast %374 : vector<1x1x32xf32> to vector<1x32xf32>
    %c1_148 = arith.constant 1 : index
    %c0_149 = arith.constant 0 : index
    %c0_150 = arith.constant 0 : index
    %376 = vector.load %arg16[%c1_148, %c0_149, %c0_150] : memref<2x1x32xf32, #tpu.memory_space<vmem>>, vector<1x1x32xf32>
    %377 = vector.shape_cast %376 : vector<1x1x32xf32> to vector<1x32xf32>
    %cst_151 = arith.constant dense<0.000000e+00> : vector<8xf32>
    %378 = vector.multi_reduction <add>, %373, %cst_151 [1] : vector<8x32xf32> to vector<8xf32>
    %379 = vector.shape_cast %378 : vector<8xf32> to vector<8x1xf32>
    %cst_152 = arith.constant 3.200000e+01 : f32
    %380 = vector.broadcast %cst_152 : f32 to vector<8x1xf32>
    %381 = arith.divf %379, %380 : vector<8x1xf32>
    %382 = vector.broadcast %381 : vector<8x1xf32> to vector<8x32xf32>
    %383 = arith.subf %373, %382 : vector<8x32xf32>
    %384 = vector.broadcast %381 : vector<8x1xf32> to vector<8x32xf32>
    %385 = arith.subf %373, %384 : vector<8x32xf32>
    %386 = arith.mulf %383, %385 : vector<8x32xf32>
    %cst_153 = arith.constant dense<0.000000e+00> : vector<8xf32>
    %387 = vector.multi_reduction <add>, %386, %cst_153 [1] : vector<8x32xf32> to vector<8xf32>
    %388 = vector.shape_cast %387 : vector<8xf32> to vector<8x1xf32>
    %cst_154 = arith.constant 3.200000e+01 : f32
    %389 = vector.broadcast %cst_154 : f32 to vector<8x1xf32>
    %390 = arith.divf %388, %389 : vector<8x1xf32>
    %391 = vector.broadcast %381 : vector<8x1xf32> to vector<8x32xf32>
    %392 = arith.subf %373, %391 : vector<8x32xf32>
    %cst_155 = arith.constant 9.99999996E-13 : f32
    %393 = vector.broadcast %cst_155 : f32 to vector<8x1xf32>
    %394 = arith.addf %390, %393 : vector<8x1xf32>
    %395 = math.rsqrt %394 : vector<8x1xf32>
    %396 = vector.broadcast %395 : vector<8x1xf32> to vector<8x32xf32>
    %397 = arith.mulf %392, %396 : vector<8x32xf32>
    %398 = vector.broadcast %375 : vector<1x32xf32> to vector<8x32xf32>
    %399 = arith.mulf %397, %398 : vector<8x32xf32>
    %400 = vector.broadcast %377 : vector<1x32xf32> to vector<8x32xf32>
    %401 = arith.addf %399, %400 : vector<8x32xf32>
    %402 = vector.extract_strided_slice %401 {offsets = [0, 0], sizes = [1, 32], strides = [1, 1]} : vector<8x32xf32> to vector<1x32xf32>
    %c0_156 = arith.constant 0 : index
    %c0_157 = arith.constant 0 : index
    %403 = vector.load %arg17[%c0_156, %c0_157] : memref<1x32xf32, #tpu.memory_space<vmem>>, vector<1x32xf32>
    %404 = arith.mulf %402, %403 : vector<1x32xf32>
    %cst_158 = arith.constant dense<0.000000e+00> : vector<1xf32>
    %405 = vector.multi_reduction <add>, %404, %cst_158 [1] : vector<1x32xf32> to vector<1xf32>
    %406 = vector.shape_cast %405 : vector<1xf32> to vector<1x1xf32>
    %c0_159 = arith.constant 0 : index
    %c0_160 = arith.constant 0 : index
    %407 = vector.load %arg18[%c0_159, %c0_160] : memref<1x1xf32, #tpu.memory_space<vmem>>, vector<1x1xf32>
    %408 = arith.addf %406, %407 : vector<1x1xf32>
    %c0_161 = arith.constant 0 : index
    %c0_162 = arith.constant 0 : index
    %c0_163 = arith.constant 0 : index
    %409 = vector.load %arg19[%c0_161, %c0_162, %c0_163] : memref<1x1x1xf32, #tpu.memory_space<vmem>>, vector<1x1x1xf32>
    %410 = vector.shape_cast %409 : vector<1x1x1xf32> to vector<1x1xf32>
    %411 = vector.shape_cast %408 : vector<1x1xf32> to vector<1x1x1xf32>
    tpu.vector_store %arg19[%c0_161, %c0_162, %c0_163], %411 {strides = array<i32>} : memref<1x1x1xf32, #tpu.memory_space<vmem>>, vector<1x1x1xf32>,
    return
  }
  func.func @transform_0(%arg0: i32) -> (i32, i32, i32) {
    %c0_i32 = arith.constant 0 : i32
    %c0_i32_0 = arith.constant 0 : i32
    %c0_i32_1 = arith.constant 0 : i32
    return %arg0, %c0_i32, %c0_i32_0 : i32, i32, i32
  }
  func.func @transform_1(%arg0: i32) -> (i32, i32, i32) {
    %c0_i32 = arith.constant 0 : i32
    %c0_i32_0 = arith.constant 0 : i32
    %c0_i32_1 = arith.constant 0 : i32
    return %arg0, %c0_i32, %c0_i32_0 : i32, i32, i32
  }
  func.func @transform_2(%arg0: i32) -> (i32, i32) {
    %c0_i32 = arith.constant 0 : i32
    %c0_i32_0 = arith.constant 0 : i32
    %c0_i32_1 = arith.constant 0 : i32
    return %c0_i32, %c0_i32_0 : i32, i32
  }
  func.func @transform_3(%arg0: i32) -> (i32, i32) {
    %c0_i32 = arith.constant 0 : i32
    %c0_i32_0 = arith.constant 0 : i32
    %c0_i32_1 = arith.constant 0 : i32
    return %c0_i32, %c0_i32_0 : i32, i32
  }
  func.func @transform_4(%arg0: i32) -> (i32, i32, i32) {
    %c0_i32 = arith.constant 0 : i32
    %c0_i32_0 = arith.constant 0 : i32
    %c0_i32_1 = arith.constant 0 : i32
    %c0_i32_2 = arith.constant 0 : i32
    return %c0_i32, %c0_i32_0, %c0_i32_1 : i32, i32, i32
  }
  func.func @transform_5(%arg0: i32) -> (i32, i32, i32) {
    %c0_i32 = arith.constant 0 : i32
    %c0_i32_0 = arith.constant 0 : i32
    %c0_i32_1 = arith.constant 0 : i32
    %c0_i32_2 = arith.constant 0 : i32
    return %c0_i32, %c0_i32_0, %c0_i32_1 : i32, i32, i32
  }
  func.func @transform_6(%arg0: i32) -> (i32, i32, i32) {
    %c0_i32 = arith.constant 0 : i32
    %c0_i32_0 = arith.constant 0 : i32
    %c0_i32_1 = arith.constant 0 : i32
    %c0_i32_2 = arith.constant 0 : i32
    return %c0_i32, %c0_i32_0, %c0_i32_1 : i32, i32, i32
  }
  func.func @transform_7(%arg0: i32) -> (i32, i32, i32) {
    %c0_i32 = arith.constant 0 : i32
    %c0_i32_0 = arith.constant 0 : i32
    %c0_i32_1 = arith.constant 0 : i32
    %c0_i32_2 = arith.constant 0 : i32
    return %c0_i32, %c0_i32_0, %c0_i32_1 : i32, i32, i32
  }
  func.func @transform_8(%arg0: i32) -> (i32, i32, i32) {
    %c0_i32 = arith.constant 0 : i32
    %c0_i32_0 = arith.constant 0 : i32
    %c0_i32_1 = arith.constant 0 : i32
    %c0_i32_2 = arith.constant 0 : i32
    return %c0_i32, %c0_i32_0, %c0_i32_1 : i32, i32, i32
  }
  func.func @transform_9(%arg0: i32) -> (i32, i32, i32) {
    %c0_i32 = arith.constant 0 : i32
    %c0_i32_0 = arith.constant 0 : i32
    %c0_i32_1 = arith.constant 0 : i32
    %c0_i32_2 = arith.constant 0 : i32
    return %c0_i32, %c0_i32_0, %c0_i32_1 : i32, i32, i32
  }
  func.func @transform_10(%arg0: i32) -> (i32, i32, i32) {
    %c0_i32 = arith.constant 0 : i32
    %c0_i32_0 = arith.constant 0 : i32
    %c0_i32_1 = arith.constant 0 : i32
    %c0_i32_2 = arith.constant 0 : i32
    return %c0_i32, %c0_i32_0, %c0_i32_1 : i32, i32, i32
  }
  func.func @transform_11(%arg0: i32) -> (i32, i32, i32) {
    %c0_i32 = arith.constant 0 : i32
    %c0_i32_0 = arith.constant 0 : i32
    %c0_i32_1 = arith.constant 0 : i32
    %c0_i32_2 = arith.constant 0 : i32
    return %c0_i32, %c0_i32_0, %c0_i32_1 : i32, i32, i32
  }
  func.func @transform_12(%arg0: i32) -> (i32, i32, i32) {
    %c0_i32 = arith.constant 0 : i32
    %c0_i32_0 = arith.constant 0 : i32
    %c0_i32_1 = arith.constant 0 : i32
    %c0_i32_2 = arith.constant 0 : i32
    return %c0_i32, %c0_i32_0, %c0_i32_1 : i32, i32, i32
  }
  func.func @transform_13(%arg0: i32) -> (i32, i32, i32) {
    %c0_i32 = arith.constant 0 : i32
    %c0_i32_0 = arith.constant 0 : i32
    %c0_i32_1 = arith.constant 0 : i32
    %c0_i32_2 = arith.constant 0 : i32
    return %c0_i32, %c0_i32_0, %c0_i32_1 : i32, i32, i32
  }
  func.func @transform_14(%arg0: i32) -> (i32, i32, i32) {
    %c0_i32 = arith.constant 0 : i32
    %c0_i32_0 = arith.constant 0 : i32
    %c0_i32_1 = arith.constant 0 : i32
    %c0_i32_2 = arith.constant 0 : i32
    return %c0_i32, %c0_i32_0, %c0_i32_1 : i32, i32, i32
  }
  func.func @transform_15(%arg0: i32) -> (i32, i32, i32) {
    %c0_i32 = arith.constant 0 : i32
    %c0_i32_0 = arith.constant 0 : i32
    %c0_i32_1 = arith.constant 0 : i32
    %c0_i32_2 = arith.constant 0 : i32
    return %c0_i32, %c0_i32_0, %c0_i32_1 : i32, i32, i32
  }
  func.func @transform_16(%arg0: i32) -> (i32, i32) {
    %c0_i32 = arith.constant 0 : i32
    %c0_i32_0 = arith.constant 0 : i32
    %c0_i32_1 = arith.constant 0 : i32
    return %c0_i32, %c0_i32_0 : i32, i32
  }
  func.func @transform_17(%arg0: i32) -> (i32, i32) {
    %c0_i32 = arith.constant 0 : i32
    %c0_i32_0 = arith.constant 0 : i32
    %c0_i32_1 = arith.constant 0 : i32
    return %c0_i32, %c0_i32_0 : i32, i32
  }
  func.func @transform_18(%arg0: i32) -> (i32, i32, i32) {
    %c0_i32 = arith.constant 0 : i32
    %c0_i32_0 = arith.constant 0 : i32
    %c0_i32_1 = arith.constant 0 : i32
    return %arg0, %c0_i32, %c0_i32_0 : i32, i32, i32
  }
}

</mosaic_0001>

<llo_original>
// kernel: bert_regressor_forward.1
$region0: #{bert_regressor_forward.1}
  #allocation0 [shape = 'u32[]', space=smem, size = 0x4, offset = 0x4, fixed_abs, tag = 'smem constant byte address 0x4 - core index']
  #allocation1 [shape = 'u32[144,128]{1,0:T(1,128)}', space=vmem, size = 0x12000, scoped, tag = 'internal scratch']
  #allocation2 [shape = 'f32[1,1]{1,0:T(1,128)S(1)}', space=vmem, size = 0x200, scoped, tag = 'scoped memory for bert_regressor_forward.1']
  %s0 = inlined_call_operand.vmem [shape: f32[2,8,32], index: 0, kind: input, shape index: {}]
  %s1 = inlined_call_operand.vmem [shape: f32[2,1,8], index: 1, kind: input, shape index: {}]
  %s2 = inlined_call_operand.vmem [shape: f32[1,32], index: 2, kind: input, shape index: {}]
  %s3 = inlined_call_operand.vmem [shape: f32[1,32], index: 3, kind: input, shape index: {}]
  %s4 = inlined_call_operand.vmem [shape: bf16[2,32,96], index: 4, kind: input, shape index: {}]
  %s5 = inlined_call_operand.vmem [shape: f32[2,1,96], index: 5, kind: input, shape index: {}]
  %s6 = inlined_call_operand.vmem [shape: bf16[2,32,32], index: 6, kind: input, shape index: {}]
  %s7 = inlined_call_operand.vmem [shape: f32[2,1,32], index: 7, kind: input, shape index: {}, may-alias: {7,9,13,15}]
  %s8 = inlined_call_operand.vmem [shape: f32[2,1,32], index: 8, kind: input, shape index: {}, may-alias: {8,14}]
  %s9 = inlined_call_operand.vmem [shape: f32[2,1,32], index: 9, kind: input, shape index: {}, may-alias: {7,9,13,15}]
  %s10 = inlined_call_operand.vmem [shape: bf16[2,32,64], index: 10, kind: input, shape index: {}]
  %s11 = inlined_call_operand.vmem [shape: f32[2,1,64], index: 11, kind: input, shape index: {}]
  %s12 = inlined_call_operand.vmem [shape: bf16[2,64,32], index: 12, kind: input, shape index: {}]
  %s13 = inlined_call_operand.vmem [shape: f32[2,1,32], index: 13, kind: input, shape index: {}, may-alias: {7,9,13,15}]
  %s14 = inlined_call_operand.vmem [shape: f32[2,1,32], index: 14, kind: input, shape index: {}, may-alias: {8,14}]
  %s15 = inlined_call_operand.vmem [shape: f32[2,1,32], index: 15, kind: input, shape index: {}, may-alias: {7,9,13,15}]
  %s16 = inlined_call_operand.vmem [shape: f32[1,32], index: 16, kind: input, shape index: {}]
  %s17 = inlined_call_operand.<no memory space> [shape: f32[1,1], index: 17, kind: input, shape index: {}]
  %s18 = inlined_call_operand.vmem [shape: f32[2,1,1], index: 18, kind: output, shape index: {}]
  %s19 = sld [smem:[#allocation0]]
  $region105: #{bert_regressor_forward.1} parent=0
    _
  %s21 = ssub.s32 1, %s19
  %s22 = scalar_select 0, %s21, %s19
  %v23 = vstv %s17
  %24 = vst [vmem:[#allocation2] sm:$0x1] %v23
  loop: start=0, step=1, limit=4
  $region2: #{bert_regressor_forward.1} parent=0 // loop_pre_header
    _
  $region3: #{bert_regressor_forward.1} parent=0 // loop_header
    %s26 = sphi 0, %s30
    %p27 = scmp.ge.s32.totalorder %s26, 4
    %s36 = sphi 0, %s38
    %s39 = sphi 0, %s36
    %s40 = sphi 0, %s39
    %s56 = sphi 0, %s40
    %s62 = sphi 0, %s64
    %s65 = sphi 0, %s62
    %s66 = sphi 0, %s65
    %s82 = sphi 0, %s66
    %s86 = sphi 0, %s86
    %s88 = sphi 0, %s86
    %s89 = sphi 0, %s88
    %s103 = sphi 0, %s89
    %s107 = sphi 0, %s107
    %s109 = sphi 0, %s107
    %s110 = sphi 0, %s109
    %s124 = sphi 0, %s110
    %s128 = sphi 0, %s128
    %s130 = sphi 0, %s128
    %s131 = sphi 0, %s130
    %s145 = sphi 0, %s131
    %s149 = sphi 0, %s149
    %s151 = sphi 0, %s149
    %s152 = sphi 0, %s151
    %s166 = sphi 0, %s152
    %s170 = sphi 0, %s170
    %s172 = sphi 0, %s170
    %s173 = sphi 0, %s172
    %s187 = sphi 0, %s173
    %s191 = sphi 0, %s191
    %s193 = sphi 0, %s191
    %s194 = sphi 0, %s193
    %s208 = sphi 0, %s194
    %s212 = sphi 0, %s212
    %s214 = sphi 0, %s212
    %s215 = sphi 0, %s214
    %s229 = sphi 0, %s215
    %s233 = sphi 0, %s233
    %s235 = sphi 0, %s233
    %s236 = sphi 0, %s235
    %s250 = sphi 0, %s236
    %s254 = sphi 0, %s254
    %s256 = sphi 0, %s254
    %s257 = sphi 0, %s256
    %s271 = sphi 0, %s257
    %s275 = sphi 0, %s275
    %s277 = sphi 0, %s275
    %s278 = sphi 0, %s277
    %s292 = sphi 0, %s278
    %s296 = sphi 0, %s296
    %s298 = sphi 0, %s296
    %s299 = sphi 0, %s298
    %s313 = sphi 0, %s299
    %s317 = sphi 0, %s317
    %s319 = sphi 0, %s317
    %s320 = sphi 0, %s319
    %s334 = sphi 0, %s320
    %s338 = sphi 0, %s338
    %s340 = sphi 0, %s338
    %s341 = sphi 0, %s340
    %s355 = sphi 0, %s341
    %s359 = sphi 0, %s359
    %s361 = sphi 0, %s359
    %s362 = sphi 0, %s361
    %s376 = sphi 0, %s362
    %s380 = sphi 0, %s380
    %s382 = sphi 0, %s380
    %s383 = sphi 0, %s382
    %s397 = sphi 0, %s383
    %s401 = sphi 0, %s401
    %s403 = sphi 0, %s401
    %s404 = sphi 0, %s403
    %s418 = sphi 0, %s404
    %s424 = sphi 0, %s426
    %s427 = sphi 0, %s424
    %s428 = sphi 0, %s427
    %s444 = sphi 0, %s428
  $region4: #{bert_regressor_forward.1} parent=0 // loop_header_branch
    %29 = sbr.rel (%p27) target = $region8
  $region5: #{bert_regressor_forward.1} parent=0 // loop_body
    %s31 = ssub.s32 %s26, 1
    %s32 = ssub.s32 %s26, 2
    %s33 = sadd.s32 %s26, 1
    %s34 = ssub.s32 %s26, %s33
    %p35 = scmp.eq.s32.totalorder %s34, 0
    %s37 = sadd.s32 %s36, 1
    %s38 = scalar_select %p35, %s36, %s37
    %p41 = pneg %p35
    %p42 = scmp.eq.s32.totalorder %s26, 1
    %p43 = por %p41, %p42
    %p44 = scmp.ne.s32.totalorder %s36, %s39
    %p45 = scmp.eq.s32.totalorder %s26, 0
    %p46 = por %p44, %p45
    %p47 = scmp.ne.s32.totalorder %s36, %s39
    %p48 = scmp.eq.s32.totalorder %s31, 1
    %p49 = por %p47, %p48
    %p50 = scmp.ne.s32.totalorder %s39, %s40
    %p51 = scmp.eq.s32.totalorder %s31, 0
    %p52 = por %p50, %p51
    %p53 = scmp.ne.s32.totalorder %s39, %s40
    %p54 = scmp.eq.s32.totalorder %s32, 1
    %p55 = por %p53, %p54
    %p57 = scmp.ne.s32.totalorder %s40, %s56
    %p58 = scmp.eq.s32.totalorder %s32, 0
    %p59 = por %p57, %p58
    %s60 = ssub.s32 %s26, %s33
    %p61 = scmp.eq.s32.totalorder %s60, 0
    %s63 = sadd.s32 %s62, 1
    %s64 = scalar_select %p61, %s62, %s63
    %p67 = pneg %p61
    %p68 = scmp.eq.s32.totalorder %s26, 1
    %p69 = por %p67, %p68
    %p70 = scmp.ne.s32.totalorder %s62, %s65
    %p71 = scmp.eq.s32.totalorder %s26, 0
    %p72 = por %p70, %p71
    %p73 = scmp.ne.s32.totalorder %s62, %s65
    %p74 = scmp.eq.s32.totalorder %s31, 1
    %p75 = por %p73, %p74
    %p76 = scmp.ne.s32.totalorder %s65, %s66
    %p77 = scmp.eq.s32.totalorder %s31, 0
    %p78 = por %p76, %p77
    %p79 = scmp.ne.s32.totalorder %s65, %s66
    %p80 = scmp.eq.s32.totalorder %s32, 1
    %p81 = por %p79, %p80
    %p83 = scmp.ne.s32.totalorder %s66, %s82
    %p84 = scmp.eq.s32.totalorder %s32, 0
    %p85 = por %p83, %p84
    %s87 = sadd.s32 %s86, 1
    %p90 = scmp.eq.s32.totalorder %s26, 1
    %p91 = scmp.ne.s32.totalorder %s86, %s88
    %p92 = scmp.eq.s32.totalorder %s26, 0
    %p93 = por %p91, %p92
    %p94 = scmp.ne.s32.totalorder %s86, %s88
    %p95 = scmp.eq.s32.totalorder %s31, 1
    %p96 = por %p94, %p95
    %p97 = scmp.ne.s32.totalorder %s88, %s89
    %p98 = scmp.eq.s32.totalorder %s31, 0
    %p99 = por %p97, %p98
    %p100 = scmp.ne.s32.totalorder %s88, %s89
    %p101 = scmp.eq.s32.totalorder %s32, 1
    %p102 = por %p100, %p101
    %p104 = scmp.ne.s32.totalorder %s89, %s103
    %p105 = scmp.eq.s32.totalorder %s32, 0
    %p106 = por %p104, %p105
    %s108 = sadd.s32 %s107, 1
    %p111 = scmp.eq.s32.totalorder %s26, 1
    %p112 = scmp.ne.s32.totalorder %s107, %s109
    %p113 = scmp.eq.s32.totalorder %s26, 0
    %p114 = por %p112, %p113
    %p115 = scmp.ne.s32.totalorder %s107, %s109
    %p116 = scmp.eq.s32.totalorder %s31, 1
    %p117 = por %p115, %p116
    %p118 = scmp.ne.s32.totalorder %s109, %s110
    %p119 = scmp.eq.s32.totalorder %s31, 0
    %p120 = por %p118, %p119
    %p121 = scmp.ne.s32.totalorder %s109, %s110
    %p122 = scmp.eq.s32.totalorder %s32, 1
    %p123 = por %p121, %p122
    %p125 = scmp.ne.s32.totalorder %s110, %s124
    %p126 = scmp.eq.s32.totalorder %s32, 0
    %p127 = por %p125, %p126
    %s129 = sadd.s32 %s128, 1
    %p132 = scmp.eq.s32.totalorder %s26, 1
    %p133 = scmp.ne.s32.totalorder %s128, %s130
    %p134 = scmp.eq.s32.totalorder %s26, 0
    %p135 = por %p133, %p134
    %p136 = scmp.ne.s32.totalorder %s128, %s130
    %p137 = scmp.eq.s32.totalorder %s31, 1
    %p138 = por %p136, %p137
    %p139 = scmp.ne.s32.totalorder %s130, %s131
    %p140 = scmp.eq.s32.totalorder %s31, 0
    %p141 = por %p139, %p140
    %p142 = scmp.ne.s32.totalorder %s130, %s131
    %p143 = scmp.eq.s32.totalorder %s32, 1
    %p144 = por %p142, %p143
    %p146 = scmp.ne.s32.totalorder %s131, %s145
    %p147 = scmp.eq.s32.totalorder %s32, 0
    %p148 = por %p146, %p147
    %s150 = sadd.s32 %s149, 1
    %p153 = scmp.eq.s32.totalorder %s26, 1
    %p154 = scmp.ne.s32.totalorder %s149, %s151
    %p155 = scmp.eq.s32.totalorder %s26, 0
    %p156 = por %p154, %p155
    %p157 = scmp.ne.s32.totalorder %s149, %s151
    %p158 = scmp.eq.s32.totalorder %s31, 1
    %p159 = por %p157, %p158
    %p160 = scmp.ne.s32.totalorder %s151, %s152
    %p161 = scmp.eq.s32.totalorder %s31, 0
    %p162 = por %p160, %p161
    %p163 = scmp.ne.s32.totalorder %s151, %s152
    %p164 = scmp.eq.s32.totalorder %s32, 1
    %p165 = por %p163, %p164
    %p167 = scmp.ne.s32.totalorder %s152, %s166
    %p168 = scmp.eq.s32.totalorder %s32, 0
    %p169 = por %p167, %p168
    %s171 = sadd.s32 %s170, 1
    %p174 = scmp.eq.s32.totalorder %s26, 1
    %p175 = scmp.ne.s32.totalorder %s170, %s172
    %p176 = scmp.eq.s32.totalorder %s26, 0
    %p177 = por %p175, %p176
    %p178 = scmp.ne.s32.totalorder %s170, %s172
    %p179 = scmp.eq.s32.totalorder %s31, 1
    %p180 = por %p178, %p179
    %p181 = scmp.ne.s32.totalorder %s172, %s173
    %p182 = scmp.eq.s32.totalorder %s31, 0
    %p183 = por %p181, %p182
    %p184 = scmp.ne.s32.totalorder %s172, %s173
    %p185 = scmp.eq.s32.totalorder %s32, 1
    %p186 = por %p184, %p185
    %p188 = scmp.ne.s32.totalorder %s173, %s187
    %p189 = scmp.eq.s32.totalorder %s32, 0
    %p190 = por %p188, %p189
    %s192 = sadd.s32 %s191, 1
    %p195 = scmp.eq.s32.totalorder %s26, 1
    %p196 = scmp.ne.s32.totalorder %s191, %s193
    %p197 = scmp.eq.s32.totalorder %s26, 0
    %p198 = por %p196, %p197
    %p199 = scmp.ne.s32.totalorder %s191, %s193
    %p200 = scmp.eq.s32.totalorder %s31, 1
    %p201 = por %p199, %p200
    %p202 = scmp.ne.s32.totalorder %s193, %s194
    %p203 = scmp.eq.s32.totalorder %s31, 0
    %p204 = por %p202, %p203
    %p205 = scmp.ne.s32.totalorder %s193, %s194
    %p206 = scmp.eq.s32.totalorder %s32, 1
    %p207 = por %p205, %p206
    %p209 = scmp.ne.s32.totalorder %s194, %s208
    %p210 = scmp.eq.s32.totalorder %s32, 0
    %p211 = por %p209, %p210
    %s213 = sadd.s32 %s212, 1
    %p216 = scmp.eq.s32.totalorder %s26, 1
    %p217 = scmp.ne.s32.totalorder %s212, %s214
    %p218 = scmp.eq.s32.totalorder %s26, 0
    %p219 = por %p217, %p218
    %p220 = scmp.ne.s32.totalorder %s212, %s214
    %p221 = scmp.eq.s32.totalorder %s31, 1
    %p222 = por %p220, %p221
    %p223 = scmp.ne.s32.totalorder %s214, %s215
    %p224 = scmp.eq.s32.totalorder %s31, 0
    %p225 = por %p223, %p224
    %p226 = scmp.ne.s32.totalorder %s214, %s215
    %p227 = scmp.eq.s32.totalorder %s32, 1
    %p228 = por %p226, %p227
    %p230 = scmp.ne.s32.totalorder %s215, %s229
    %p231 = scmp.eq.s32.totalorder %s32, 0
    %p232 = por %p230, %p231
    %s234 = sadd.s32 %s233, 1
    %p237 = scmp.eq.s32.totalorder %s26, 1
    %p238 = scmp.ne.s32.totalorder %s233, %s235
    %p239 = scmp.eq.s32.totalorder %s26, 0
    %p240 = por %p238, %p239
    %p241 = scmp.ne.s32.totalorder %s233, %s235
    %p242 = scmp.eq.s32.totalorder %s31, 1
    %p243 = por %p241, %p242
    %p244 = scmp.ne.s32.totalorder %s235, %s236
    %p245 = scmp.eq.s32.totalorder %s31, 0
    %p246 = por %p244, %p245
    %p247 = scmp.ne.s32.totalorder %s235, %s236
    %p248 = scmp.eq.s32.totalorder %s32, 1
    %p249 = por %p247, %p248
    %p251 = scmp.ne.s32.totalorder %s236, %s250
    %p252 = scmp.eq.s32.totalorder %s32, 0
    %p253 = por %p251, %p252
    %s255 = sadd.s32 %s254, 1
    %p258 = scmp.eq.s32.totalorder %s26, 1
    %p259 = scmp.ne.s32.totalorder %s254, %s256
    %p260 = scmp.eq.s32.totalorder %s26, 0
    %p261 = por %p259, %p260
    %p262 = scmp.ne.s32.totalorder %s254, %s256
    %p263 = scmp.eq.s32.totalorder %s31, 1
    %p264 = por %p262, %p263
    %p265 = scmp.ne.s32.totalorder %s256, %s257
    %p266 = scmp.eq.s32.totalorder %s31, 0
    %p267 = por %p265, %p266
    %p268 = scmp.ne.s32.totalorder %s256, %s257
    %p269 = scmp.eq.s32.totalorder %s32, 1
    %p270 = por %p268, %p269
    %p272 = scmp.ne.s32.totalorder %s257, %s271
    %p273 = scmp.eq.s32.totalorder %s32, 0
    %p274 = por %p272, %p273
    %s276 = sadd.s32 %s275, 1
    %p279 = scmp.eq.s32.totalorder %s26, 1
    %p280 = scmp.ne.s32.totalorder %s275, %s277
    %p281 = scmp.eq.s32.totalorder %s26, 0
    %p282 = por %p280, %p281
    %p283 = scmp.ne.s32.totalorder %s275, %s277
    %p284 = scmp.eq.s32.totalorder %s31, 1
    %p285 = por %p283, %p284
    %p286 = scmp.ne.s32.totalorder %s277, %s278
    %p287 = scmp.eq.s32.totalorder %s31, 0
    %p288 = por %p286, %p287
    %p289 = scmp.ne.s32.totalorder %s277, %s278
    %p290 = scmp.eq.s32.totalorder %s32, 1
    %p291 = por %p289, %p290
    %p293 = scmp.ne.s32.totalorder %s278, %s292
    %p294 = scmp.eq.s32.totalorder %s32, 0
    %p295 = por %p293, %p294
    %s297 = sadd.s32 %s296, 1
    %p300 = scmp.eq.s32.totalorder %s26, 1
    %p301 = scmp.ne.s32.totalorder %s296, %s298
    %p302 = scmp.eq.s32.totalorder %s26, 0
    %p303 = por %p301, %p302
    %p304 = scmp.ne.s32.totalorder %s296, %s298
    %p305 = scmp.eq.s32.totalorder %s31, 1
    %p306 = por %p304, %p305
    %p307 = scmp.ne.s32.totalorder %s298, %s299
    %p308 = scmp.eq.s32.totalorder %s31, 0
    %p309 = por %p307, %p308
    %p310 = scmp.ne.s32.totalorder %s298, %s299
    %p311 = scmp.eq.s32.totalorder %s32, 1
    %p312 = por %p310, %p311
    %p314 = scmp.ne.s32.totalorder %s299, %s313
    %p315 = scmp.eq.s32.totalorder %s32, 0
    %p316 = por %p314, %p315
    %s318 = sadd.s32 %s317, 1
    %p321 = scmp.eq.s32.totalorder %s26, 1
    %p322 = scmp.ne.s32.totalorder %s317, %s319
    %p323 = scmp.eq.s32.totalorder %s26, 0
    %p324 = por %p322, %p323
    %p325 = scmp.ne.s32.totalorder %s317, %s319
    %p326 = scmp.eq.s32.totalorder %s31, 1
    %p327 = por %p325, %p326
    %p328 = scmp.ne.s32.totalorder %s319, %s320
    %p329 = scmp.eq.s32.totalorder %s31, 0
    %p330 = por %p328, %p329
    %p331 = scmp.ne.s32.totalorder %s319, %s320
    %p332 = scmp.eq.s32.totalorder %s32, 1
    %p333 = por %p331, %p332
    %p335 = scmp.ne.s32.totalorder %s320, %s334
    %p336 = scmp.eq.s32.totalorder %s32, 0
    %p337 = por %p335, %p336
    %s339 = sadd.s32 %s338, 1
    %p342 = scmp.eq.s32.totalorder %s26, 1
    %p343 = scmp.ne.s32.totalorder %s338, %s340
    %p344 = scmp.eq.s32.totalorder %s26, 0
    %p345 = por %p343, %p344
    %p346 = scmp.ne.s32.totalorder %s338, %s340
    %p347 = scmp.eq.s32.totalorder %s31, 1
    %p348 = por %p346, %p347
    %p349 = scmp.ne.s32.totalorder %s340, %s341
    %p350 = scmp.eq.s32.totalorder %s31, 0
    %p351 = por %p349, %p350
    %p352 = scmp.ne.s32.totalorder %s340, %s341
    %p353 = scmp.eq.s32.totalorder %s32, 1
    %p354 = por %p352, %p353
    %p356 = scmp.ne.s32.totalorder %s341, %s355
    %p357 = scmp.eq.s32.totalorder %s32, 0
    %p358 = por %p356, %p357
    %s360 = sadd.s32 %s359, 1
    %p363 = scmp.eq.s32.totalorder %s26, 1
    %p364 = scmp.ne.s32.totalorder %s359, %s361
    %p365 = scmp.eq.s32.totalorder %s26, 0
    %p366 = por %p364, %p365
    %p367 = scmp.ne.s32.totalorder %s359, %s361
    %p368 = scmp.eq.s32.totalorder %s31, 1
    %p369 = por %p367, %p368
    %p370 = scmp.ne.s32.totalorder %s361, %s362
    %p371 = scmp.eq.s32.totalorder %s31, 0
    %p372 = por %p370, %p371
    %p373 = scmp.ne.s32.totalorder %s361, %s362
    %p374 = scmp.eq.s32.totalorder %s32, 1
    %p375 = por %p373, %p374
    %p377 = scmp.ne.s32.totalorder %s362, %s376
    %p378 = scmp.eq.s32.totalorder %s32, 0
    %p379 = por %p377, %p378
    %s381 = sadd.s32 %s380, 1
    %p384 = scmp.eq.s32.totalorder %s26, 1
    %p385 = scmp.ne.s32.totalorder %s380, %s382
    %p386 = scmp.eq.s32.totalorder %s26, 0
    %p387 = por %p385, %p386
    %p388 = scmp.ne.s32.totalorder %s380, %s382
    %p389 = scmp.eq.s32.totalorder %s31, 1
    %p390 = por %p388, %p389
    %p391 = scmp.ne.s32.totalorder %s382, %s383
    %p392 = scmp.eq.s32.totalorder %s31, 0
    %p393 = por %p391, %p392
    %p394 = scmp.ne.s32.totalorder %s382, %s383
    %p395 = scmp.eq.s32.totalorder %s32, 1
    %p396 = por %p394, %p395
    %p398 = scmp.ne.s32.totalorder %s383, %s397
    %p399 = scmp.eq.s32.totalorder %s32, 0
    %p400 = por %p398, %p399
    %s402 = sadd.s32 %s401, 1
    %p405 = scmp.eq.s32.totalorder %s26, 1
    %p406 = scmp.ne.s32.totalorder %s401, %s403
    %p407 = scmp.eq.s32.totalorder %s26, 0
    %p408 = por %p406, %p407
    %p409 = scmp.ne.s32.totalorder %s401, %s403
    %p410 = scmp.eq.s32.totalorder %s31, 1
    %p411 = por %p409, %p410
    %p412 = scmp.ne.s32.totalorder %s403, %s404
    %p413 = scmp.eq.s32.totalorder %s31, 0
    %p414 = por %p412, %p413
    %p415 = scmp.ne.s32.totalorder %s403, %s404
    %p416 = scmp.eq.s32.totalorder %s32, 1
    %p417 = por %p415, %p416
    %p419 = scmp.ne.s32.totalorder %s404, %s418
    %p420 = scmp.eq.s32.totalorder %s32, 0
    %p421 = por %p419, %p420
    %s422 = ssub.s32 %s26, %s33
    %p423 = scmp.eq.s32.totalorder %s422, 0
    %s425 = sadd.s32 %s424, 1
    %s426 = scalar_select %p423, %s424, %s425
    %p429 = pneg %p423
    %p430 = scmp.eq.s32.totalorder %s26, 1
    %p431 = por %p429, %p430
    %p432 = scmp.ne.s32.totalorder %s424, %s427
    %p433 = scmp.eq.s32.totalorder %s26, 0
    %p434 = por %p432, %p433
    %p435 = scmp.ne.s32.totalorder %s424, %s427
    %p436 = scmp.eq.s32.totalorder %s31, 1
    %p437 = por %p435, %p436
    %p438 = scmp.ne.s32.totalorder %s427, %s428
    %p439 = scmp.eq.s32.totalorder %s31, 0
    %p440 = por %p438, %p439
    %p441 = scmp.ne.s32.totalorder %s427, %s428
    %p442 = scmp.eq.s32.totalorder %s32, 1
    %p443 = por %p441, %p442
    %p445 = scmp.ne.s32.totalorder %s428, %s444
    %p446 = scmp.eq.s32.totalorder %s32, 0
    %p447 = por %p445, %p446
    %p448 = scmp.le.s32.totalorder 1, %s26
    %p449 = scmp.lt.s32.totalorder %s26, 3
    %p450 = pnand %p448, %p449
    %p451 = pneg %p450
    // Predicated region
    $region9: #{bert_regressor_forward.1} parent=5 // pred_check
      _
    $region10: #{bert_regressor_forward.1} parent=5 // pred_check_branch
      %453 = sbr.rel (%p450) target = $region12
    $region11: #{bert_regressor_forward.1} parent=5 // pred_region
      %s454 = ssub.s32 %s26, 1
      // Predicated region
      $region13: #{bert_regressor_forward.1} parent=11 // pred_check
        %p455 = pneg %p99
      $region14: #{bert_regressor_forward.1} parent=11 // pred_check_branch
        %457 = sbr.rel (%p455) target = $region16
      $region15: #{bert_regressor_forward.1} parent=11 // pred_region
        _
      $region16: #{bert_regressor_forward.1} parent=11 // pred_fallthru
        _
      // Predicated region
      $region17: #{bert_regressor_forward.1} parent=11 // pred_check
        %p458 = pneg %p120
      $region18: #{bert_regressor_forward.1} parent=11 // pred_check_branch
        %460 = sbr.rel (%p458) target = $region20
      $region19: #{bert_regressor_forward.1} parent=11 // pred_region
        _
      $region20: #{bert_regressor_forward.1} parent=11 // pred_fallthru
        _
      // Predicated region
      $region21: #{bert_regressor_forward.1} parent=11 // pred_check
        %p461 = pneg %p141
      $region22: #{bert_regressor_forward.1} parent=11 // pred_check_branch
        %463 = sbr.rel (%p461) target = $region24
      $region23: #{bert_regressor_forward.1} parent=11 // pred_region
        _
      $region24: #{bert_regressor_forward.1} parent=11 // pred_fallthru
        _
      // Predicated region
      $region25: #{bert_regressor_forward.1} parent=11 // pred_check
        %p464 = pneg %p162
      $region26: #{bert_regressor_forward.1} parent=11 // pred_check_branch
        %466 = sbr.rel (%p464) target = $region28
      $region27: #{bert_regressor_forward.1} parent=11 // pred_region
        _
      $region28: #{bert_regressor_forward.1} parent=11 // pred_fallthru
        _
      // Predicated region
      $region29: #{bert_regressor_forward.1} parent=11 // pred_check
        %p467 = pneg %p183
      $region30: #{bert_regressor_forward.1} parent=11 // pred_check_branch
        %469 = sbr.rel (%p467) target = $region32
      $region31: #{bert_regressor_forward.1} parent=11 // pred_region
        _
      $region32: #{bert_regressor_forward.1} parent=11 // pred_fallthru
        _
      // Predicated region
      $region33: #{bert_regressor_forward.1} parent=11 // pred_check
        %p470 = pneg %p204
      $region34: #{bert_regressor_forward.1} parent=11 // pred_check_branch
        %472 = sbr.rel (%p470) target = $region36
      $region35: #{bert_regressor_forward.1} parent=11 // pred_region
        _
      $region36: #{bert_regressor_forward.1} parent=11 // pred_fallthru
        _
      // Predicated region
      $region37: #{bert_regressor_forward.1} parent=11 // pred_check
        %p473 = pneg %p225
      $region38: #{bert_regressor_forward.1} parent=11 // pred_check_branch
        %475 = sbr.rel (%p473) target = $region40
      $region39: #{bert_regressor_forward.1} parent=11 // pred_region
        _
      $region40: #{bert_regressor_forward.1} parent=11 // pred_fallthru
        _
      // Predicated region
      $region41: #{bert_regressor_forward.1} parent=11 // pred_check
        %p476 = pneg %p246
      $region42: #{bert_regressor_forward.1} parent=11 // pred_check_branch
        %478 = sbr.rel (%p476) target = $region44
      $region43: #{bert_regressor_forward.1} parent=11 // pred_region
        _
      $region44: #{bert_regressor_forward.1} parent=11 // pred_fallthru
        _
      // Predicated region
      $region45: #{bert_regressor_forward.1} parent=11 // pred_check
        %p479 = pneg %p267
      $region46: #{bert_regressor_forward.1} parent=11 // pred_check_branch
        %481 = sbr.rel (%p479) target = $region48
      $region47: #{bert_regressor_forward.1} parent=11 // pred_region
        _
      $region48: #{bert_regressor_forward.1} parent=11 // pred_fallthru
        _
      // Predicated region
      $region49: #{bert_regressor_forward.1} parent=11 // pred_check
        %p482 = pneg %p288
      $region50: #{bert_regressor_forward.1} parent=11 // pred_check_branch
        %484 = sbr.rel (%p482) target = $region52
      $region51: #{bert_regressor_forward.1} parent=11 // pred_region
        _
      $region52: #{bert_regressor_forward.1} parent=11 // pred_fallthru
        _
      // Predicated region
      $region53: #{bert_regressor_forward.1} parent=11 // pred_check
        %p485 = pneg %p309
      $region54: #{bert_regressor_forward.1} parent=11 // pred_check_branch
        %487 = sbr.rel (%p485) target = $region56
      $region55: #{bert_regressor_forward.1} parent=11 // pred_region
        _
      $region56: #{bert_regressor_forward.1} parent=11 // pred_fallthru
        _
      // Predicated region
      $region57: #{bert_regressor_forward.1} parent=11 // pred_check
        %p488 = pneg %p330
      $region58: #{bert_regressor_forward.1} parent=11 // pred_check_branch
        %490 = sbr.rel (%p488) target = $region60
      $region59: #{bert_regressor_forward.1} parent=11 // pred_region
        _
      $region60: #{bert_regressor_forward.1} parent=11 // pred_fallthru
        _
      // Predicated region
      $region61: #{bert_regressor_forward.1} parent=11 // pred_check
        %p491 = pneg %p351
      $region62: #{bert_regressor_forward.1} parent=11 // pred_check_branch
        %493 = sbr.rel (%p491) target = $region64
      $region63: #{bert_regressor_forward.1} parent=11 // pred_region
        _
      $region64: #{bert_regressor_forward.1} parent=11 // pred_fallthru
        _
      // Predicated region
      $region65: #{bert_regressor_forward.1} parent=11 // pred_check
        %p494 = pneg %p372
      $region66: #{bert_regressor_forward.1} parent=11 // pred_check_branch
        %496 = sbr.rel (%p494) target = $region68
      $region67: #{bert_regressor_forward.1} parent=11 // pred_region
        _
      $region68: #{bert_regressor_forward.1} parent=11 // pred_fallthru
        _
      // Predicated region
      $region69: #{bert_regressor_forward.1} parent=11 // pred_check
        %p497 = pneg %p393
      $region70: #{bert_regressor_forward.1} parent=11 // pred_check_branch
        %499 = sbr.rel (%p497) target = $region72
      $region71: #{bert_regressor_forward.1} parent=11 // pred_region
        _
      $region72: #{bert_regressor_forward.1} parent=11 // pred_fallthru
        _
      // Predicated region
      $region73: #{bert_regressor_forward.1} parent=11 // pred_check
        %p500 = pneg %p414
      $region74: #{bert_regressor_forward.1} parent=11 // pred_check_branch
        %502 = sbr.rel (%p500) target = $region76
      $region75: #{bert_regressor_forward.1} parent=11 // pred_region
        _
      $region76: #{bert_regressor_forward.1} parent=11 // pred_fallthru
        _
    $region12: #{bert_regressor_forward.1} parent=5 // pred_fallthru
      _
    %p503 = scmp.lt.s32.totalorder %s26, 2
    // Predicated region
    $region77: #{bert_regressor_forward.1} parent=5 // pred_check
      %p504 = pneg %p503
    $region78: #{bert_regressor_forward.1} parent=5 // pred_check_branch
      %506 = sbr.rel (%p504) target = $region80
    $region79: #{bert_regressor_forward.1} parent=5 // pred_region
      // Predicated region
      $region81: #{bert_regressor_forward.1} parent=79 // pred_check
        %p507 = pneg %p46
      $region82: #{bert_regressor_forward.1} parent=79 // pred_check_branch
        %509 = sbr.rel (%p507) target = $region84
      $region83: #{bert_regressor_forward.1} parent=79 // pred_region
        %p510 = scmp.lt.s32.totalorder %s26, 1
        %s511 = scalar_select %p510, %s26, 1
        %s512 = smul.addr %s511, 8
        %s513 = scalar_lea.vmem %s0, %s512
      $region84: #{bert_regressor_forward.1} parent=79 // pred_fallthru
        _
      // Predicated region
      $region85: #{bert_regressor_forward.1} parent=79 // pred_check
        %p514 = pneg %p72
      $region86: #{bert_regressor_forward.1} parent=79 // pred_check_branch
        %516 = sbr.rel (%p514) target = $region88
      $region87: #{bert_regressor_forward.1} parent=79 // pred_region
        %p517 = scmp.lt.s32.totalorder %s26, 1
        %s518 = scalar_select %p517, %s26, 1
        %s519 = scalar_lea.vmem %s1, %s518
      $region88: #{bert_regressor_forward.1} parent=79 // pred_fallthru
        _
    $region80: #{bert_regressor_forward.1} parent=5 // pred_fallthru
      _
    %p520 = scmp.le.s32.totalorder 1, %s26
    %p521 = scmp.lt.s32.totalorder %s26, 3
    %p522 = pnand %p520, %p521
    %p523 = pneg %p522
    // Predicated region
    $region89: #{bert_regressor_forward.1} parent=5 // pred_check
      _
    $region90: #{bert_regressor_forward.1} parent=5 // pred_check_branch
      %525 = sbr.rel (%p522) target = $region92
    $region91: #{bert_regressor_forward.1} parent=5 // pred_region
      %s526 = ssub.s32 %s26, 1
      %p527 = scmp.lt.s32.totalorder %s31, 1
      %s528 = scalar_select %p527, %s31, 1
      %s529 = smul.addr %s528, 8
      %s530 = scalar_lea.vmem %s0, %s529
      %p531 = pneg %p52
      %p532 = pneg %p49
      %p533 = scmp.lt.s32.totalorder %s31, 1
      %s534 = scalar_select %p533, %s31, 1
      %s535 = scalar_lea.vmem %s1, %s534
      %p536 = pneg %p78
      %p537 = pneg %p75
      %p538 = pneg %p99
      %p539 = pneg %p96
      %p540 = pneg %p120
      %p541 = pneg %p117
      %p542 = pneg %p141
      %p543 = pneg %p138
      %p544 = pneg %p162
      %p545 = pneg %p159
      %p546 = pneg %p183
      %p547 = pneg %p180
      %p548 = pneg %p204
      %p549 = pneg %p201
      %p550 = pneg %p225
      %p551 = pneg %p222
      %p552 = pneg %p246
      %p553 = pneg %p243
      %p554 = pneg %p267
      %p555 = pneg %p264
      %p556 = pneg %p288
      %p557 = pneg %p285
      %p558 = pneg %p309
      %p559 = pneg %p306
      %p560 = pneg %p330
      %p561 = pneg %p327
      %p562 = pneg %p351
      %p563 = pneg %p348
      %p564 = pneg %p372
      %p565 = pneg %p369
      %p566 = pneg %p393
      %p567 = pneg %p390
      %p568 = pneg %p414
      %p569 = pneg %p411
      %p570 = pneg %p440
      %p571 = pneg %p437
      %p572 = scmp.lt.s32.totalorder %s31, 1
      %s573 = scalar_select %p572, %s31, 1
      %s574 = scalar_lea.vmem %s18, %s573
      %p575 = scmp.lt.s32.totalorder %s31, 1
      %s576 = scalar_select %p575, %s31, 1
      %s577 = smul.addr %s576, 8
      %s578 = scalar_lea.vmem %s0, %s577
      %p579 = scmp.lt.s32.totalorder %s31, 1
      %s580 = scalar_select %p579, %s31, 1
      %s581 = scalar_lea.vmem %s1, %s580
      %p582 = scmp.lt.s32.totalorder %s31, 1
      %s583 = scalar_select %p582, %s31, 1
      %s584 = scalar_lea.vmem %s18, %s583
      %v586 = vld [vmem:[%s578] sm:$0xff]
      %v587 = vld [vmem:[%s2] sm:$0x1]
      %v588 = vld [vmem:[%s3] sm:$0x1]
      %vm589 = vcmask 261120
      %v590 = vsel %vm589, %v586, 0.0
      %591 = vadd.xlane.f32.xlu0 %v590
      %v592 = vpop.xlane.xlu0 %591
      %v593 = vrcp.pop 32.0
      %v594 = vmul.f32 %v592, %v593
      %v595 = vsub.f32 %v586, %v594
      %v596 = vmul.f32 %v595, %v595
      %v597 = vsel %vm589, %v596, 0.0
      %598 = vadd.xlane.f32.xlu0 %v597
      %v599 = vpop.xlane.xlu0 %598
      %v600 = vmul.f32 %v599, %v593
      %v601 = vadd.f32 %v600, 1e-12
      %v602 = vrsqrt.pop %v601
      %v603 = vmul.f32 %v595, %v602
      %v605 = vlaneseq
      %v606 = vshrl.u32 %v605, 7
      %v607 = vsub.s32 0, %v606
      %v608 = vrot.slane %v587, %v607
      %v610 = vmul.f32 %v603, %v608
      %v612 = vlaneseq
      %v613 = vshrl.u32 %v612, 7
      %v614 = vsub.s32 0, %v613
      %v615 = vrot.slane %v588, %v614
      %v617 = vadd.f32 %v610, %v615
      %v618 = vld [vmem:[%s581] sm:$0x1]
      %v619 = vsub.f32 1.0, %v618
      %v620 = vmul.f32 %v619, -1e+09
      %v621 = vld [vmem:[%s4] sm:$0xf]
      %v622 = vld [vmem:[%s4 + $0x4] sm:$0xf]
      %v623 = vld [vmem:[%s4 + $0x8] sm:$0xf]
      %v624 = vld [vmem:[%s4 + $0xc] sm:$0xf]
      %v625 = vpack.c.bf16 %v617, %v617
      %v626 = vld [vmem:[%s5] sm:$0x1]
      %v628 = vlaneseq
      %v629 = vshrl.u32 %v628, 7
      %v630 = vsub.s32 0, %v629
      %v631 = vrot.slane %v626, %v630
      %v637 = vunpack.c.l.b16 %v621
      %v638 = vunpack.c.l.b16 %v622
      %v639 = vunpack.c.l.b16 %v623
      %v640 = vunpack.c.l.b16 %v624
      %v641 = vpack.c.b16 %v638, %v637
      %v642 = vpack.c.b16 %v640, %v639
      %v646 = vsel %vm589, %v625, 0
      %648 = vmatprep.subr.bf16.mxu0 0
      %649 = vmatpush1.bf16.msra.mxu0 0
      %650 = vmatprep.subr.bf16.mxu0 0
      %651 = vmatpush1.bf16.msra.mxu0 0
      %652 = vmatprep.subr.bf16.mxu0 0
      %653 = vmatpush1.bf16.msra.mxu0 0
      %654 = vmatprep.subr.bf16.mxu0 0
      %655 = vmatpush1.bf16.msra.mxu0 0
      %656 = vmatprep.subr.bf16.mxu0 0
      %657 = vmatpush1.bf16.msra.mxu0 0
      %658 = vmatprep.subr.bf16.mxu0 0
      %659 = vmatpush1.bf16.msra.mxu0 0
      %660 = vmatprep.subr.bf16.mxu0 0
      %661 = vmatpush1.bf16.msra.mxu0 %v642
      %662 = vmatprep.subr.bf16.mxu0 0
      %663 = vmatpush1.bf16.msra.mxu0 %v641
      %664 = vmatprep.subr.bf16.mxu0 0
      %665 = vmatpush2.bf16.msra.mxu0 0
      %666 = vmatprep.subr.bf16.mxu0 0
      %667 = vmatpush2.bf16.msra.mxu0 0
      %668 = vmatprep.subr.bf16.mxu0 0
      %669 = vmatpush2.bf16.msra.mxu0 0
      %670 = vmatprep.subr.bf16.mxu0 0
      %671 = vmatpush2.bf16.msra.mxu0 0
      %672 = vmatprep.subr.bf16.mxu0 0
      %673 = vmatpush2.bf16.msra.mxu0 0
      %674 = vmatprep.subr.bf16.mxu0 0
      %675 = vmatpush2.bf16.msra.mxu0 0
      %676 = vmatprep.subr.bf16.mxu0 0
      %677 = vmatpush2.bf16.msra.mxu0 0
      %678 = vmatprep.subr.bf16.mxu0 0
      %679 = vmatpush2.bf16.msra.mxu0 0
      %680 = vmatprep.mubr.bf16.mxu0 0
      %681 = vmatmul.mubr.bf16.gmra.mxu0 %v646
      %v682 = vpop.f32.mrf.mxu0
      %v683 = vadd.f32 %v631, %v682
      %v684 = vpop.f32.mrf.mxu0
      %v685 = vpop.f32.mrf.mxu0
      %v686 = vpop.f32.mrf.mxu0
      %687 = vdwg.mxu0
      %v688 = vmul.f32 %v683, 0.35355338
      %v689 = vpack.c.bf16 %v688, %v688
      %v690 = vpack.c.bf16 %v683, %v683
      %v692 = vlaneseq
      %v693 = vshrl.u32 %v692, 7
      %v694 = vsub.s32 0, %v693
      %v695 = vrot.slane %v620, %v694
      %698 = vrot.lane.b32.xlu0 %v690, 96
      %v699 = vpop.permute.xlu0 %698
      %vm700 = vcmask 64512
      %v702 = vsel %vm700, %v689, 0
      %v705 = vsel %vm700, %v699, 0
      %707 = vmatprep.subr.bf16.mxu0 0
      %708 = vmatpush1.bf16.xpose.msra.mxu0 0
      %709 = vmatprep.subr.bf16.mxu0 0
      %710 = vmatpush1.bf16.xpose.msra.mxu0 0
      %711 = vmatprep.subr.bf16.mxu0 0
      %712 = vmatpush1.bf16.xpose.msra.mxu0 0
      %713 = vmatprep.subr.bf16.mxu0 0
      %714 = vmatpush1.bf16.xpose.msra.mxu0 0
      %715 = vmatprep.subr.bf16.mxu0 0
      %716 = vmatpush1.bf16.xpose.msra.mxu0 0
      %717 = vmatprep.subr.bf16.mxu0 0
      %718 = vmatpush1.bf16.xpose.msra.mxu0 0
      %719 = vmatprep.subr.bf16.mxu0 0
      %720 = vmatpush1.bf16.xpose.msra.mxu0 0
      %721 = vmatprep.subr.bf16.mxu0 0
      %722 = vmatpush1.bf16.xpose.msra.mxu0 %v705
      %723 = vmatprep.subr.bf16.mxu0 0
      %724 = vmatpush2.bf16.xpose.msra.mxu0 0
      %725 = vmatprep.subr.bf16.mxu0 0
      %726 = vmatpush2.bf16.xpose.msra.mxu0 0
      %727 = vmatprep.subr.bf16.mxu0 0
      %728 = vmatpush2.bf16.xpose.msra.mxu0 0
      %729 = vmatprep.subr.bf16.mxu0 0
      %730 = vmatpush2.bf16.xpose.msra.mxu0 0
      %731 = vmatprep.subr.bf16.mxu0 0
      %732 = vmatpush2.bf16.xpose.msra.mxu0 0
      %733 = vmatprep.subr.bf16.mxu0 0
      %734 = vmatpush2.bf16.xpose.msra.mxu0 0
      %735 = vmatprep.subr.bf16.mxu0 0
      %736 = vmatpush2.bf16.xpose.msra.mxu0 0
      %737 = vmatprep.subr.bf16.mxu0 0
      %738 = vmatpush2.bf16.xpose.msra.mxu0 0
      %739 = vmatprep.mubr.bf16.mxu0 0
      %740 = vmatmul.mubr.bf16.gmra.mxu0 %v702
      %v741 = vpop.f32.mrf.mxu0
      %v742 = vadd.f32 %v695, %v741
      %v743 = vpop.f32.mrf.mxu0
      %v744 = vpop.f32.mrf.mxu0
      %v745 = vpop.f32.mrf.mxu0
      %746 = vdwg.mxu0
      %v747 = vsel %vm700, %v742, -inf
      %748 = vmax.xlane.f32.xlu0 %v747
      %v749 = vpop.xlane.xlu0 %748
      %v750 = vsub.f32 %v742, %v749
      %v751 = vmul.f32 %v750, 1.442695
      %v752 = vpow.pop %v751
      %v753 = vsel %vm700, %v752, 0.0
      %754 = vadd.xlane.f32.xlu0 %v753
      %v755 = vpop.xlane.xlu0 %754
      %v756 = vrcp.pop %v755
      %v757 = vmul.f32 %v752, %v756
      %v758 = vpack.c.bf16 %v757, %v757
      %759 = vrot.lane.b32.xlu0 %v690, 64
      %v760 = vpop.permute.xlu0 %759
      %v762 = vsel %vm700, %v758, 0
      %vm764 = vcmask 1043456
      %v766 = vsel %vm764, %v760, 0
      %768 = vmatprep.subr.bf16.mxu0 0
      %769 = vmatpush1.bf16.msra.mxu0 0
      %770 = vmatprep.subr.bf16.mxu0 0
      %771 = vmatpush1.bf16.msra.mxu0 0
      %772 = vmatprep.subr.bf16.mxu0 0
      %773 = vmatpush1.bf16.msra.mxu0 0
      %774 = vmatprep.subr.bf16.mxu0 0
      %775 = vmatpush1.bf16.msra.mxu0 0
      %776 = vmatprep.subr.bf16.mxu0 0
      %777 = vmatpush1.bf16.msra.mxu0 0
      %778 = vmatprep.subr.bf16.mxu0 0
      %779 = vmatpush1.bf16.msra.mxu0 0
      %780 = vmatprep.subr.bf16.mxu0 0
      %781 = vmatpush1.bf16.msra.mxu0 0
      %782 = vmatprep.subr.bf16.mxu0 0
      %783 = vmatpush1.bf16.msra.mxu0 %v766
      %784 = vmatprep.subr.bf16.mxu0 0
      %785 = vmatpush2.bf16.msra.mxu0 0
      %786 = vmatprep.subr.bf16.mxu0 0
      %787 = vmatpush2.bf16.msra.mxu0 0
      %788 = vmatprep.subr.bf16.mxu0 0
      %789 = vmatpush2.bf16.msra.mxu0 0
      %790 = vmatprep.subr.bf16.mxu0 0
      %791 = vmatpush2.bf16.msra.mxu0 0
      %792 = vmatprep.subr.bf16.mxu0 0
      %793 = vmatpush2.bf16.msra.mxu0 0
      %794 = vmatprep.subr.bf16.mxu0 0
      %795 = vmatpush2.bf16.msra.mxu0 0
      %796 = vmatprep.subr.bf16.mxu0 0
      %797 = vmatpush2.bf16.msra.mxu0 0
      %798 = vmatprep.subr.bf16.mxu0 0
      %799 = vmatpush2.bf16.msra.mxu0 0
      %800 = vmatprep.mubr.bf16.mxu0 0
      %801 = vmatmul.mubr.bf16.gmra.mxu0 %v762
      %v802 = vpop.f32.mrf.mxu0
      %v803 = vadd.f32 0.0, %v802
      %v804 = vpop.f32.mrf.mxu0
      %v805 = vpop.f32.mrf.mxu0
      %v806 = vpop.f32.mrf.mxu0
      %807 = vdwg.mxu0
      %809 = vrot.lane.b32.xlu0 %v689, 120
      %v810 = vpop.permute.xlu0 %809
      %811 = vrot.lane.b32.xlu0 %v690, 88
      %v812 = vpop.permute.xlu0 %811
      %v814 = vsel %vm700, %v810, 0
      %v817 = vsel %vm700, %v812, 0
      %819 = vmatprep.subr.bf16.mxu0 0
      %820 = vmatpush1.bf16.xpose.msra.mxu0 0
      %821 = vmatprep.subr.bf16.mxu0 0
      %822 = vmatpush1.bf16.xpose.msra.mxu0 0
      %823 = vmatprep.subr.bf16.mxu0 0
      %824 = vmatpush1.bf16.xpose.msra.mxu0 0
      %825 = vmatprep.subr.bf16.mxu0 0
      %826 = vmatpush1.bf16.xpose.msra.mxu0 0
      %827 = vmatprep.subr.bf16.mxu0 0
      %828 = vmatpush1.bf16.xpose.msra.mxu0 0
      %829 = vmatprep.subr.bf16.mxu0 0
      %830 = vmatpush1.bf16.xpose.msra.mxu0 0
      %831 = vmatprep.subr.bf16.mxu0 0
      %832 = vmatpush1.bf16.xpose.msra.mxu0 0
      %833 = vmatprep.subr.bf16.mxu0 0
      %834 = vmatpush1.bf16.xpose.msra.mxu0 %v817
      %835 = vmatprep.subr.bf16.mxu0 0
      %836 = vmatpush2.bf16.xpose.msra.mxu0 0
      %837 = vmatprep.subr.bf16.mxu0 0
      %838 = vmatpush2.bf16.xpose.msra.mxu0 0
      %839 = vmatprep.subr.bf16.mxu0 0
      %840 = vmatpush2.bf16.xpose.msra.mxu0 0
      %841 = vmatprep.subr.bf16.mxu0 0
      %842 = vmatpush2.bf16.xpose.msra.mxu0 0
      %843 = vmatprep.subr.bf16.mxu0 0
      %844 = vmatpush2.bf16.xpose.msra.mxu0 0
      %845 = vmatprep.subr.bf16.mxu0 0
      %846 = vmatpush2.bf16.xpose.msra.mxu0 0
      %847 = vmatprep.subr.bf16.mxu0 0
      %848 = vmatpush2.bf16.xpose.msra.mxu0 0
      %849 = vmatprep.subr.bf16.mxu0 0
      %850 = vmatpush2.bf16.xpose.msra.mxu0 0
      %851 = vmatprep.mubr.bf16.mxu0 0
      %852 = vmatmul.mubr.bf16.gmra.mxu0 %v814
      %v853 = vpop.f32.mrf.mxu0
      %v854 = vadd.f32 %v695, %v853
      %v855 = vpop.f32.mrf.mxu0
      %v856 = vpop.f32.mrf.mxu0
      %v857 = vpop.f32.mrf.mxu0
      %858 = vdwg.mxu0
      %v859 = vsel %vm700, %v854, -inf
      %860 = vmax.xlane.f32.xlu0 %v859
      %v861 = vpop.xlane.xlu0 %860
      %v862 = vsub.f32 %v854, %v861
      %v863 = vmul.f32 %v862, 1.442695
      %v864 = vpow.pop %v863
      %v865 = vsel %vm700, %v864, 0.0
      %866 = vadd.xlane.f32.xlu0 %v865
      %v867 = vpop.xlane.xlu0 %866
      %v868 = vrcp.pop %v867
      %v869 = vmul.f32 %v864, %v868
      %v870 = vpack.c.bf16 %v869, %v869
      %871 = vrot.lane.b32.xlu0 %v690, 56
      %v872 = vpop.permute.xlu0 %871
      %v874 = vsel %vm700, %v870, 0
      %v877 = vsel %vm764, %v872, 0
      %879 = vmatprep.subr.bf16.mxu0 0
      %880 = vmatpush1.bf16.msra.mxu0 0
      %881 = vmatprep.subr.bf16.mxu0 0
      %882 = vmatpush1.bf16.msra.mxu0 0
      %883 = vmatprep.subr.bf16.mxu0 0
      %884 = vmatpush1.bf16.msra.mxu0 0
      %885 = vmatprep.subr.bf16.mxu0 0
      %886 = vmatpush1.bf16.msra.mxu0 0
      %887 = vmatprep.subr.bf16.mxu0 0
      %888 = vmatpush1.bf16.msra.mxu0 0
      %889 = vmatprep.subr.bf16.mxu0 0
      %890 = vmatpush1.bf16.msra.mxu0 0
      %891 = vmatprep.subr.bf16.mxu0 0
      %892 = vmatpush1.bf16.msra.mxu0 0
      %893 = vmatprep.subr.bf16.mxu0 0
      %894 = vmatpush1.bf16.msra.mxu0 %v877
      %895 = vmatprep.subr.bf16.mxu0 0
      %896 = vmatpush2.bf16.msra.mxu0 0
      %897 = vmatprep.subr.bf16.mxu0 0
      %898 = vmatpush2.bf16.msra.mxu0 0
      %899 = vmatprep.subr.bf16.mxu0 0
      %900 = vmatpush2.bf16.msra.mxu0 0
      %901 = vmatprep.subr.bf16.mxu0 0
      %902 = vmatpush2.bf16.msra.mxu0 0
      %903 = vmatprep.subr.bf16.mxu0 0
      %904 = vmatpush2.bf16.msra.mxu0 0
      %905 = vmatprep.subr.bf16.mxu0 0
      %906 = vmatpush2.bf16.msra.mxu0 0
      %907 = vmatprep.subr.bf16.mxu0 0
      %908 = vmatpush2.bf16.msra.mxu0 0
      %909 = vmatprep.subr.bf16.mxu0 0
      %910 = vmatpush2.bf16.msra.mxu0 0
      %911 = vmatprep.mubr.bf16.mxu0 0
      %912 = vmatmul.mubr.bf16.gmra.mxu0 %v874
      %v913 = vpop.f32.mrf.mxu0
      %v914 = vadd.f32 0.0, %v913
      %v915 = vpop.f32.mrf.mxu0
      %v916 = vpop.f32.mrf.mxu0
      %v917 = vpop.f32.mrf.mxu0
      %918 = vdwg.mxu0
      %919 = vrot.lane.b32.xlu0 %v689, 112
      %v920 = vpop.permute.xlu0 %919
      %921 = vrot.lane.b32.xlu0 %v690, 80
      %v922 = vpop.permute.xlu0 %921
      %v924 = vsel %vm700, %v920, 0
      %v927 = vsel %vm700, %v922, 0
      %929 = vmatprep.subr.bf16.mxu0 0
      %930 = vmatpush1.bf16.xpose.msra.mxu0 0
      %931 = vmatprep.subr.bf16.mxu0 0
      %932 = vmatpush1.bf16.xpose.msra.mxu0 0
      %933 = vmatprep.subr.bf16.mxu0 0
      %934 = vmatpush1.bf16.xpose.msra.mxu0 0
      %935 = vmatprep.subr.bf16.mxu0 0
      %936 = vmatpush1.bf16.xpose.msra.mxu0 0
      %937 = vmatprep.subr.bf16.mxu0 0
      %938 = vmatpush1.bf16.xpose.msra.mxu0 0
      %939 = vmatprep.subr.bf16.mxu0 0
      %940 = vmatpush1.bf16.xpose.msra.mxu0 0
      %941 = vmatprep.subr.bf16.mxu0 0
      %942 = vmatpush1.bf16.xpose.msra.mxu0 0
      %943 = vmatprep.subr.bf16.mxu0 0
      %944 = vmatpush1.bf16.xpose.msra.mxu0 %v927
      %945 = vmatprep.subr.bf16.mxu0 0
      %946 = vmatpush2.bf16.xpose.msra.mxu0 0
      %947 = vmatprep.subr.bf16.mxu0 0
      %948 = vmatpush2.bf16.xpose.msra.mxu0 0
      %949 = vmatprep.subr.bf16.mxu0 0
      %950 = vmatpush2.bf16.xpose.msra.mxu0 0
      %951 = vmatprep.subr.bf16.mxu0 0
      %952 = vmatpush2.bf16.xpose.msra.mxu0 0
      %953 = vmatprep.subr.bf16.mxu0 0
      %954 = vmatpush2.bf16.xpose.msra.mxu0 0
      %955 = vmatprep.subr.bf16.mxu0 0
      %956 = vmatpush2.bf16.xpose.msra.mxu0 0
      %957 = vmatprep.subr.bf16.mxu0 0
      %958 = vmatpush2.bf16.xpose.msra.mxu0 0
      %959 = vmatprep.subr.bf16.mxu0 0
      %960 = vmatpush2.bf16.xpose.msra.mxu0 0
      %961 = vmatprep.mubr.bf16.mxu0 0
      %962 = vmatmul.mubr.bf16.gmra.mxu0 %v924
      %v963 = vpop.f32.mrf.mxu0
      %v964 = vadd.f32 %v695, %v963
      %v965 = vpop.f32.mrf.mxu0
      %v966 = vpop.f32.mrf.mxu0
      %v967 = vpop.f32.mrf.mxu0
      %968 = vdwg.mxu0
      %v969 = vsel %vm700, %v964, -inf
      %970 = vmax.xlane.f32.xlu0 %v969
      %v971 = vpop.xlane.xlu0 %970
      %v972 = vsub.f32 %v964, %v971
      %v973 = vmul.f32 %v972, 1.442695
      %v974 = vpow.pop %v973
      %v975 = vsel %vm700, %v974, 0.0
      %976 = vadd.xlane.f32.xlu0 %v975
      %v977 = vpop.xlane.xlu0 %976
      %v978 = vrcp.pop %v977
      %v979 = vmul.f32 %v974, %v978
      %v980 = vpack.c.bf16 %v979, %v979
      %981 = vrot.lane.b32.xlu0 %v690, 48
      %v982 = vpop.permute.xlu0 %981
      %v984 = vsel %vm700, %v980, 0
      %v987 = vsel %vm764, %v982, 0
      %989 = vmatprep.subr.bf16.mxu0 0
      %990 = vmatpush1.bf16.msra.mxu0 0
      %991 = vmatprep.subr.bf16.mxu0 0
      %992 = vmatpush1.bf16.msra.mxu0 0
      %993 = vmatprep.subr.bf16.mxu0 0
      %994 = vmatpush1.bf16.msra.mxu0 0
      %995 = vmatprep.subr.bf16.mxu0 0
      %996 = vmatpush1.bf16.msra.mxu0 0
      %997 = vmatprep.subr.bf16.mxu0 0
      %998 = vmatpush1.bf16.msra.mxu0 0
      %999 = vmatprep.subr.bf16.mxu0 0
      %1000 = vmatpush1.bf16.msra.mxu0 0
      %1001 = vmatprep.subr.bf16.mxu0 0
      %1002 = vmatpush1.bf16.msra.mxu0 0
      %1003 = vmatprep.subr.bf16.mxu0 0
      %1004 = vmatpush1.bf16.msra.mxu0 %v987
      %1005 = vmatprep.subr.bf16.mxu0 0
      %1006 = vmatpush2.bf16.msra.mxu0 0
      %1007 = vmatprep.subr.bf16.mxu0 0
      %1008 = vmatpush2.bf16.msra.mxu0 0
      %1009 = vmatprep.subr.bf16.mxu0 0
      %1010 = vmatpush2.bf16.msra.mxu0 0
      %1011 = vmatprep.subr.bf16.mxu0 0
      %1012 = vmatpush2.bf16.msra.mxu0 0
      %1013 = vmatprep.subr.bf16.mxu0 0
      %1014 = vmatpush2.bf16.msra.mxu0 0
      %1015 = vmatprep.subr.bf16.mxu0 0
      %1016 = vmatpush2.bf16.msra.mxu0 0
      %1017 = vmatprep.subr.bf16.mxu0 0
      %1018 = vmatpush2.bf16.msra.mxu0 0
      %1019 = vmatprep.subr.bf16.mxu0 0
      %1020 = vmatpush2.bf16.msra.mxu0 0
      %1021 = vmatprep.mubr.bf16.mxu0 0
      %1022 = vmatmul.mubr.bf16.gmra.mxu0 %v984
      %v1023 = vpop.f32.mrf.mxu0
      %v1024 = vadd.f32 0.0, %v1023
      %v1025 = vpop.f32.mrf.mxu0
      %v1026 = vpop.f32.mrf.mxu0
      %v1027 = vpop.f32.mrf.mxu0
      %1028 = vdwg.mxu0
      %1029 = vrot.lane.b32.xlu0 %v689, 104
      %v1030 = vpop.permute.xlu0 %1029
      %1031 = vrot.lane.b32.xlu0 %v690, 72
      %v1032 = vpop.permute.xlu0 %1031
      %v1034 = vsel %vm700, %v1030, 0
      %v1037 = vsel %vm700, %v1032, 0
      %1039 = vmatprep.subr.bf16.mxu0 0
      %1040 = vmatpush1.bf16.xpose.msra.mxu0 0
      %1041 = vmatprep.subr.bf16.mxu0 0
      %1042 = vmatpush1.bf16.xpose.msra.mxu0 0
      %1043 = vmatprep.subr.bf16.mxu0 0
      %1044 = vmatpush1.bf16.xpose.msra.mxu0 0
      %1045 = vmatprep.subr.bf16.mxu0 0
      %1046 = vmatpush1.bf16.xpose.msra.mxu0 0
      %1047 = vmatprep.subr.bf16.mxu0 0
      %1048 = vmatpush1.bf16.xpose.msra.mxu0 0
      %1049 = vmatprep.subr.bf16.mxu0 0
      %1050 = vmatpush1.bf16.xpose.msra.mxu0 0
      %1051 = vmatprep.subr.bf16.mxu0 0
      %1052 = vmatpush1.bf16.xpose.msra.mxu0 0
      %1053 = vmatprep.subr.bf16.mxu0 0
      %1054 = vmatpush1.bf16.xpose.msra.mxu0 %v1037
      %1055 = vmatprep.subr.bf16.mxu0 0
      %1056 = vmatpush2.bf16.xpose.msra.mxu0 0
      %1057 = vmatprep.subr.bf16.mxu0 0
      %1058 = vmatpush2.bf16.xpose.msra.mxu0 0
      %1059 = vmatprep.subr.bf16.mxu0 0
      %1060 = vmatpush2.bf16.xpose.msra.mxu0 0
      %1061 = vmatprep.subr.bf16.mxu0 0
      %1062 = vmatpush2.bf16.xpose.msra.mxu0 0
      %1063 = vmatprep.subr.bf16.mxu0 0
      %1064 = vmatpush2.bf16.xpose.msra.mxu0 0
      %1065 = vmatprep.subr.bf16.mxu0 0
      %1066 = vmatpush2.bf16.xpose.msra.mxu0 0
      %1067 = vmatprep.subr.bf16.mxu0 0
      %1068 = vmatpush2.bf16.xpose.msra.mxu0 0
      %1069 = vmatprep.subr.bf16.mxu0 0
      %1070 = vmatpush2.bf16.xpose.msra.mxu0 0
      %1071 = vmatprep.mubr.bf16.mxu0 0
      %1072 = vmatmul.mubr.bf16.gmra.mxu0 %v1034
      %v1073 = vpop.f32.mrf.mxu0
      %v1074 = vadd.f32 %v695, %v1073
      %v1075 = vpop.f32.mrf.mxu0
      %v1076 = vpop.f32.mrf.mxu0
      %v1077 = vpop.f32.mrf.mxu0
      %1078 = vdwg.mxu0
      %v1079 = vsel %vm700, %v1074, -inf
      %1080 = vmax.xlane.f32.xlu0 %v1079
      %v1081 = vpop.xlane.xlu0 %1080
      %v1082 = vsub.f32 %v1074, %v1081
      %v1083 = vmul.f32 %v1082, 1.442695
      %v1084 = vpow.pop %v1083
      %v1085 = vsel %vm700, %v1084, 0.0
      %1086 = vadd.xlane.f32.xlu0 %v1085
      %v1087 = vpop.xlane.xlu0 %1086
      %v1088 = vrcp.pop %v1087
      %v1089 = vmul.f32 %v1084, %v1088
      %v1090 = vpack.c.bf16 %v1089, %v1089
      %1091 = vrot.lane.b32.xlu0 %v690, 40
      %v1092 = vpop.permute.xlu0 %1091
      %v1094 = vsel %vm700, %v1090, 0
      %v1097 = vsel %vm764, %v1092, 0
      %1099 = vmatprep.subr.bf16.mxu0 0
      %1100 = vmatpush1.bf16.msra.mxu0 0
      %1101 = vmatprep.subr.bf16.mxu0 0
      %1102 = vmatpush1.bf16.msra.mxu0 0
      %1103 = vmatprep.subr.bf16.mxu0 0
      %1104 = vmatpush1.bf16.msra.mxu0 0
      %1105 = vmatprep.subr.bf16.mxu0 0
      %1106 = vmatpush1.bf16.msra.mxu0 0
      %1107 = vmatprep.subr.bf16.mxu0 0
      %1108 = vmatpush1.bf16.msra.mxu0 0
      %1109 = vmatprep.subr.bf16.mxu0 0
      %1110 = vmatpush1.bf16.msra.mxu0 0
      %1111 = vmatprep.subr.bf16.mxu0 0
      %1112 = vmatpush1.bf16.msra.mxu0 0
      %1113 = vmatprep.subr.bf16.mxu0 0
      %1114 = vmatpush1.bf16.msra.mxu0 %v1097
      %1115 = vmatprep.subr.bf16.mxu0 0
      %1116 = vmatpush2.bf16.msra.mxu0 0
      %1117 = vmatprep.subr.bf16.mxu0 0
      %1118 = vmatpush2.bf16.msra.mxu0 0
      %1119 = vmatprep.subr.bf16.mxu0 0
      %1120 = vmatpush2.bf16.msra.mxu0 0
      %1121 = vmatprep.subr.bf16.mxu0 0
      %1122 = vmatpush2.bf16.msra.mxu0 0
      %1123 = vmatprep.subr.bf16.mxu0 0
      %1124 = vmatpush2.bf16.msra.mxu0 0
      %1125 = vmatprep.subr.bf16.mxu0 0
      %1126 = vmatpush2.bf16.msra.mxu0 0
      %1127 = vmatprep.subr.bf16.mxu0 0
      %1128 = vmatpush2.bf16.msra.mxu0 0
      %1129 = vmatprep.subr.bf16.mxu0 0
      %1130 = vmatpush2.bf16.msra.mxu0 0
      %1131 = vmatprep.mubr.bf16.mxu0 0
      %1132 = vmatmul.mubr.bf16.gmra.mxu0 %v1094
      %v1133 = vpop.f32.mrf.mxu0
      %v1134 = vadd.f32 0.0, %v1133
      %v1135 = vpop.f32.mrf.mxu0
      %v1136 = vpop.f32.mrf.mxu0
      %v1137 = vpop.f32.mrf.mxu0
      %1138 = vdwg.mxu0
      %1140 = vrot.lane.b32.xlu0 %v914, 8
      %v1141 = vpop.permute.xlu0 %1140
      %1144 = vrot.lane.b32.xlu0 %v1024, 16
      %v1145 = vpop.permute.xlu0 %1144
      %1148 = vrot.lane.b32.xlu0 %v1134, 24
      %v1149 = vpop.permute.xlu0 %1148
      %v1151 = vsel %vm700, %v803, %v1141
      %vm1152 = vcmask 130048
      %v1153 = vsel %vm1152, %v1151, %v1145
      %vm1154 = vcmask 195584
      %v1155 = vsel %vm1154, %v1153, %v1149
      %v1156 = vld [vmem:[%s6] sm:$0xf]
      %v1157 = vld [vmem:[%s6 + $0x4] sm:$0xf]
      %v1158 = vld [vmem:[%s6 + $0x8] sm:$0xf]
      %v1159 = vld [vmem:[%s6 + $0xc] sm:$0xf]
      %v1160 = vpack.c.bf16 %v1155, %v1155
      %v1161 = vld [vmem:[%s7] sm:$0x1]
      %v1163 = vlaneseq
      %v1164 = vshrl.u32 %v1163, 7
      %v1165 = vsub.s32 0, %v1164
      %v1166 = vrot.slane %v1161, %v1165
      %v1172 = vunpack.c.l.b16 %v1156
      %v1173 = vunpack.c.l.b16 %v1157
      %v1174 = vunpack.c.l.b16 %v1158
      %v1175 = vunpack.c.l.b16 %v1159
      %v1176 = vpack.c.b16 %v1173, %v1172
      %v1177 = vpack.c.b16 %v1175, %v1174
      %v1181 = vsel %vm589, %v1160, 0
      %1183 = vmatprep.subr.bf16.mxu0 0
      %1184 = vmatpush1.bf16.msra.mxu0 0
      %1185 = vmatprep.subr.bf16.mxu0 0
      %1186 = vmatpush1.bf16.msra.mxu0 0
      %1187 = vmatprep.subr.bf16.mxu0 0
      %1188 = vmatpush1.bf16.msra.mxu0 0
      %1189 = vmatprep.subr.bf16.mxu0 0
      %1190 = vmatpush1.bf16.msra.mxu0 0
      %1191 = vmatprep.subr.bf16.mxu0 0
      %1192 = vmatpush1.bf16.msra.mxu0 0
      %1193 = vmatprep.subr.bf16.mxu0 0
      %1194 = vmatpush1.bf16.msra.mxu0 0
      %1195 = vmatprep.subr.bf16.mxu0 0
      %1196 = vmatpush1.bf16.msra.mxu0 %v1177
      %1197 = vmatprep.subr.bf16.mxu0 0
      %1198 = vmatpush1.bf16.msra.mxu0 %v1176
      %1199 = vmatprep.subr.bf16.mxu0 0
      %1200 = vmatpush2.bf16.msra.mxu0 0
      %1201 = vmatprep.subr.bf16.mxu0 0
      %1202 = vmatpush2.bf16.msra.mxu0 0
      %1203 = vmatprep.subr.bf16.mxu0 0
      %1204 = vmatpush2.bf16.msra.mxu0 0
      %1205 = vmatprep.subr.bf16.mxu0 0
      %1206 = vmatpush2.bf16.msra.mxu0 0
      %1207 = vmatprep.subr.bf16.mxu0 0
      %1208 = vmatpush2.bf16.msra.mxu0 0
      %1209 = vmatprep.subr.bf16.mxu0 0
      %1210 = vmatpush2.bf16.msra.mxu0 0
      %1211 = vmatprep.subr.bf16.mxu0 0
      %1212 = vmatpush2.bf16.msra.mxu0 0
      %1213 = vmatprep.subr.bf16.mxu0 0
      %1214 = vmatpush2.bf16.msra.mxu0 0
      %1215 = vmatprep.mubr.bf16.mxu0 0
      %1216 = vmatmul.mubr.bf16.gmra.mxu0 %v1181
      %v1217 = vpop.f32.mrf.mxu0
      %v1218 = vadd.f32 %v1166, %v1217
      %v1219 = vpop.f32.mrf.mxu0
      %v1220 = vpop.f32.mrf.mxu0
      %v1221 = vpop.f32.mrf.mxu0
      %1222 = vdwg.mxu0
      %v1223 = vadd.f32 %v617, %v1218
      %v1224 = vld [vmem:[%s8] sm:$0x1]
      %v1225 = vld [vmem:[%s9] sm:$0x1]
      %v1226 = vsel %vm589, %v1223, 0.0
      %1227 = vadd.xlane.f32.xlu0 %v1226
      %v1228 = vpop.xlane.xlu0 %1227
      %v1229 = vmul.f32 %v1228, %v593
      %v1230 = vsub.f32 %v1223, %v1229
      %v1231 = vmul.f32 %v1230, %v1230
      %v1232 = vsel %vm589, %v1231, 0.0
      %1233 = vadd.xlane.f32.xlu0 %v1232
      %v1234 = vpop.xlane.xlu0 %1233
      %v1235 = vmul.f32 %v1234, %v593
      %v1236 = vadd.f32 %v1235, 1e-12
      %v1237 = vrsqrt.pop %v1236
      %v1238 = vmul.f32 %v1230, %v1237
      %v1240 = vlaneseq
      %v1241 = vshrl.u32 %v1240, 7
      %v1242 = vsub.s32 0, %v1241
      %v1243 = vrot.slane %v1224, %v1242
      %v1245 = vmul.f32 %v1238, %v1243
      %v1247 = vlaneseq
      %v1248 = vshrl.u32 %v1247, 7
      %v1249 = vsub.s32 0, %v1248
      %v1250 = vrot.slane %v1225, %v1249
      %v1252 = vadd.f32 %v1245, %v1250
      %v1253 = vld [vmem:[%s10] sm:$0xf]
      %v1254 = vld [vmem:[%s10 + $0x4] sm:$0xf]
      %v1255 = vld [vmem:[%s10 + $0x8] sm:$0xf]
      %v1256 = vld [vmem:[%s10 + $0xc] sm:$0xf]
      %v1257 = vpack.c.bf16 %v1252, %v1252
      %v1258 = vld [vmem:[%s11] sm:$0x1]
      %v1260 = vlaneseq
      %v1261 = vshrl.u32 %v1260, 7
      %v1262 = vsub.s32 0, %v1261
      %v1263 = vrot.slane %v1258, %v1262
      %v1269 = vunpack.c.l.b16 %v1253
      %v1270 = vunpack.c.l.b16 %v1254
      %v1271 = vunpack.c.l.b16 %v1255
      %v1272 = vunpack.c.l.b16 %v1256
      %v1273 = vpack.c.b16 %v1270, %v1269
      %v1274 = vpack.c.b16 %v1272, %v1271
      %v1278 = vsel %vm589, %v1257, 0
      %1280 = vmatprep.subr.bf16.mxu0 0
      %1281 = vmatpush1.bf16.msra.mxu0 0
      %1282 = vmatprep.subr.bf16.mxu0 0
      %1283 = vmatpush1.bf16.msra.mxu0 0
      %1284 = vmatprep.subr.bf16.mxu0 0
      %1285 = vmatpush1.bf16.msra.mxu0 0
      %1286 = vmatprep.subr.bf16.mxu0 0
      %1287 = vmatpush1.bf16.msra.mxu0 0
      %1288 = vmatprep.subr.bf16.mxu0 0
      %1289 = vmatpush1.bf16.msra.mxu0 0
      %1290 = vmatprep.subr.bf16.mxu0 0
      %1291 = vmatpush1.bf16.msra.mxu0 0
      %1292 = vmatprep.subr.bf16.mxu0 0
      %1293 = vmatpush1.bf16.msra.mxu0 %v1274
      %1294 = vmatprep.subr.bf16.mxu0 0
      %1295 = vmatpush1.bf16.msra.mxu0 %v1273
      %1296 = vmatprep.subr.bf16.mxu0 0
      %1297 = vmatpush2.bf16.msra.mxu0 0
      %1298 = vmatprep.subr.bf16.mxu0 0
      %1299 = vmatpush2.bf16.msra.mxu0 0
      %1300 = vmatprep.subr.bf16.mxu0 0
      %1301 = vmatpush2.bf16.msra.mxu0 0
      %1302 = vmatprep.subr.bf16.mxu0 0
      %1303 = vmatpush2.bf16.msra.mxu0 0
      %1304 = vmatprep.subr.bf16.mxu0 0
      %1305 = vmatpush2.bf16.msra.mxu0 0
      %1306 = vmatprep.subr.bf16.mxu0 0
      %1307 = vmatpush2.bf16.msra.mxu0 0
      %1308 = vmatprep.subr.bf16.mxu0 0
      %1309 = vmatpush2.bf16.msra.mxu0 0
      %1310 = vmatprep.subr.bf16.mxu0 0
      %1311 = vmatpush2.bf16.msra.mxu0 0
      %1312 = vmatprep.mubr.bf16.mxu0 0
      %1313 = vmatmul.mubr.bf16.gmra.mxu0 %v1278
      %v1314 = vpop.f32.mrf.mxu0
      %v1315 = vadd.f32 %v1263, %v1314
      %v1316 = vpop.f32.mrf.mxu0
      %v1317 = vpop.f32.mrf.mxu0
      %v1318 = vpop.f32.mrf.mxu0
      %1319 = vdwg.mxu0
      %v1320 = vmul.f32 %v1315, 0.5
      %v1321 = vmul.f32 %v1315, 0.044715
      %v1322 = vmul.f32 %v1321, %v1315
      %v1323 = vmul.f32 %v1322, %v1315
      %v1324 = vadd.f32 %v1315, %v1323
      %v1325 = vmul.f32 %v1324, 0.7978846
      %v1326 = vtanh.pop %v1325
      %v1327 = vadd.f32 %v1326, 1.0
      %v1328 = vmul.f32 %v1320, %v1327
      %v1329 = vld [vmem:[%s12] sm:$0xf]
      %v1330 = vld [vmem:[%s12 + $0x4] sm:$0xf]
      %v1331 = vld [vmem:[%s12 + $0x8] sm:$0xf]
      %v1332 = vld [vmem:[%s12 + $0xc] sm:$0xf]
      %v1333 = vld [vmem:[%s12 + $0x10] sm:$0xf]
      %v1334 = vld [vmem:[%s12 + $0x14] sm:$0xf]
      %v1335 = vld [vmem:[%s12 + $0x18] sm:$0xf]
      %v1336 = vld [vmem:[%s12 + $0x1c] sm:$0xf]
      %v1337 = vpack.c.bf16 %v1328, %v1328
      %v1338 = vld [vmem:[%s13] sm:$0x1]
      %v1340 = vlaneseq
      %v1341 = vshrl.u32 %v1340, 7
      %v1342 = vsub.s32 0, %v1341
      %v1343 = vrot.slane %v1338, %v1342
      %v1353 = vunpack.c.l.b16 %v1329
      %v1354 = vunpack.c.l.b16 %v1330
      %v1355 = vunpack.c.l.b16 %v1331
      %v1356 = vunpack.c.l.b16 %v1332
      %v1357 = vunpack.c.l.b16 %v1333
      %v1358 = vunpack.c.l.b16 %v1334
      %v1359 = vunpack.c.l.b16 %v1335
      %v1360 = vunpack.c.l.b16 %v1336
      %v1361 = vpack.c.b16 %v1354, %v1353
      %v1362 = vpack.c.b16 %v1356, %v1355
      %v1363 = vpack.c.b16 %v1358, %v1357
      %v1364 = vpack.c.b16 %v1360, %v1359
      %vm1369 = vcmask 523264
      %v1371 = vsel %vm1369, %v1337, 0
      %1373 = vmatprep.subr.bf16.mxu0 0
      %1374 = vmatpush1.bf16.msra.mxu0 0
      %1375 = vmatprep.subr.bf16.mxu0 0
      %1376 = vmatpush1.bf16.msra.mxu0 0
      %1377 = vmatprep.subr.bf16.mxu0 0
      %1378 = vmatpush1.bf16.msra.mxu0 0
      %1379 = vmatprep.subr.bf16.mxu0 0
      %1380 = vmatpush1.bf16.msra.mxu0 0
      %1381 = vmatprep.subr.bf16.mxu0 0
      %1382 = vmatpush1.bf16.msra.mxu0 %v1364
      %1383 = vmatprep.subr.bf16.mxu0 0
      %1384 = vmatpush1.bf16.msra.mxu0 %v1363
      %1385 = vmatprep.subr.bf16.mxu0 0
      %1386 = vmatpush1.bf16.msra.mxu0 %v1362
      %1387 = vmatprep.subr.bf16.mxu0 0
      %1388 = vmatpush1.bf16.msra.mxu0 %v1361
      %1389 = vmatprep.subr.bf16.mxu0 0
      %1390 = vmatpush2.bf16.msra.mxu0 0
      %1391 = vmatprep.subr.bf16.mxu0 0
      %1392 = vmatpush2.bf16.msra.mxu0 0
      %1393 = vmatprep.subr.bf16.mxu0 0
      %1394 = vmatpush2.bf16.msra.mxu0 0
      %1395 = vmatprep.subr.bf16.mxu0 0
      %1396 = vmatpush2.bf16.msra.mxu0 0
      %1397 = vmatprep.subr.bf16.mxu0 0
      %1398 = vmatpush2.bf16.msra.mxu0 0
      %1399 = vmatprep.subr.bf16.mxu0 0
      %1400 = vmatpush2.bf16.msra.mxu0 0
      %1401 = vmatprep.subr.bf16.mxu0 0
      %1402 = vmatpush2.bf16.msra.mxu0 0
      %1403 = vmatprep.subr.bf16.mxu0 0
      %1404 = vmatpush2.bf16.msra.mxu0 0
      %1405 = vmatprep.mubr.bf16.mxu0 0
      %1406 = vmatmul.mubr.bf16.gmra.mxu0 %v1371
      %v1407 = vpop.f32.mrf.mxu0
      %v1408 = vadd.f32 %v1343, %v1407
      %v1409 = vpop.f32.mrf.mxu0
      %v1410 = vpop.f32.mrf.mxu0
      %v1411 = vpop.f32.mrf.mxu0
      %1412 = vdwg.mxu0
      %v1413 = vadd.f32 %v1252, %v1408
      %v1414 = vld [vmem:[%s14] sm:$0x1]
      %v1415 = vld [vmem:[%s15] sm:$0x1]
      %v1416 = vsel %vm589, %v1413, 0.0
      %1417 = vadd.xlane.f32.xlu0 %v1416
      %v1418 = vpop.xlane.xlu0 %1417
      %v1419 = vmul.f32 %v1418, %v593
      %v1420 = vsub.f32 %v1413, %v1419
      %v1421 = vmul.f32 %v1420, %v1420
      %v1422 = vsel %vm589, %v1421, 0.0
      %1423 = vadd.xlane.f32.xlu0 %v1422
      %v1424 = vpop.xlane.xlu0 %1423
      %v1425 = vmul.f32 %v1424, %v593
      %v1426 = vadd.f32 %v1425, 1e-12
      %v1427 = vrsqrt.pop %v1426
      %v1428 = vmul.f32 %v1420, %v1427
      %v1430 = vlaneseq
      %v1431 = vshrl.u32 %v1430, 7
      %v1432 = vsub.s32 0, %v1431
      %v1433 = vrot.slane %v1414, %v1432
      %v1435 = vmul.f32 %v1428, %v1433
      %v1437 = vlaneseq
      %v1438 = vshrl.u32 %v1437, 7
      %v1439 = vsub.s32 0, %v1438
      %v1440 = vrot.slane %v1415, %v1439
      %v1442 = vadd.f32 %v1435, %v1440
      %s1443 = scalar_lea.vmem %s4, 16
      %v1444 = vld [vmem:[%s1443] sm:$0xf]
      %v1445 = vld [vmem:[%s1443 + $0x4] sm:$0xf]
      %v1446 = vld [vmem:[%s1443 + $0x8] sm:$0xf]
      %v1447 = vld [vmem:[%s1443 + $0xc] sm:$0xf]
      %v1448 = vpack.c.bf16 %v1442, %v1442
      %s1449 = scalar_lea.vmem %s5, 1
      %v1450 = vld [vmem:[%s1449] sm:$0x1]
      %v1452 = vlaneseq
      %v1453 = vshrl.u32 %v1452, 7
      %v1454 = vsub.s32 0, %v1453
      %v1455 = vrot.slane %v1450, %v1454
      %v1461 = vunpack.c.l.b16 %v1444
      %v1462 = vunpack.c.l.b16 %v1445
      %v1463 = vunpack.c.l.b16 %v1446
      %v1464 = vunpack.c.l.b16 %v1447
      %v1465 = vpack.c.b16 %v1462, %v1461
      %v1466 = vpack.c.b16 %v1464, %v1463
      %v1470 = vsel %vm589, %v1448, 0
      %1472 = vmatprep.subr.bf16.mxu0 0
      %1473 = vmatpush1.bf16.msra.mxu0 0
      %1474 = vmatprep.subr.bf16.mxu0 0
      %1475 = vmatpush1.bf16.msra.mxu0 0
      %1476 = vmatprep.subr.bf16.mxu0 0
      %1477 = vmatpush1.bf16.msra.mxu0 0
      %1478 = vmatprep.subr.bf16.mxu0 0
      %1479 = vmatpush1.bf16.msra.mxu0 0
      %1480 = vmatprep.subr.bf16.mxu0 0
      %1481 = vmatpush1.bf16.msra.mxu0 0
      %1482 = vmatprep.subr.bf16.mxu0 0
      %1483 = vmatpush1.bf16.msra.mxu0 0
      %1484 = vmatprep.subr.bf16.mxu0 0
      %1485 = vmatpush1.bf16.msra.mxu0 %v1466
      %1486 = vmatprep.subr.bf16.mxu0 0
      %1487 = vmatpush1.bf16.msra.mxu0 %v1465
      %1488 = vmatprep.subr.bf16.mxu0 0
      %1489 = vmatpush2.bf16.msra.mxu0 0
      %1490 = vmatprep.subr.bf16.mxu0 0
      %1491 = vmatpush2.bf16.msra.mxu0 0
      %1492 = vmatprep.subr.bf16.mxu0 0
      %1493 = vmatpush2.bf16.msra.mxu0 0
      %1494 = vmatprep.subr.bf16.mxu0 0
      %1495 = vmatpush2.bf16.msra.mxu0 0
      %1496 = vmatprep.subr.bf16.mxu0 0
      %1497 = vmatpush2.bf16.msra.mxu0 0
      %1498 = vmatprep.subr.bf16.mxu0 0
      %1499 = vmatpush2.bf16.msra.mxu0 0
      %1500 = vmatprep.subr.bf16.mxu0 0
      %1501 = vmatpush2.bf16.msra.mxu0 0
      %1502 = vmatprep.subr.bf16.mxu0 0
      %1503 = vmatpush2.bf16.msra.mxu0 0
      %1504 = vmatprep.mubr.bf16.mxu0 0
      %1505 = vmatmul.mubr.bf16.gmra.mxu0 %v1470
      %v1506 = vpop.f32.mrf.mxu0
      %v1507 = vadd.f32 %v1455, %v1506
      %v1508 = vpop.f32.mrf.mxu0
      %v1509 = vpop.f32.mrf.mxu0
      %v1510 = vpop.f32.mrf.mxu0
      %1511 = vdwg.mxu0
      %v1512 = vmul.f32 %v1507, 0.35355338
      %v1513 = vpack.c.bf16 %v1512, %v1512
      %v1514 = vpack.c.bf16 %v1507, %v1507
      %1516 = vrot.lane.b32.xlu0 %v1514, 96
      %v1517 = vpop.permute.xlu0 %1516
      %v1519 = vsel %vm700, %v1513, 0
      %v1522 = vsel %vm700, %v1517, 0
      %1524 = vmatprep.subr.bf16.mxu0 0
      %1525 = vmatpush1.bf16.xpose.msra.mxu0 0
      %1526 = vmatprep.subr.bf16.mxu0 0
      %1527 = vmatpush1.bf16.xpose.msra.mxu0 0
      %1528 = vmatprep.subr.bf16.mxu0 0
      %1529 = vmatpush1.bf16.xpose.msra.mxu0 0
      %1530 = vmatprep.subr.bf16.mxu0 0
      %1531 = vmatpush1.bf16.xpose.msra.mxu0 0
      %1532 = vmatprep.subr.bf16.mxu0 0
      %1533 = vmatpush1.bf16.xpose.msra.mxu0 0
      %1534 = vmatprep.subr.bf16.mxu0 0
      %1535 = vmatpush1.bf16.xpose.msra.mxu0 0
      %1536 = vmatprep.subr.bf16.mxu0 0
      %1537 = vmatpush1.bf16.xpose.msra.mxu0 0
      %1538 = vmatprep.subr.bf16.mxu0 0
      %1539 = vmatpush1.bf16.xpose.msra.mxu0 %v1522
      %1540 = vmatprep.subr.bf16.mxu0 0
      %1541 = vmatpush2.bf16.xpose.msra.mxu0 0
      %1542 = vmatprep.subr.bf16.mxu0 0
      %1543 = vmatpush2.bf16.xpose.msra.mxu0 0
      %1544 = vmatprep.subr.bf16.mxu0 0
      %1545 = vmatpush2.bf16.xpose.msra.mxu0 0
      %1546 = vmatprep.subr.bf16.mxu0 0
      %1547 = vmatpush2.bf16.xpose.msra.mxu0 0
      %1548 = vmatprep.subr.bf16.mxu0 0
      %1549 = vmatpush2.bf16.xpose.msra.mxu0 0
      %1550 = vmatprep.subr.bf16.mxu0 0
      %1551 = vmatpush2.bf16.xpose.msra.mxu0 0
      %1552 = vmatprep.subr.bf16.mxu0 0
      %1553 = vmatpush2.bf16.xpose.msra.mxu0 0
      %1554 = vmatprep.subr.bf16.mxu0 0
      %1555 = vmatpush2.bf16.xpose.msra.mxu0 0
      %1556 = vmatprep.mubr.bf16.mxu0 0
      %1557 = vmatmul.mubr.bf16.gmra.mxu0 %v1519
      %v1558 = vpop.f32.mrf.mxu0
      %v1559 = vadd.f32 %v695, %v1558
      %v1560 = vpop.f32.mrf.mxu0
      %v1561 = vpop.f32.mrf.mxu0
      %v1562 = vpop.f32.mrf.mxu0
      %1563 = vdwg.mxu0
      %v1564 = vsel %vm700, %v1559, -inf
      %1565 = vmax.xlane.f32.xlu0 %v1564
      %v1566 = vpop.xlane.xlu0 %1565
      %v1567 = vsub.f32 %v1559, %v1566
      %v1568 = vmul.f32 %v1567, 1.442695
      %v1569 = vpow.pop %v1568
      %v1570 = vsel %vm700, %v1569, 0.0
      %1571 = vadd.xlane.f32.xlu0 %v1570
      %v1572 = vpop.xlane.xlu0 %1571
      %v1573 = vrcp.pop %v1572
      %v1574 = vmul.f32 %v1569, %v1573
      %v1575 = vpack.c.bf16 %v1574, %v1574
      %1576 = vrot.lane.b32.xlu0 %v1514, 64
      %v1577 = vpop.permute.xlu0 %1576
      %v1579 = vsel %vm700, %v1575, 0
      %v1582 = vsel %vm764, %v1577, 0
      %1584 = vmatprep.subr.bf16.mxu0 0
      %1585 = vmatpush1.bf16.msra.mxu0 0
      %1586 = vmatprep.subr.bf16.mxu0 0
      %1587 = vmatpush1.bf16.msra.mxu0 0
      %1588 = vmatprep.subr.bf16.mxu0 0
      %1589 = vmatpush1.bf16.msra.mxu0 0
      %1590 = vmatprep.subr.bf16.mxu0 0
      %1591 = vmatpush1.bf16.msra.mxu0 0
      %1592 = vmatprep.subr.bf16.mxu0 0
      %1593 = vmatpush1.bf16.msra.mxu0 0
      %1594 = vmatprep.subr.bf16.mxu0 0
      %1595 = vmatpush1.bf16.msra.mxu0 0
      %1596 = vmatprep.subr.bf16.mxu0 0
      %1597 = vmatpush1.bf16.msra.mxu0 0
      %1598 = vmatprep.subr.bf16.mxu0 0
      %1599 = vmatpush1.bf16.msra.mxu0 %v1582
      %1600 = vmatprep.subr.bf16.mxu0 0
      %1601 = vmatpush2.bf16.msra.mxu0 0
      %1602 = vmatprep.subr.bf16.mxu0 0
      %1603 = vmatpush2.bf16.msra.mxu0 0
      %1604 = vmatprep.subr.bf16.mxu0 0
      %1605 = vmatpush2.bf16.msra.mxu0 0
      %1606 = vmatprep.subr.bf16.mxu0 0
      %1607 = vmatpush2.bf16.msra.mxu0 0
      %1608 = vmatprep.subr.bf16.mxu0 0
      %1609 = vmatpush2.bf16.msra.mxu0 0
      %1610 = vmatprep.subr.bf16.mxu0 0
      %1611 = vmatpush2.bf16.msra.mxu0 0
      %1612 = vmatprep.subr.bf16.mxu0 0
      %1613 = vmatpush2.bf16.msra.mxu0 0
      %1614 = vmatprep.subr.bf16.mxu0 0
      %1615 = vmatpush2.bf16.msra.mxu0 0
      %1616 = vmatprep.mubr.bf16.mxu0 0
      %1617 = vmatmul.mubr.bf16.gmra.mxu0 %v1579
      %v1618 = vpop.f32.mrf.mxu0
      %v1619 = vadd.f32 0.0, %v1618
      %v1620 = vpop.f32.mrf.mxu0
      %v1621 = vpop.f32.mrf.mxu0
      %v1622 = vpop.f32.mrf.mxu0
      %1623 = vdwg.mxu0
      %1625 = vrot.lane.b32.xlu0 %v1513, 120
      %v1626 = vpop.permute.xlu0 %1625
      %1627 = vrot.lane.b32.xlu0 %v1514, 88
      %v1628 = vpop.permute.xlu0 %1627
      %v1630 = vsel %vm700, %v1626, 0
      %v1633 = vsel %vm700, %v1628, 0
      %1635 = vmatprep.subr.bf16.mxu0 0
      %1636 = vmatpush1.bf16.xpose.msra.mxu0 0
      %1637 = vmatprep.subr.bf16.mxu0 0
      %1638 = vmatpush1.bf16.xpose.msra.mxu0 0
      %1639 = vmatprep.subr.bf16.mxu0 0
      %1640 = vmatpush1.bf16.xpose.msra.mxu0 0
      %1641 = vmatprep.subr.bf16.mxu0 0
      %1642 = vmatpush1.bf16.xpose.msra.mxu0 0
      %1643 = vmatprep.subr.bf16.mxu0 0
      %1644 = vmatpush1.bf16.xpose.msra.mxu0 0
      %1645 = vmatprep.subr.bf16.mxu0 0
      %1646 = vmatpush1.bf16.xpose.msra.mxu0 0
      %1647 = vmatprep.subr.bf16.mxu0 0
      %1648 = vmatpush1.bf16.xpose.msra.mxu0 0
      %1649 = vmatprep.subr.bf16.mxu0 0
      %1650 = vmatpush1.bf16.xpose.msra.mxu0 %v1633
      %1651 = vmatprep.subr.bf16.mxu0 0
      %1652 = vmatpush2.bf16.xpose.msra.mxu0 0
      %1653 = vmatprep.subr.bf16.mxu0 0
      %1654 = vmatpush2.bf16.xpose.msra.mxu0 0
      %1655 = vmatprep.subr.bf16.mxu0 0
      %1656 = vmatpush2.bf16.xpose.msra.mxu0 0
      %1657 = vmatprep.subr.bf16.mxu0 0
      %1658 = vmatpush2.bf16.xpose.msra.mxu0 0
      %1659 = vmatprep.subr.bf16.mxu0 0
      %1660 = vmatpush2.bf16.xpose.msra.mxu0 0
      %1661 = vmatprep.subr.bf16.mxu0 0
      %1662 = vmatpush2.bf16.xpose.msra.mxu0 0
      %1663 = vmatprep.subr.bf16.mxu0 0
      %1664 = vmatpush2.bf16.xpose.msra.mxu0 0
      %1665 = vmatprep.subr.bf16.mxu0 0
      %1666 = vmatpush2.bf16.xpose.msra.mxu0 0
      %1667 = vmatprep.mubr.bf16.mxu0 0
      %1668 = vmatmul.mubr.bf16.gmra.mxu0 %v1630
      %v1669 = vpop.f32.mrf.mxu0
      %v1670 = vadd.f32 %v695, %v1669
      %v1671 = vpop.f32.mrf.mxu0
      %v1672 = vpop.f32.mrf.mxu0
      %v1673 = vpop.f32.mrf.mxu0
      %1674 = vdwg.mxu0
      %v1675 = vsel %vm700, %v1670, -inf
      %1676 = vmax.xlane.f32.xlu0 %v1675
      %v1677 = vpop.xlane.xlu0 %1676
      %v1678 = vsub.f32 %v1670, %v1677
      %v1679 = vmul.f32 %v1678, 1.442695
      %v1680 = vpow.pop %v1679
      %v1681 = vsel %vm700, %v1680, 0.0
      %1682 = vadd.xlane.f32.xlu0 %v1681
      %v1683 = vpop.xlane.xlu0 %1682
      %v1684 = vrcp.pop %v1683
      %v1685 = vmul.f32 %v1680, %v1684
      %v1686 = vpack.c.bf16 %v1685, %v1685
      %1687 = vrot.lane.b32.xlu0 %v1514, 56
      %v1688 = vpop.permute.xlu0 %1687
      %v1690 = vsel %vm700, %v1686, 0
      %v1693 = vsel %vm764, %v1688, 0
      %1695 = vmatprep.subr.bf16.mxu0 0
      %1696 = vmatpush1.bf16.msra.mxu0 0
      %1697 = vmatprep.subr.bf16.mxu0 0
      %1698 = vmatpush1.bf16.msra.mxu0 0
      %1699 = vmatprep.subr.bf16.mxu0 0
      %1700 = vmatpush1.bf16.msra.mxu0 0
      %1701 = vmatprep.subr.bf16.mxu0 0
      %1702 = vmatpush1.bf16.msra.mxu0 0
      %1703 = vmatprep.subr.bf16.mxu0 0
      %1704 = vmatpush1.bf16.msra.mxu0 0
      %1705 = vmatprep.subr.bf16.mxu0 0
      %1706 = vmatpush1.bf16.msra.mxu0 0
      %1707 = vmatprep.subr.bf16.mxu0 0
      %1708 = vmatpush1.bf16.msra.mxu0 0
      %1709 = vmatprep.subr.bf16.mxu0 0
      %1710 = vmatpush1.bf16.msra.mxu0 %v1693
      %1711 = vmatprep.subr.bf16.mxu0 0
      %1712 = vmatpush2.bf16.msra.mxu0 0
      %1713 = vmatprep.subr.bf16.mxu0 0
      %1714 = vmatpush2.bf16.msra.mxu0 0
      %1715 = vmatprep.subr.bf16.mxu0 0
      %1716 = vmatpush2.bf16.msra.mxu0 0
      %1717 = vmatprep.subr.bf16.mxu0 0
      %1718 = vmatpush2.bf16.msra.mxu0 0
      %1719 = vmatprep.subr.bf16.mxu0 0
      %1720 = vmatpush2.bf16.msra.mxu0 0
      %1721 = vmatprep.subr.bf16.mxu0 0
      %1722 = vmatpush2.bf16.msra.mxu0 0
      %1723 = vmatprep.subr.bf16.mxu0 0
      %1724 = vmatpush2.bf16.msra.mxu0 0
      %1725 = vmatprep.subr.bf16.mxu0 0
      %1726 = vmatpush2.bf16.msra.mxu0 0
      %1727 = vmatprep.mubr.bf16.mxu0 0
      %1728 = vmatmul.mubr.bf16.gmra.mxu0 %v1690
      %v1729 = vpop.f32.mrf.mxu0
      %v1730 = vadd.f32 0.0, %v1729
      %v1731 = vpop.f32.mrf.mxu0
      %v1732 = vpop.f32.mrf.mxu0
      %v1733 = vpop.f32.mrf.mxu0
      %1734 = vdwg.mxu0
      %1735 = vrot.lane.b32.xlu0 %v1513, 112
      %v1736 = vpop.permute.xlu0 %1735
      %1737 = vrot.lane.b32.xlu0 %v1514, 80
      %v1738 = vpop.permute.xlu0 %1737
      %v1740 = vsel %vm700, %v1736, 0
      %v1743 = vsel %vm700, %v1738, 0
      %1745 = vmatprep.subr.bf16.mxu0 0
      %1746 = vmatpush1.bf16.xpose.msra.mxu0 0
      %1747 = vmatprep.subr.bf16.mxu0 0
      %1748 = vmatpush1.bf16.xpose.msra.mxu0 0
      %1749 = vmatprep.subr.bf16.mxu0 0
      %1750 = vmatpush1.bf16.xpose.msra.mxu0 0
      %1751 = vmatprep.subr.bf16.mxu0 0
      %1752 = vmatpush1.bf16.xpose.msra.mxu0 0
      %1753 = vmatprep.subr.bf16.mxu0 0
      %1754 = vmatpush1.bf16.xpose.msra.mxu0 0
      %1755 = vmatprep.subr.bf16.mxu0 0
      %1756 = vmatpush1.bf16.xpose.msra.mxu0 0
      %1757 = vmatprep.subr.bf16.mxu0 0
      %1758 = vmatpush1.bf16.xpose.msra.mxu0 0
      %1759 = vmatprep.subr.bf16.mxu0 0
      %1760 = vmatpush1.bf16.xpose.msra.mxu0 %v1743
      %1761 = vmatprep.subr.bf16.mxu0 0
      %1762 = vmatpush2.bf16.xpose.msra.mxu0 0
      %1763 = vmatprep.subr.bf16.mxu0 0
      %1764 = vmatpush2.bf16.xpose.msra.mxu0 0
      %1765 = vmatprep.subr.bf16.mxu0 0
      %1766 = vmatpush2.bf16.xpose.msra.mxu0 0
      %1767 = vmatprep.subr.bf16.mxu0 0
      %1768 = vmatpush2.bf16.xpose.msra.mxu0 0
      %1769 = vmatprep.subr.bf16.mxu0 0
      %1770 = vmatpush2.bf16.xpose.msra.mxu0 0
      %1771 = vmatprep.subr.bf16.mxu0 0
      %1772 = vmatpush2.bf16.xpose.msra.mxu0 0
      %1773 = vmatprep.subr.bf16.mxu0 0
      %1774 = vmatpush2.bf16.xpose.msra.mxu0 0
      %1775 = vmatprep.subr.bf16.mxu0 0
      %1776 = vmatpush2.bf16.xpose.msra.mxu0 0
      %1777 = vmatprep.mubr.bf16.mxu0 0
      %1778 = vmatmul.mubr.bf16.gmra.mxu0 %v1740
      %v1779 = vpop.f32.mrf.mxu0
      %v1780 = vadd.f32 %v695, %v1779
      %v1781 = vpop.f32.mrf.mxu0
      %v1782 = vpop.f32.mrf.mxu0
      %v1783 = vpop.f32.mrf.mxu0
      %1784 = vdwg.mxu0
      %v1785 = vsel %vm700, %v1780, -inf
      %1786 = vmax.xlane.f32.xlu0 %v1785
      %v1787 = vpop.xlane.xlu0 %1786
      %v1788 = vsub.f32 %v1780, %v1787
      %v1789 = vmul.f32 %v1788, 1.442695
      %v1790 = vpow.pop %v1789
      %v1791 = vsel %vm700, %v1790, 0.0
      %1792 = vadd.xlane.f32.xlu0 %v1791
      %v1793 = vpop.xlane.xlu0 %1792
      %v1794 = vrcp.pop %v1793
      %v1795 = vmul.f32 %v1790, %v1794
      %v1796 = vpack.c.bf16 %v1795, %v1795
      %1797 = vrot.lane.b32.xlu0 %v1514, 48
      %v1798 = vpop.permute.xlu0 %1797
      %v1800 = vsel %vm700, %v1796, 0
      %v1803 = vsel %vm764, %v1798, 0
      %1805 = vmatprep.subr.bf16.mxu0 0
      %1806 = vmatpush1.bf16.msra.mxu0 0
      %1807 = vmatprep.subr.bf16.mxu0 0
      %1808 = vmatpush1.bf16.msra.mxu0 0
      %1809 = vmatprep.subr.bf16.mxu0 0
      %1810 = vmatpush1.bf16.msra.mxu0 0
      %1811 = vmatprep.subr.bf16.mxu0 0
      %1812 = vmatpush1.bf16.msra.mxu0 0
      %1813 = vmatprep.subr.bf16.mxu0 0
      %1814 = vmatpush1.bf16.msra.mxu0 0
      %1815 = vmatprep.subr.bf16.mxu0 0
      %1816 = vmatpush1.bf16.msra.mxu0 0
      %1817 = vmatprep.subr.bf16.mxu0 0
      %1818 = vmatpush1.bf16.msra.mxu0 0
      %1819 = vmatprep.subr.bf16.mxu0 0
      %1820 = vmatpush1.bf16.msra.mxu0 %v1803
      %1821 = vmatprep.subr.bf16.mxu0 0
      %1822 = vmatpush2.bf16.msra.mxu0 0
      %1823 = vmatprep.subr.bf16.mxu0 0
      %1824 = vmatpush2.bf16.msra.mxu0 0
      %1825 = vmatprep.subr.bf16.mxu0 0
      %1826 = vmatpush2.bf16.msra.mxu0 0
      %1827 = vmatprep.subr.bf16.mxu0 0
      %1828 = vmatpush2.bf16.msra.mxu0 0
      %1829 = vmatprep.subr.bf16.mxu0 0
      %1830 = vmatpush2.bf16.msra.mxu0 0
      %1831 = vmatprep.subr.bf16.mxu0 0
      %1832 = vmatpush2.bf16.msra.mxu0 0
      %1833 = vmatprep.subr.bf16.mxu0 0
      %1834 = vmatpush2.bf16.msra.mxu0 0
      %1835 = vmatprep.subr.bf16.mxu0 0
      %1836 = vmatpush2.bf16.msra.mxu0 0
      %1837 = vmatprep.mubr.bf16.mxu0 0
      %1838 = vmatmul.mubr.bf16.gmra.mxu0 %v1800
      %v1839 = vpop.f32.mrf.mxu0
      %v1840 = vadd.f32 0.0, %v1839
      %v1841 = vpop.f32.mrf.mxu0
      %v1842 = vpop.f32.mrf.mxu0
      %v1843 = vpop.f32.mrf.mxu0
      %1844 = vdwg.mxu0
      %1845 = vrot.lane.b32.xlu0 %v1513, 104
      %v1846 = vpop.permute.xlu0 %1845
      %1847 = vrot.lane.b32.xlu0 %v1514, 72
      %v1848 = vpop.permute.xlu0 %1847
      %v1850 = vsel %vm700, %v1846, 0
      %v1853 = vsel %vm700, %v1848, 0
      %1855 = vmatprep.subr.bf16.mxu0 0
      %1856 = vmatpush1.bf16.xpose.msra.mxu0 0
      %1857 = vmatprep.subr.bf16.mxu0 0
      %1858 = vmatpush1.bf16.xpose.msra.mxu0 0
      %1859 = vmatprep.subr.bf16.mxu0 0
      %1860 = vmatpush1.bf16.xpose.msra.mxu0 0
      %1861 = vmatprep.subr.bf16.mxu0 0
      %1862 = vmatpush1.bf16.xpose.msra.mxu0 0
      %1863 = vmatprep.subr.bf16.mxu0 0
      %1864 = vmatpush1.bf16.xpose.msra.mxu0 0
      %1865 = vmatprep.subr.bf16.mxu0 0
      %1866 = vmatpush1.bf16.xpose.msra.mxu0 0
      %1867 = vmatprep.subr.bf16.mxu0 0
      %1868 = vmatpush1.bf16.xpose.msra.mxu0 0
      %1869 = vmatprep.subr.bf16.mxu0 0
      %1870 = vmatpush1.bf16.xpose.msra.mxu0 %v1853
      %1871 = vmatprep.subr.bf16.mxu0 0
      %1872 = vmatpush2.bf16.xpose.msra.mxu0 0
      %1873 = vmatprep.subr.bf16.mxu0 0
      %1874 = vmatpush2.bf16.xpose.msra.mxu0 0
      %1875 = vmatprep.subr.bf16.mxu0 0
      %1876 = vmatpush2.bf16.xpose.msra.mxu0 0
      %1877 = vmatprep.subr.bf16.mxu0 0
      %1878 = vmatpush2.bf16.xpose.msra.mxu0 0
      %1879 = vmatprep.subr.bf16.mxu0 0
      %1880 = vmatpush2.bf16.xpose.msra.mxu0 0
      %1881 = vmatprep.subr.bf16.mxu0 0
      %1882 = vmatpush2.bf16.xpose.msra.mxu0 0
      %1883 = vmatprep.subr.bf16.mxu0 0
      %1884 = vmatpush2.bf16.xpose.msra.mxu0 0
      %1885 = vmatprep.subr.bf16.mxu0 0
      %1886 = vmatpush2.bf16.xpose.msra.mxu0 0
      %1887 = vmatprep.mubr.bf16.mxu0 0
      %1888 = vmatmul.mubr.bf16.gmra.mxu0 %v1850
      %v1889 = vpop.f32.mrf.mxu0
      %v1890 = vadd.f32 %v695, %v1889
      %v1891 = vpop.f32.mrf.mxu0
      %v1892 = vpop.f32.mrf.mxu0
      %v1893 = vpop.f32.mrf.mxu0
      %1894 = vdwg.mxu0
      %v1895 = vsel %vm700, %v1890, -inf
      %1896 = vmax.xlane.f32.xlu0 %v1895
      %v1897 = vpop.xlane.xlu0 %1896
      %v1898 = vsub.f32 %v1890, %v1897
      %v1899 = vmul.f32 %v1898, 1.442695
      %v1900 = vpow.pop %v1899
      %v1901 = vsel %vm700, %v1900, 0.0
      %1902 = vadd.xlane.f32.xlu0 %v1901
      %v1903 = vpop.xlane.xlu0 %1902
      %v1904 = vrcp.pop %v1903
      %v1905 = vmul.f32 %v1900, %v1904
      %v1906 = vpack.c.bf16 %v1905, %v1905
      %1907 = vrot.lane.b32.xlu0 %v1514, 40
      %v1908 = vpop.permute.xlu0 %1907
      %v1910 = vsel %vm700, %v1906, 0
      %v1913 = vsel %vm764, %v1908, 0
      %1915 = vmatprep.subr.bf16.mxu0 0
      %1916 = vmatpush1.bf16.msra.mxu0 0
      %1917 = vmatprep.subr.bf16.mxu0 0
      %1918 = vmatpush1.bf16.msra.mxu0 0
      %1919 = vmatprep.subr.bf16.mxu0 0
      %1920 = vmatpush1.bf16.msra.mxu0 0
      %1921 = vmatprep.subr.bf16.mxu0 0
      %1922 = vmatpush1.bf16.msra.mxu0 0
      %1923 = vmatprep.subr.bf16.mxu0 0
      %1924 = vmatpush1.bf16.msra.mxu0 0
      %1925 = vmatprep.subr.bf16.mxu0 0
      %1926 = vmatpush1.bf16.msra.mxu0 0
      %1927 = vmatprep.subr.bf16.mxu0 0
      %1928 = vmatpush1.bf16.msra.mxu0 0
      %1929 = vmatprep.subr.bf16.mxu0 0
      %1930 = vmatpush1.bf16.msra.mxu0 %v1913
      %1931 = vmatprep.subr.bf16.mxu0 0
      %1932 = vmatpush2.bf16.msra.mxu0 0
      %1933 = vmatprep.subr.bf16.mxu0 0
      %1934 = vmatpush2.bf16.msra.mxu0 0
      %1935 = vmatprep.subr.bf16.mxu0 0
      %1936 = vmatpush2.bf16.msra.mxu0 0
      %1937 = vmatprep.subr.bf16.mxu0 0
      %1938 = vmatpush2.bf16.msra.mxu0 0
      %1939 = vmatprep.subr.bf16.mxu0 0
      %1940 = vmatpush2.bf16.msra.mxu0 0
      %1941 = vmatprep.subr.bf16.mxu0 0
      %1942 = vmatpush2.bf16.msra.mxu0 0
      %1943 = vmatprep.subr.bf16.mxu0 0
      %1944 = vmatpush2.bf16.msra.mxu0 0
      %1945 = vmatprep.subr.bf16.mxu0 0
      %1946 = vmatpush2.bf16.msra.mxu0 0
      %1947 = vmatprep.mubr.bf16.mxu0 0
      %1948 = vmatmul.mubr.bf16.gmra.mxu0 %v1910
      %v1949 = vpop.f32.mrf.mxu0
      %v1950 = vadd.f32 0.0, %v1949
      %v1951 = vpop.f32.mrf.mxu0
      %v1952 = vpop.f32.mrf.mxu0
      %v1953 = vpop.f32.mrf.mxu0
      %1954 = vdwg.mxu0
      %1956 = vrot.lane.b32.xlu0 %v1730, 8
      %v1957 = vpop.permute.xlu0 %1956
      %1960 = vrot.lane.b32.xlu0 %v1840, 16
      %v1961 = vpop.permute.xlu0 %1960
      %1964 = vrot.lane.b32.xlu0 %v1950, 24
      %v1965 = vpop.permute.xlu0 %1964
      %v1967 = vsel %vm700, %v1619, %v1957
      %v1968 = vsel %vm1152, %v1967, %v1961
      %v1969 = vsel %vm1154, %v1968, %v1965
      %s1970 = scalar_lea.vmem %s6, 16
      %v1971 = vld [vmem:[%s1970] sm:$0xf]
      %v1972 = vld [vmem:[%s1970 + $0x4] sm:$0xf]
      %v1973 = vld [vmem:[%s1970 + $0x8] sm:$0xf]
      %v1974 = vld [vmem:[%s1970 + $0xc] sm:$0xf]
      %v1975 = vpack.c.bf16 %v1969, %v1969
      %s1976 = scalar_lea.vmem %s7, 1
      %v1977 = vld [vmem:[%s1976] sm:$0x1]
      %v1979 = vlaneseq
      %v1980 = vshrl.u32 %v1979, 7
      %v1981 = vsub.s32 0, %v1980
      %v1982 = vrot.slane %v1977, %v1981
      %v1988 = vunpack.c.l.b16 %v1971
      %v1989 = vunpack.c.l.b16 %v1972
      %v1990 = vunpack.c.l.b16 %v1973
      %v1991 = vunpack.c.l.b16 %v1974
      %v1992 = vpack.c.b16 %v1989, %v1988
      %v1993 = vpack.c.b16 %v1991, %v1990
      %v1997 = vsel %vm589, %v1975, 0
      %1999 = vmatprep.subr.bf16.mxu0 0
      %2000 = vmatpush1.bf16.msra.mxu0 0
      %2001 = vmatprep.subr.bf16.mxu0 0
      %2002 = vmatpush1.bf16.msra.mxu0 0
      %2003 = vmatprep.subr.bf16.mxu0 0
      %2004 = vmatpush1.bf16.msra.mxu0 0
      %2005 = vmatprep.subr.bf16.mxu0 0
      %2006 = vmatpush1.bf16.msra.mxu0 0
      %2007 = vmatprep.subr.bf16.mxu0 0
      %2008 = vmatpush1.bf16.msra.mxu0 0
      %2009 = vmatprep.subr.bf16.mxu0 0
      %2010 = vmatpush1.bf16.msra.mxu0 0
      %2011 = vmatprep.subr.bf16.mxu0 0
      %2012 = vmatpush1.bf16.msra.mxu0 %v1993
      %2013 = vmatprep.subr.bf16.mxu0 0
      %2014 = vmatpush1.bf16.msra.mxu0 %v1992
      %2015 = vmatprep.subr.bf16.mxu0 0
      %2016 = vmatpush2.bf16.msra.mxu0 0
      %2017 = vmatprep.subr.bf16.mxu0 0
      %2018 = vmatpush2.bf16.msra.mxu0 0
      %2019 = vmatprep.subr.bf16.mxu0 0
      %2020 = vmatpush2.bf16.msra.mxu0 0
      %2021 = vmatprep.subr.bf16.mxu0 0
      %2022 = vmatpush2.bf16.msra.mxu0 0
      %2023 = vmatprep.subr.bf16.mxu0 0
      %2024 = vmatpush2.bf16.msra.mxu0 0
      %2025 = vmatprep.subr.bf16.mxu0 0
      %2026 = vmatpush2.bf16.msra.mxu0 0
      %2027 = vmatprep.subr.bf16.mxu0 0
      %2028 = vmatpush2.bf16.msra.mxu0 0
      %2029 = vmatprep.subr.bf16.mxu0 0
      %2030 = vmatpush2.bf16.msra.mxu0 0
      %2031 = vmatprep.mubr.bf16.mxu0 0
      %2032 = vmatmul.mubr.bf16.gmra.mxu0 %v1997
      %v2033 = vpop.f32.mrf.mxu0
      %v2034 = vadd.f32 %v1982, %v2033
      %v2035 = vpop.f32.mrf.mxu0
      %v2036 = vpop.f32.mrf.mxu0
      %v2037 = vpop.f32.mrf.mxu0
      %2038 = vdwg.mxu0
      %v2039 = vadd.f32 %v1442, %v2034
      %s2040 = scalar_lea.vmem %s8, 1
      %v2041 = vld [vmem:[%s2040] sm:$0x1]
      %s2042 = scalar_lea.vmem %s9, 1
      %v2043 = vld [vmem:[%s2042] sm:$0x1]
      %v2044 = vsel %vm589, %v2039, 0.0
      %2045 = vadd.xlane.f32.xlu0 %v2044
      %v2046 = vpop.xlane.xlu0 %2045
      %v2047 = vmul.f32 %v2046, %v593
      %v2048 = vsub.f32 %v2039, %v2047
      %v2049 = vmul.f32 %v2048, %v2048
      %v2050 = vsel %vm589, %v2049, 0.0
      %2051 = vadd.xlane.f32.xlu0 %v2050
      %v2052 = vpop.xlane.xlu0 %2051
      %v2053 = vmul.f32 %v2052, %v593
      %v2054 = vadd.f32 %v2053, 1e-12
      %v2055 = vrsqrt.pop %v2054
      %v2056 = vmul.f32 %v2048, %v2055
      %v2058 = vlaneseq
      %v2059 = vshrl.u32 %v2058, 7
      %v2060 = vsub.s32 0, %v2059
      %v2061 = vrot.slane %v2041, %v2060
      %v2063 = vmul.f32 %v2056, %v2061
      %v2065 = vlaneseq
      %v2066 = vshrl.u32 %v2065, 7
      %v2067 = vsub.s32 0, %v2066
      %v2068 = vrot.slane %v2043, %v2067
      %v2070 = vadd.f32 %v2063, %v2068
      %s2071 = scalar_lea.vmem %s10, 16
      %v2072 = vld [vmem:[%s2071] sm:$0xf]
      %v2073 = vld [vmem:[%s2071 + $0x4] sm:$0xf]
      %v2074 = vld [vmem:[%s2071 + $0x8] sm:$0xf]
      %v2075 = vld [vmem:[%s2071 + $0xc] sm:$0xf]
      %v2076 = vpack.c.bf16 %v2070, %v2070
      %s2077 = scalar_lea.vmem %s11, 1
      %v2078 = vld [vmem:[%s2077] sm:$0x1]
      %v2080 = vlaneseq
      %v2081 = vshrl.u32 %v2080, 7
      %v2082 = vsub.s32 0, %v2081
      %v2083 = vrot.slane %v2078, %v2082
      %v2089 = vunpack.c.l.b16 %v2072
      %v2090 = vunpack.c.l.b16 %v2073
      %v2091 = vunpack.c.l.b16 %v2074
      %v2092 = vunpack.c.l.b16 %v2075
      %v2093 = vpack.c.b16 %v2090, %v2089
      %v2094 = vpack.c.b16 %v2092, %v2091
      %v2098 = vsel %vm589, %v2076, 0
      %2100 = vmatprep.subr.bf16.mxu0 0
      %2101 = vmatpush1.bf16.msra.mxu0 0
      %2102 = vmatprep.subr.bf16.mxu0 0
      %2103 = vmatpush1.bf16.msra.mxu0 0
      %2104 = vmatprep.subr.bf16.mxu0 0
      %2105 = vmatpush1.bf16.msra.mxu0 0
      %2106 = vmatprep.subr.bf16.mxu0 0
      %2107 = vmatpush1.bf16.msra.mxu0 0
      %2108 = vmatprep.subr.bf16.mxu0 0
      %2109 = vmatpush1.bf16.msra.mxu0 0
      %2110 = vmatprep.subr.bf16.mxu0 0
      %2111 = vmatpush1.bf16.msra.mxu0 0
      %2112 = vmatprep.subr.bf16.mxu0 0
      %2113 = vmatpush1.bf16.msra.mxu0 %v2094
      %2114 = vmatprep.subr.bf16.mxu0 0
      %2115 = vmatpush1.bf16.msra.mxu0 %v2093
      %2116 = vmatprep.subr.bf16.mxu0 0
      %2117 = vmatpush2.bf16.msra.mxu0 0
      %2118 = vmatprep.subr.bf16.mxu0 0
      %2119 = vmatpush2.bf16.msra.mxu0 0
      %2120 = vmatprep.subr.bf16.mxu0 0
      %2121 = vmatpush2.bf16.msra.mxu0 0
      %2122 = vmatprep.subr.bf16.mxu0 0
      %2123 = vmatpush2.bf16.msra.mxu0 0
      %2124 = vmatprep.subr.bf16.mxu0 0
      %2125 = vmatpush2.bf16.msra.mxu0 0
      %2126 = vmatprep.subr.bf16.mxu0 0
      %2127 = vmatpush2.bf16.msra.mxu0 0
      %2128 = vmatprep.subr.bf16.mxu0 0
      %2129 = vmatpush2.bf16.msra.mxu0 0
      %2130 = vmatprep.subr.bf16.mxu0 0
      %2131 = vmatpush2.bf16.msra.mxu0 0
      %2132 = vmatprep.mubr.bf16.mxu0 0
      %2133 = vmatmul.mubr.bf16.gmra.mxu0 %v2098
      %v2134 = vpop.f32.mrf.mxu0
      %v2135 = vadd.f32 %v2083, %v2134
      %v2136 = vpop.f32.mrf.mxu0
      %v2137 = vpop.f32.mrf.mxu0
      %v2138 = vpop.f32.mrf.mxu0
      %2139 = vdwg.mxu0
      %v2140 = vmul.f32 %v2135, 0.5
      %v2141 = vmul.f32 %v2135, 0.044715
      %v2142 = vmul.f32 %v2141, %v2135
      %v2143 = vmul.f32 %v2142, %v2135
      %v2144 = vadd.f32 %v2135, %v2143
      %v2145 = vmul.f32 %v2144, 0.7978846
      %v2146 = vtanh.pop %v2145
      %v2147 = vadd.f32 %v2146, 1.0
      %v2148 = vmul.f32 %v2140, %v2147
      %s2149 = scalar_lea.vmem %s12, 32
      %v2150 = vld [vmem:[%s2149] sm:$0xf]
      %v2151 = vld [vmem:[%s2149 + $0x4] sm:$0xf]
      %v2152 = vld [vmem:[%s2149 + $0x8] sm:$0xf]
      %v2153 = vld [vmem:[%s2149 + $0xc] sm:$0xf]
      %v2154 = vld [vmem:[%s2149 + $0x10] sm:$0xf]
      %v2155 = vld [vmem:[%s2149 + $0x14] sm:$0xf]
      %v2156 = vld [vmem:[%s2149 + $0x18] sm:$0xf]
      %v2157 = vld [vmem:[%s2149 + $0x1c] sm:$0xf]
      %v2158 = vpack.c.bf16 %v2148, %v2148
      %s2159 = scalar_lea.vmem %s13, 1
      %v2160 = vld [vmem:[%s2159] sm:$0x1]
      %v2162 = vlaneseq
      %v2163 = vshrl.u32 %v2162, 7
      %v2164 = vsub.s32 0, %v2163
      %v2165 = vrot.slane %v2160, %v2164
      %v2175 = vunpack.c.l.b16 %v2150
      %v2176 = vunpack.c.l.b16 %v2151
      %v2177 = vunpack.c.l.b16 %v2152
      %v2178 = vunpack.c.l.b16 %v2153
      %v2179 = vunpack.c.l.b16 %v2154
      %v2180 = vunpack.c.l.b16 %v2155
      %v2181 = vunpack.c.l.b16 %v2156
      %v2182 = vunpack.c.l.b16 %v2157
      %v2183 = vpack.c.b16 %v2176, %v2175
      %v2184 = vpack.c.b16 %v2178, %v2177
      %v2185 = vpack.c.b16 %v2180, %v2179
      %v2186 = vpack.c.b16 %v2182, %v2181
      %v2192 = vsel %vm1369, %v2158, 0
      %2194 = vmatprep.subr.bf16.mxu0 0
      %2195 = vmatpush1.bf16.msra.mxu0 0
      %2196 = vmatprep.subr.bf16.mxu0 0
      %2197 = vmatpush1.bf16.msra.mxu0 0
      %2198 = vmatprep.subr.bf16.mxu0 0
      %2199 = vmatpush1.bf16.msra.mxu0 0
      %2200 = vmatprep.subr.bf16.mxu0 0
      %2201 = vmatpush1.bf16.msra.mxu0 0
      %2202 = vmatprep.subr.bf16.mxu0 0
      %2203 = vmatpush1.bf16.msra.mxu0 %v2186
      %2204 = vmatprep.subr.bf16.mxu0 0
      %2205 = vmatpush1.bf16.msra.mxu0 %v2185
      %2206 = vmatprep.subr.bf16.mxu0 0
      %2207 = vmatpush1.bf16.msra.mxu0 %v2184
      %2208 = vmatprep.subr.bf16.mxu0 0
      %2209 = vmatpush1.bf16.msra.mxu0 %v2183
      %2210 = vmatprep.subr.bf16.mxu0 0
      %2211 = vmatpush2.bf16.msra.mxu0 0
      %2212 = vmatprep.subr.bf16.mxu0 0
      %2213 = vmatpush2.bf16.msra.mxu0 0
      %2214 = vmatprep.subr.bf16.mxu0 0
      %2215 = vmatpush2.bf16.msra.mxu0 0
      %2216 = vmatprep.subr.bf16.mxu0 0
      %2217 = vmatpush2.bf16.msra.mxu0 0
      %2218 = vmatprep.subr.bf16.mxu0 0
      %2219 = vmatpush2.bf16.msra.mxu0 0
      %2220 = vmatprep.subr.bf16.mxu0 0
      %2221 = vmatpush2.bf16.msra.mxu0 0
      %2222 = vmatprep.subr.bf16.mxu0 0
      %2223 = vmatpush2.bf16.msra.mxu0 0
      %2224 = vmatprep.subr.bf16.mxu0 0
      %2225 = vmatpush2.bf16.msra.mxu0 0
      %2226 = vmatprep.mubr.bf16.mxu0 0
      %2227 = vmatmul.mubr.bf16.gmra.mxu0 %v2192
      %v2228 = vpop.f32.mrf.mxu0
      %v2229 = vadd.f32 %v2165, %v2228
      %v2230 = vpop.f32.mrf.mxu0
      %v2231 = vpop.f32.mrf.mxu0
      %v2232 = vpop.f32.mrf.mxu0
      %2233 = vdwg.mxu0
      %v2234 = vadd.f32 %v2070, %v2229
      %s2235 = scalar_lea.vmem %s14, 1
      %v2236 = vld [vmem:[%s2235] sm:$0x1]
      %s2237 = scalar_lea.vmem %s15, 1
      %v2238 = vld [vmem:[%s2237] sm:$0x1]
      %v2239 = vsel %vm589, %v2234, 0.0
      %2240 = vadd.xlane.f32.xlu0 %v2239
      %v2241 = vpop.xlane.xlu0 %2240
      %v2242 = vmul.f32 %v2241, %v593
      %v2243 = vsub.f32 %v2234, %v2242
      %v2244 = vmul.f32 %v2243, %v2243
      %v2245 = vsel %vm589, %v2244, 0.0
      %2246 = vadd.xlane.f32.xlu0 %v2245
      %v2247 = vpop.xlane.xlu0 %2246
      %v2248 = vmul.f32 %v2247, %v593
      %v2249 = vadd.f32 %v2248, 1e-12
      %v2250 = vrsqrt.pop %v2249
      %v2251 = vmul.f32 %v2243, %v2250
      %v2253 = vlaneseq
      %v2254 = vshrl.u32 %v2253, 7
      %v2255 = vsub.s32 0, %v2254
      %v2256 = vrot.slane %v2236, %v2255
      %v2258 = vmul.f32 %v2251, %v2256
      %v2260 = vlaneseq
      %v2261 = vshrl.u32 %v2260, 7
      %v2262 = vsub.s32 0, %v2261
      %v2263 = vrot.slane %v2238, %v2262
      %v2265 = vadd.f32 %v2258, %v2263
      %v2266 = vld [vmem:[%s16] sm:$0x1]
      %v2267 = vmul.f32 %v2265, %v2266
      %vm2268 = vcmask 253952
      %v2269 = vsel %vm2268, %v2267, 0.0
      %2270 = vadd.xlane.f32.xlu0 %v2269
      %v2271 = vpop.xlane.xlu0 %2270
      %v2272 = vld [vmem:[#allocation2] sm:$0x1]
      %v2273 = vadd.f32 %v2271, %v2272
      %vm2274 = vcmask 0
      %2275 = vst.msk [vmem:[%s584] sm:$0x1] %vm2274, %v2273
      %p2276 = scmp.lt.s32.totalorder %s31, 1
      %s2277 = scalar_select %p2276, %s31, 1
      %s2278 = scalar_lea.vmem %s18, %s2277
      // Predicated region
      $region93: #{bert_regressor_forward.1} parent=91 // pred_check
        %p2279 = pneg %p437
      $region94: #{bert_regressor_forward.1} parent=91 // pred_check_branch
        %2281 = sbr.rel (%p2279) target = $region96
      $region95: #{bert_regressor_forward.1} parent=91 // pred_region
        _
      $region96: #{bert_regressor_forward.1} parent=91 // pred_fallthru
        _
    $region92: #{bert_regressor_forward.1} parent=5 // pred_fallthru
      _
    %p2282 = scmp.le.s32.totalorder 2, %s26
    // Predicated region
    $region97: #{bert_regressor_forward.1} parent=5 // pred_check
      %p2283 = pneg %p2282
    $region98: #{bert_regressor_forward.1} parent=5 // pred_check_branch
      %2285 = sbr.rel (%p2283) target = $region100
    $region99: #{bert_regressor_forward.1} parent=5 // pred_region
      %s2286 = ssub.s32 %s26, 2
      // Predicated region
      $region101: #{bert_regressor_forward.1} parent=99 // pred_check
        %p2287 = pneg %p443
      $region102: #{bert_regressor_forward.1} parent=99 // pred_check_branch
        %2289 = sbr.rel (%p2287) target = $region104
      $region103: #{bert_regressor_forward.1} parent=99 // pred_region
        %p2290 = scmp.lt.s32.totalorder %s32, 1
        %s2291 = scalar_select %p2290, %s32, 1
        %s2292 = scalar_lea.vmem %s18, %s2291
      $region104: #{bert_regressor_forward.1} parent=99 // pred_fallthru
        _
    $region100: #{bert_regressor_forward.1} parent=5 // pred_fallthru
      _
  $region6: #{bert_regressor_forward.1} parent=0 // loop_footer
    %s30 = sadd.s32 1, %s26
  $region7: #{bert_regressor_forward.1} parent=0 // loop_footer_branch
    %25 = sbr.rel target = $region3
  $region8: #{bert_regressor_forward.1} parent=0 // loop_exit
    _

</llo_original>
